<compile_context>
chip_gen: v7x
topology: tpu7x:2x2x1
jax: 0.10.0
libtpu: 0.0.40
codegen_flags: <defaults>
</compile_context>

<pallas_src>
import jax
import jax.numpy as jnp
from jax import lax
from jax.experimental import pallas as pl
from jax.experimental.pallas import tpu as pltpu


# --------------------------------------------------------------------------
# Kernel body
# --------------------------------------------------------------------------
def _dwconv_body(xc_ref, xt_ref, xb_ref, w_ref, b_ref, o_ref, acc_ref):
    # xc_ref : (TB, TH, W, TC)  input tile (NHWC, channels on lanes)
    # xt_ref : (TB, 1,  W, TC)  halo row above the tile (None when rows untiled)
    # xb_ref : (TB, 1,  W, TC)  halo row below the tile (None when rows untiled)
    # w_ref  : (3, 3, TC)       depthwise weights, channels-last
    # b_ref  : (1, TC)          bias
    # o_ref  : (TB, TH, W, TC)  output tile
    # acc_ref: (TB, TH, W, TC)  f32 scratch, or None (accumulate in o_ref, f32 I/O)
    f32 = jnp.float32
    TB, TH, Wd, TC = o_ref.shape

    acc = o_ref if acc_ref is None else acc_ref

    # ---- hoisted per-tile constants (tiny) --------------------------------
    w = w_ref[...].astype(f32)                      # (3, 3, TC)
    bias = b_ref[...].astype(f32).reshape(TC)       # (TC,)

    # Column-edge masks: the horizontal taps are sublane rolls, which wrap
    # around the W axis; zeroing the wrapped column reproduces the zero
    # padding without a W-padded copy.  Built once, folded into the weights.
    col = lax.broadcasted_iota(jnp.int32, (1, Wd, 1), 1)
    not_first = (col > 0).astype(f32)               # (1, W, 1)
    not_last = (col < Wd - 1).astype(f32)           # (1, W, 1)
    wc = [w[kh, 1] for kh in range(3)]              # (TC,)     center tap
    wl = [w[kh, 0] * not_first for kh in range(3)]  # (1, W, TC) left tap, col 0 masked
    wr = [w[kh, 2] * not_last for kh in range(3)]   # (1, W, TC) right tap, col W-1 masked

    def hconv(slab, kh):
        # 3-tap horizontal conv of `slab` (TB, R, W, TC) with kernel row kh.
        tb, r = slab.shape[0], slab.shape[1]
        s = slab.reshape(tb * r, Wd, TC)            # merge leading dims (free)
        out = s * wc[kh]                                             # in[:, j]
        out = out + pltpu.roll(s, shift=1, axis=1) * wl[kh]          # in[:, j-1]
        out = out + pltpu.roll(s, shift=Wd - 1, axis=1) * wr[kh]     # in[:, j+1]
        return out.reshape(tb, r, Wd, TC)

    center = xc_ref[...].astype(f32)                # (TB, TH, W, TC), upcast once

    # Kernel row 1 (same image row) feeds every output row; fold the bias in.
    acc[...] = hconv(center, 1) + bias

    # Vertical neighbours inside the tile: input row r feeds output row r+1
    # (kernel row 0) and output row r-1 (kernel row 2).  Row-range ref updates
    # avoid materialising any (TH+2)-row padded copy of the slab.
    if TH > 1:
        acc[:, 1:TH, :, :] += hconv(center[:, 0:TH - 1], 0)
        acc[:, 0:TH - 1, :, :] += hconv(center[:, 1:TH], 2)

    # Halo rows (only present when the image rows are tiled): the row directly
    # above / below this tile feeds output row 0 / TH-1.  At the image edges
    # the pl.when guard skips the add — exactly the zero padding.
    if xt_ref is not None:
        h = pl.program_id(2)
        nh = pl.num_programs(2)

        @pl.when(h > 0)
        def _():
            acc[:, 0:1, :, :] += hconv(xt_ref[...].astype(f32), 0)

        @pl.when(h < nh - 1)
        def _():
            acc[:, TH - 1:TH, :, :] += hconv(xb_ref[...].astype(f32), 2)

    if acc_ref is not None:
        o_ref[...] = acc_ref[...].astype(o_ref.dtype)


def _make_kernel(has_halo, needs_scratch):
    if has_halo and needs_scratch:
        def k(xc, xt, xb, w, b, o, acc):
            _dwconv_body(xc, xt, xb, w, b, o, acc)
    elif has_halo:
        def k(xc, xt, xb, w, b, o):
            _dwconv_body(xc, xt, xb, w, b, o, None)
    elif needs_scratch:
        def k(xc, w, b, o, acc):
            _dwconv_body(xc, None, None, w, b, o, acc)
    else:
        def k(xc, w, b, o):
            _dwconv_body(xc, None, None, w, b, o, None)
    return k


# --------------------------------------------------------------------------
# Tiling policy
# --------------------------------------------------------------------------
def _vmem_capacity_bytes():
    try:
        return int(pltpu.get_tpu_info().vmem_capacity_bytes)
    except Exception:
        return 64 << 20      # conservative fallback: v7x per-TensorCore VMEM


def _largest_divisor_leq(n, cap):
    cap = max(1, min(n, cap))
    for d in range(cap, 0, -1):
        if n % d == 0:
            return d
    return 1


def _pick_tiles(B, H, W, C, itemsize, block_budget):
    # Channel tile: widest 128-multiple divisor of C up to 512 lanes (fewer
    # grid steps, wider unmasked stores); non-128-aligned C must stay whole.
    TC = C
    for cand in (512, 384, 256, 128):
        if C % cand == 0:
            TC = cand
            break
    # Row tile: largest divisor of H whose center block fits the budget.
    # (Divisor-only keeps the halo logic exact; awkward H degrades to small
    # tiles instead of blowing the VMEM budget.)
    row_bytes = W * TC * itemsize
    max_th = max(1, block_budget // row_bytes)
    TH = _largest_divisor_leq(H, max_th)
    TB = 1
    if TH == H:
        # Whole image fits in one row tile: no vertical halo needed; fold the
        # batch axis into the block instead to keep blocks large.
        max_tb = max(1, block_budget // (H * row_bytes))
        TB = _largest_divisor_leq(B, max_tb)
        # Keep at least 2 grid steps when we can, so v7x's two TensorCores
        # both get work (irrelevant on single-core v5e/v6e).
        if TB == B and B > 1 and C // TC == 1:
            TB = _largest_divisor_leq(B, B // 2)
    return TB, TH, TC


# --------------------------------------------------------------------------
# Wrapper
# --------------------------------------------------------------------------
def dwconv_pallas(x, weight, bias, H, W, *, block_budget_bytes=None):
    """Depthwise 3x3 conv, stride 1, pad 1 (DWConv forward).

    x:      (B, N, C) with N == H * W
    weight: (C, 1, 3, 3)   (PyTorch Conv2d groups=C layout)
    bias:   (C,)
    returns (B, N, C), same dtype as x.
    """
    B, N, C = x.shape
    assert N == H * W
    itemsize = jnp.dtype(x.dtype).itemsize

    # Token layout (B, N, C) is already row-major (B, H, W, C): free reshape.
    x_img = x.reshape(B, H, W, C)
    w_k = jnp.transpose(weight[:, 0, :, :], (1, 2, 0))   # (3, 3, C)
    b_k = bias.reshape(1, C)

    vmem_cap = _vmem_capacity_bytes()
    if block_budget_bytes is None:
        # Center-block target: large enough to amortise the ~0.35us per-step
        # overhead, small enough that double-buffered in/out blocks plus the
        # in-kernel f32 temporaries stay well inside VMEM on v7x (64 MiB) as
        # well as v5e/v6e (128 MiB).
        block_budget_bytes = min(4 << 20, (vmem_cap * 6 // 10) // 10)

    TB, TH, TC = _pick_tiles(B, H, W, C, itemsize, block_budget_bytes)
    nB, nH, nC = B // TB, H // TH, C // TC
    has_halo = nH > 1
    needs_scratch = jnp.dtype(x.dtype) != jnp.dtype(jnp.float32)

    def center_map(c, bb, h):
        return (bb, h, 0, c)

    in_specs = [pl.BlockSpec((TB, TH, W, TC), center_map)]
    operands = [x_img]
    if has_halo:
        # 1-row halos above/below the tile, row index clamped at the image
        # edges (the clamped fetch is never used: pl.when skips the add).
        in_specs += [
            pl.BlockSpec((TB, 1, W, TC),
                         lambda c, bb, h: (bb, jnp.maximum(h * TH - 1, 0), 0, c)),
            pl.BlockSpec((TB, 1, W, TC),
                         lambda c, bb, h: (bb, jnp.minimum(h * TH + TH, H - 1), 0, c)),
        ]
        operands += [x_img, x_img]
    # Weights / bias: index depends only on the outermost grid axis (c), so
    # Pallas does not re-DMA them across the inner (b, h) sweep.
    in_specs += [
        pl.BlockSpec((3, 3, TC), lambda c, bb, h: (0, 0, c)),
        pl.BlockSpec((1, TC), lambda c, bb, h: (0, c)),
    ]
    operands += [w_k, b_k]

    scratch_shapes = ([pltpu.VMEM((TB, TH, W, TC), jnp.float32)]
                      if needs_scratch else [])

    out = pl.pallas_call(
        _make_kernel(has_halo, needs_scratch),
        out_shape=jax.ShapeDtypeStruct((B, H, W, C), x.dtype),
        grid_spec=pltpu.PrefetchScalarGridSpec(
            num_scalar_prefetch=0,
            grid=(nC, nB, nH),
            in_specs=in_specs,
            out_specs=pl.BlockSpec((TB, TH, W, TC), center_map),
            scratch_shapes=scratch_shapes,
        ),
        compiler_params=pltpu.CompilerParams(
            dimension_semantics=("parallel", "parallel", "parallel"),
            vmem_limit_bytes=int(min(vmem_cap * 3 // 4, 128 << 20)),
        ),
    )(*operands)

    return out.reshape(B, N, C)


# --------------------------------------------------------------------------
# Reference + self-test
# --------------------------------------------------------------------------
def _reference(x, weight, bias, H, W):
    B, N, C = x.shape
    x_nchw = jnp.transpose(x, (0, 2, 1)).reshape(B, C, H, W)
    y = jax.lax.conv_general_dilated(
        x_nchw, weight,
        window_strides=(1, 1), padding=((1, 1), (1, 1)),
        feature_group_count=C,
        dimension_numbers=("NCHW", "OIHW", "NCHW"),
    ) + bias.reshape(1, C, 1, 1)
    return jnp.transpose(y.reshape(B, C, N), (0, 2, 1))


if __name__ == "__main__":
    key = jax.random.PRNGKey(0)
    k1, k2, k3 = jax.random.split(key, 3)

    # Small stand-in for dim=768: exercises lane-dense channel tiling,
    # batch folding (auto budget) and row tiling + halos (forced small budget).
    B, C, Hd, Wd = 2, 256, 32, 16
    N = Hd * Wd

    x = jax.random.normal(k1, (B, N, C), dtype=jnp.float32)
    weight = jax.random.normal(k2, (C, 1, 3, 3), dtype=jnp.float32) * 0.1
    bias = jax.random.normal(k3, (C,), dtype=jnp.float32) * 0.1

    ref_f32 = jax.block_until_ready(_reference(x, weight, bias, Hd, Wd))

    x_bf = x.astype(jnp.bfloat16)
    w_bf = weight.astype(jnp.bfloat16)
    b_bf = bias.astype(jnp.bfloat16)
    ref_bf = jax.block_until_ready(
        _reference(x_bf.astype(jnp.float32), w_bf.astype(jnp.float32),
                   b_bf.astype(jnp.float32), Hd, Wd))

    configs = [
        # name        inputs             budget     reference  tol
        ("auto-f32",  (x, weight, bias),   None,      ref_f32, 1e-4),
        ("tiled-f32", (x, weight, bias),   64 * 1024, ref_f32, 1e-4),
        ("auto-bf16", (x_bf, w_bf, b_bf),  None,      ref_bf,  3e-2),
    ]
    for name, (xx, ww, bb), budget, ref, tol in configs:
        out = jax.block_until_ready(
            dwconv_pallas(xx, ww, bb, Hd, Wd, block_budget_bytes=budget))
        assert out.shape == (B, N, C), name
        assert jnp.allclose(out.astype(jnp.float32), ref, atol=tol, rtol=tol), name

    print("KERNEL_OK")
</pallas_src>

<mosaic_0001>
module attributes {stable_mosaic.version = 11 : i64} {
  func.func @k(%arg0: i32, %arg1: i32, %arg2: i32, %arg3: memref<1x32x16x256xf32, #tpu.memory_space<vmem>>, %arg4: memref<3x3x256xf32, #tpu.memory_space<vmem>>, %arg5: memref<1x256xf32, #tpu.memory_space<vmem>>, %arg6: memref<1x32x16x256xf32, #tpu.memory_space<vmem>>) attributes {dimension_semantics = [#tpu.dimension_semantics<parallel>, #tpu.dimension_semantics<parallel>, #tpu.dimension_semantics<parallel>], iteration_bounds = array<i64: 1, 2, 1>, scalar_prefetch = 0 : i64, scratch_operands = 0 : i64, tpu.core_type = #tpu.core_type<tc>, window_params = [{transform_indices = @transform_0, window_bounds = array<i64: 1, 32, 16, 256>}, {transform_indices = @transform_1, window_bounds = array<i64: 3, 3, 256>}, {transform_indices = @transform_2, window_bounds = array<i64: 1, 256>}, {transform_indices = @transform_3, window_bounds = array<i64: 1, 32, 16, 256>}]} {
    %c0 = arith.constant 0 : index
    %c0_0 = arith.constant 0 : index
    %c0_1 = arith.constant 0 : index
    %0 = vector.load %arg4[%c0, %c0_0, %c0_1] : memref<3x3x256xf32, #tpu.memory_space<vmem>>, vector<3x3x256xf32>
    %c0_2 = arith.constant 0 : index
    %c0_3 = arith.constant 0 : index
    %1 = vector.load %arg5[%c0_2, %c0_3] : memref<1x256xf32, #tpu.memory_space<vmem>>, vector<1x256xf32>
    %2 = vector.shape_cast %1 : vector<1x256xf32> to vector<256xf32>
    %3 = tpu.iota {dimensions = array<i32: 1>} : vector<1x16x1xi32>
    %c0_i32 = arith.constant 0 : i32
    %4 = vector.broadcast %c0_i32 : i32 to vector<1x16x1xi32>
    %5 = arith.cmpi sgt, %3, %4 : vector<1x16x1xi32>
    %6 = arith.extui %5 : vector<1x16x1xi1> to vector<1x16x1xi32>
    %7 = arith.sitofp %6 : vector<1x16x1xi32> to vector<1x16x1xf32>
    %c15_i32 = arith.constant 15 : i32
    %8 = vector.broadcast %c15_i32 : i32 to vector<1x16x1xi32>
    %9 = arith.cmpi slt, %3, %8 : vector<1x16x1xi32>
    %10 = arith.extui %9 : vector<1x16x1xi1> to vector<1x16x1xi32>
    %11 = arith.sitofp %10 : vector<1x16x1xi32> to vector<1x16x1xf32>
    %12 = vector.extract_strided_slice %0 {offsets = [0, 1, 0], sizes = [1, 1, 256], strides = [1, 1, 1]} : vector<3x3x256xf32> to vector<1x1x256xf32>
    %13 = vector.shape_cast %12 : vector<1x1x256xf32> to vector<256xf32>
    %14 = vector.extract_strided_slice %0 {offsets = [1, 1, 0], sizes = [1, 1, 256], strides = [1, 1, 1]} : vector<3x3x256xf32> to vector<1x1x256xf32>
    %15 = vector.shape_cast %14 : vector<1x1x256xf32> to vector<256xf32>
    %16 = vector.extract_strided_slice %0 {offsets = [2, 1, 0], sizes = [1, 1, 256], strides = [1, 1, 1]} : vector<3x3x256xf32> to vector<1x1x256xf32>
    %17 = vector.shape_cast %16 : vector<1x1x256xf32> to vector<256xf32>
    %18 = vector.extract_strided_slice %0 {offsets = [0, 0, 0], sizes = [1, 1, 256], strides = [1, 1, 1]} : vector<3x3x256xf32> to vector<1x1x256xf32>
    %19 = vector.shape_cast %18 : vector<1x1x256xf32> to vector<256xf32>
    %20 = vector.shape_cast %19 : vector<256xf32> to vector<1x1x256xf32>
    %21 = vector.broadcast %20 : vector<1x1x256xf32> to vector<1x16x256xf32>
    %22 = vector.broadcast %7 : vector<1x16x1xf32> to vector<1x16x256xf32>
    %23 = arith.mulf %21, %22 : vector<1x16x256xf32>
    %24 = vector.extract_strided_slice %0 {offsets = [1, 0, 0], sizes = [1, 1, 256], strides = [1, 1, 1]} : vector<3x3x256xf32> to vector<1x1x256xf32>
    %25 = vector.shape_cast %24 : vector<1x1x256xf32> to vector<256xf32>
    %26 = vector.shape_cast %25 : vector<256xf32> to vector<1x1x256xf32>
    %27 = vector.broadcast %26 : vector<1x1x256xf32> to vector<1x16x256xf32>
    %28 = vector.broadcast %7 : vector<1x16x1xf32> to vector<1x16x256xf32>
    %29 = arith.mulf %27, %28 : vector<1x16x256xf32>
    %30 = vector.extract_strided_slice %0 {offsets = [2, 0, 0], sizes = [1, 1, 256], strides = [1, 1, 1]} : vector<3x3x256xf32> to vector<1x1x256xf32>
    %31 = vector.shape_cast %30 : vector<1x1x256xf32> to vector<256xf32>
    %32 = vector.shape_cast %31 : vector<256xf32> to vector<1x1x256xf32>
    %33 = vector.broadcast %32 : vector<1x1x256xf32> to vector<1x16x256xf32>
    %34 = vector.broadcast %7 : vector<1x16x1xf32> to vector<1x16x256xf32>
    %35 = arith.mulf %33, %34 : vector<1x16x256xf32>
    %36 = vector.extract_strided_slice %0 {offsets = [0, 2, 0], sizes = [1, 1, 256], strides = [1, 1, 1]} : vector<3x3x256xf32> to vector<1x1x256xf32>
    %37 = vector.shape_cast %36 : vector<1x1x256xf32> to vector<256xf32>
    %38 = vector.shape_cast %37 : vector<256xf32> to vector<1x1x256xf32>
    %39 = vector.broadcast %38 : vector<1x1x256xf32> to vector<1x16x256xf32>
    %40 = vector.broadcast %11 : vector<1x16x1xf32> to vector<1x16x256xf32>
    %41 = arith.mulf %39, %40 : vector<1x16x256xf32>
    %42 = vector.extract_strided_slice %0 {offsets = [1, 2, 0], sizes = [1, 1, 256], strides = [1, 1, 1]} : vector<3x3x256xf32> to vector<1x1x256xf32>
    %43 = vector.shape_cast %42 : vector<1x1x256xf32> to vector<256xf32>
    %44 = vector.shape_cast %43 : vector<256xf32> to vector<1x1x256xf32>
    %45 = vector.broadcast %44 : vector<1x1x256xf32> to vector<1x16x256xf32>
    %46 = vector.broadcast %11 : vector<1x16x1xf32> to vector<1x16x256xf32>
    %47 = arith.mulf %45, %46 : vector<1x16x256xf32>
    %48 = vector.extract_strided_slice %0 {offsets = [2, 2, 0], sizes = [1, 1, 256], strides = [1, 1, 1]} : vector<3x3x256xf32> to vector<1x1x256xf32>
    %49 = vector.shape_cast %48 : vector<1x1x256xf32> to vector<256xf32>
    %50 = vector.shape_cast %49 : vector<256xf32> to vector<1x1x256xf32>
    %51 = vector.broadcast %50 : vector<1x1x256xf32> to vector<1x16x256xf32>
    %52 = vector.broadcast %11 : vector<1x16x1xf32> to vector<1x16x256xf32>
    %53 = arith.mulf %51, %52 : vector<1x16x256xf32>
    %c0_4 = arith.constant 0 : index
    %c0_5 = arith.constant 0 : index
    %c0_6 = arith.constant 0 : index
    %c0_7 = arith.constant 0 : index
    %54 = vector.load %arg3[%c0_4, %c0_5, %c0_6, %c0_7] : memref<1x32x16x256xf32, #tpu.memory_space<vmem>>, vector<1x32x16x256xf32>
    %55 = vector.shape_cast %54 : vector<1x32x16x256xf32> to vector<32x16x256xf32>
    %56 = vector.shape_cast %15 : vector<256xf32> to vector<1x1x256xf32>
    %57 = vector.broadcast %56 : vector<1x1x256xf32> to vector<32x16x256xf32>
    %58 = arith.mulf %55, %57 : vector<32x16x256xf32>
    %c1_i32 = arith.constant 1 : i32
    %59 = tpu.dynamic_rotate %55 by %c1_i32 dim 1 : vector<32x16x256xf32>, i32 -> vector<32x16x256xf32>
    %60 = vector.broadcast %29 : vector<1x16x256xf32> to vector<32x16x256xf32>
    %61 = arith.mulf %59, %60 : vector<32x16x256xf32>
    %62 = arith.addf %58, %61 : vector<32x16x256xf32>
    %c15_i32_8 = arith.constant 15 : i32
    %63 = tpu.dynamic_rotate %55 by %c15_i32_8 dim 1 : vector<32x16x256xf32>, i32 -> vector<32x16x256xf32>
    %64 = vector.broadcast %47 : vector<1x16x256xf32> to vector<32x16x256xf32>
    %65 = arith.mulf %63, %64 : vector<32x16x256xf32>
    %66 = arith.addf %62, %65 : vector<32x16x256xf32>
    %67 = vector.shape_cast %66 : vector<32x16x256xf32> to vector<1x32x16x256xf32>
    %68 = vector.shape_cast %2 : vector<256xf32> to vector<1x1x1x256xf32>
    %69 = vector.broadcast %68 : vector<1x1x1x256xf32> to vector<1x32x16x256xf32>
    %70 = arith.addf %67, %69 : vector<1x32x16x256xf32>
    %c0_9 = arith.constant 0 : index
    %c0_10 = arith.constant 0 : index
    %c0_11 = arith.constant 0 : index
    %c0_12 = arith.constant 0 : index
    %71 = vector.load %arg6[%c0_9, %c0_10, %c0_11, %c0_12] : memref<1x32x16x256xf32, #tpu.memory_space<vmem>>, vector<1x32x16x256xf32>
    tpu.vector_store %arg6[%c0_9, %c0_10, %c0_11, %c0_12], %70 {strides = array<i32>} : memref<1x32x16x256xf32, #tpu.memory_space<vmem>>, vector<1x32x16x256xf32>,
    %c0_13 = arith.constant 0 : index
    %c1 = arith.constant 1 : index
    %c0_14 = arith.constant 0 : index
    %c0_15 = arith.constant 0 : index
    %72 = vector.load %arg6[%c0_13, %c1, %c0_14, %c0_15] : memref<1x32x16x256xf32, #tpu.memory_space<vmem>>, vector<1x31x16x256xf32>
    %73 = vector.extract_strided_slice %54 {offsets = [0, 0, 0, 0], sizes = [1, 31, 16, 256], strides = [1, 1, 1, 1]} : vector<1x32x16x256xf32> to vector<1x31x16x256xf32>
    %74 = vector.shape_cast %73 : vector<1x31x16x256xf32> to vector<31x16x256xf32>
    %75 = vector.shape_cast %13 : vector<256xf32> to vector<1x1x256xf32>
    %76 = vector.broadcast %75 : vector<1x1x256xf32> to vector<31x16x256xf32>
    %77 = arith.mulf %74, %76 : vector<31x16x256xf32>
    %c1_i32_16 = arith.constant 1 : i32
    %78 = tpu.dynamic_rotate %74 by %c1_i32_16 dim 1 : vector<31x16x256xf32>, i32 -> vector<31x16x256xf32>
    %79 = vector.broadcast %23 : vector<1x16x256xf32> to vector<31x16x256xf32>
    %80 = arith.mulf %78, %79 : vector<31x16x256xf32>
    %81 = arith.addf %77, %80 : vector<31x16x256xf32>
    %c15_i32_17 = arith.constant 15 : i32
    %82 = tpu.dynamic_rotate %74 by %c15_i32_17 dim 1 : vector<31x16x256xf32>, i32 -> vector<31x16x256xf32>
    %83 = vector.broadcast %41 : vector<1x16x256xf32> to vector<31x16x256xf32>
    %84 = arith.mulf %82, %83 : vector<31x16x256xf32>
    %85 = arith.addf %81, %84 : vector<31x16x256xf32>
    %86 = vector.shape_cast %85 : vector<31x16x256xf32> to vector<1x31x16x256xf32>
    %87 = arith.addf %72, %86 : vector<1x31x16x256xf32>
    %c0_18 = arith.constant 0 : index
    %c1_19 = arith.constant 1 : index
    %c0_20 = arith.constant 0 : index
    %c0_21 = arith.constant 0 : index
    %88 = vector.load %arg6[%c0_18, %c1_19, %c0_20, %c0_21] : memref<1x32x16x256xf32, #tpu.memory_space<vmem>>, vector<1x31x16x256xf32>
    tpu.vector_store %arg6[%c0_18, %c1_19, %c0_20, %c0_21], %87 {strides = array<i32>} : memref<1x32x16x256xf32, #tpu.memory_space<vmem>>, vector<1x31x16x256xf32>,
    %c0_22 = arith.constant 0 : index
    %c0_23 = arith.constant 0 : index
    %c0_24 = arith.constant 0 : index
    %c0_25 = arith.constant 0 : index
    %89 = vector.load %arg6[%c0_22, %c0_23, %c0_24, %c0_25] : memref<1x32x16x256xf32, #tpu.memory_space<vmem>>, vector<1x31x16x256xf32>
    %90 = vector.extract_strided_slice %54 {offsets = [0, 1, 0, 0], sizes = [1, 31, 16, 256], strides = [1, 1, 1, 1]} : vector<1x32x16x256xf32> to vector<1x31x16x256xf32>
    %91 = vector.shape_cast %90 : vector<1x31x16x256xf32> to vector<31x16x256xf32>
    %92 = vector.shape_cast %17 : vector<256xf32> to vector<1x1x256xf32>
    %93 = vector.broadcast %92 : vector<1x1x256xf32> to vector<31x16x256xf32>
    %94 = arith.mulf %91, %93 : vector<31x16x256xf32>
    %c1_i32_26 = arith.constant 1 : i32
    %95 = tpu.dynamic_rotate %91 by %c1_i32_26 dim 1 : vector<31x16x256xf32>, i32 -> vector<31x16x256xf32>
    %96 = vector.broadcast %35 : vector<1x16x256xf32> to vector<31x16x256xf32>
    %97 = arith.mulf %95, %96 : vector<31x16x256xf32>
    %98 = arith.addf %94, %97 : vector<31x16x256xf32>
    %c15_i32_27 = arith.constant 15 : i32
    %99 = tpu.dynamic_rotate %91 by %c15_i32_27 dim 1 : vector<31x16x256xf32>, i32 -> vector<31x16x256xf32>
    %100 = vector.broadcast %53 : vector<1x16x256xf32> to vector<31x16x256xf32>
    %101 = arith.mulf %99, %100 : vector<31x16x256xf32>
    %102 = arith.addf %98, %101 : vector<31x16x256xf32>
    %103 = vector.shape_cast %102 : vector<31x16x256xf32> to vector<1x31x16x256xf32>
    %104 = arith.addf %89, %103 : vector<1x31x16x256xf32>
    %c0_28 = arith.constant 0 : index
    %c0_29 = arith.constant 0 : index
    %c0_30 = arith.constant 0 : index
    %c0_31 = arith.constant 0 : index
    %105 = vector.load %arg6[%c0_28, %c0_29, %c0_30, %c0_31] : memref<1x32x16x256xf32, #tpu.memory_space<vmem>>, vector<1x31x16x256xf32>
    tpu.vector_store %arg6[%c0_28, %c0_29, %c0_30, %c0_31], %104 {strides = array<i32>} : memref<1x32x16x256xf32, #tpu.memory_space<vmem>>, vector<1x31x16x256xf32>,
    return
  }
  func.func @transform_0(%arg0: i32, %arg1: i32, %arg2: i32) -> (i32, i32, i32, i32) {
    %c0_i32 = arith.constant 0 : i32
    %c0_i32_0 = arith.constant 0 : i32
    return %arg1, %arg2, %c0_i32, %arg0 : i32, i32, i32, i32
  }
  func.func @transform_1(%arg0: i32, %arg1: i32, %arg2: i32) -> (i32, i32, i32) {
    %c0_i32 = arith.constant 0 : i32
    %c0_i32_0 = arith.constant 0 : i32
    %c0_i32_1 = arith.constant 0 : i32
    return %c0_i32, %c0_i32_0, %arg0 : i32, i32, i32
  }
  func.func @transform_2(%arg0: i32, %arg1: i32, %arg2: i32) -> (i32, i32) {
    %c0_i32 = arith.constant 0 : i32
    %c0_i32_0 = arith.constant 0 : i32
    return %c0_i32, %arg0 : i32, i32
  }
  func.func @transform_3(%arg0: i32, %arg1: i32, %arg2: i32) -> (i32, i32, i32, i32) {
    %c0_i32 = arith.constant 0 : i32
    %c0_i32_0 = arith.constant 0 : i32
    return %arg1, %arg2, %c0_i32, %arg0 : i32, i32, i32, i32
  }
}

</mosaic_0001>

<llo_original>
// kernel: tpu_custom_call.1
$region0: #{tpu_custom_call.1}
  #allocation0 [shape = 'u32[]', space=smem, size = 0x4, offset = 0x4, fixed_abs, tag = 'smem constant byte address 0x4 - core index']
  #allocation1 [shape = 'u32[144,128]{1,0:T(1,128)}', space=vmem, size = 0x12000, scoped, tag = 'internal scratch']
  %s0 = inlined_call_operand.hbm [shape: f32[2,32,16,256], index: 0, kind: input, shape index: {}]
  %s1 = inlined_call_operand.hbm [shape: f32[3,3,256], index: 1, kind: input, shape index: {}]
  %s2 = inlined_call_operand.vmem [shape: f32[1,256], index: 2, kind: input, shape index: {}]
  %s3 = inlined_call_operand.hbm [shape: f32[2,32,16,256], index: 3, kind: output, shape index: {}]
  %s4 = sld [smem:[#allocation0]]
  $region53: #{tpu_custom_call.1} parent=0
    _
  %s6 = ssub.s32 1, %s4
  %s7 = scalar_select 0, %s6, %s4
  $region1: #{tpu_custom_call.1} parent=0
    #allocation2 [shape = 'u8[1048576]{0}', space=vmem, size = 0x100000, scoped, tag = 'input window, operand 0']
    #allocation3 [shape = 's32[2]{0}', space=sflag, size = 0x8, scoped, tag = 'scoped memory for tpu_custom_call.1']
    #allocation4 [shape = 's32[2]{0}', space=sflag, size = 0x8, scoped, tag = 'scoped memory for tpu_custom_call.1']
    #allocation5 [shape = 'u8[12288]{0}', space=vmem, size = 0x3000, scoped, tag = 'input window, operand 1, single buffered']
    #allocation6 [shape = 's32[1]{0}', space=sflag, size = 0x4, scoped, tag = 'scoped memory for tpu_custom_call.1']
    #allocation7 [shape = 'u8[1048576]{0}', space=vmem, size = 0x100000, scoped, tag = 'output window, operand 0']
    %8 = vsyncpa [#allocation3], 0
    %s9 = scalar_lea.sflag [#allocation3], 1
    %10 = vsyncpa %s9, 0
    %11 = vsyncpa [#allocation6], 0
    %12 = vsyncpa [#allocation4], 0
    %s13 = scalar_lea.sflag [#allocation4], 1
    %14 = vsyncpa %s13, 0
    loop: start=0, step=1, limit=4
    $region2: #{tpu_custom_call.1} parent=1 // loop_pre_header
      _
    $region3: #{tpu_custom_call.1} parent=1 // loop_header
      %s16 = sphi 0, %s20
      %p17 = scmp.ge.s32.totalorder %s16, 4
      %s23 = sphi 0, %s42
      %s24 = sphi 0, %s38
      %s25 = sphi 0, %s34
      %s26 = sphi 0, %s23
      %s27 = sphi 0, %s24
      %s28 = sphi 0, %s25
      %s29 = sphi 0, %s26
      %s30 = sphi 0, %s27
      %s31 = sphi 0, %s28
      %s49 = sphi 0, %s51
      %s52 = sphi 0, %s49
      %s53 = sphi 0, %s52
      %s69 = sphi 0, %s53
      %s75 = sphi 0, %s77
      %s78 = sphi 0, %s75
      %s79 = sphi 0, %s78
      %s95 = sphi 0, %s79
      %s101 = sphi 0, %s103
      %s104 = sphi 0, %s101
      %s105 = sphi 0, %s104
      %s121 = sphi 0, %s105
      %s131 = sphi 0, %s133
      %s134 = sphi 0, %s131
      %s135 = sphi 0, %s134
      %s151 = sphi 0, %s135
    $region4: #{tpu_custom_call.1} parent=1 // loop_header_branch
      %19 = sbr.rel (%p17) target = $region8
    $region5: #{tpu_custom_call.1} parent=1 // loop_body
      %s21 = ssub.s32 %s16, 1
      %s22 = ssub.s32 %s16, 2
      %s32 = sadd.s32 1, %s25
      %p33 = scmp.ge.s32.totalorder %s32, 1
      %s34 = scalar_select %p33, 0, %s32
      %s35 = sadd.s32 1, %s24
      %s36 = scalar_select %p33, %s35, %s24
      %p37 = scmp.ge.s32.totalorder %s36, 2
      %s38 = scalar_select %p37, 0, %s36
      %s39 = sadd.s32 1, %s23
      %s40 = scalar_select %p37, %s39, %s23
      %p41 = scmp.ge.s32.totalorder %s40, 1
      %s42 = scalar_select %p41, 0, %s40
      %s43 = ssub.s32 %s24, %s38
      %s44 = ssub.s32 %s25, %s34
      %s45 = sor.u32 %s43, %s44
      %s46 = ssub.s32 %s23, %s42
      %s47 = sor.u32 %s45, %s46
      %p48 = scmp.eq.s32.totalorder %s47, 0
      %s50 = sadd.s32 %s49, 1
      %s51 = scalar_select %p48, %s49, %s50
      %p54 = pneg %p48
      %p55 = scmp.eq.s32.totalorder %s16, 1
      %p56 = por %p54, %p55
      %p57 = scmp.ne.s32.totalorder %s49, %s52
      %p58 = scmp.eq.s32.totalorder %s16, 0
      %p59 = por %p57, %p58
      %p60 = scmp.ne.s32.totalorder %s49, %s52
      %p61 = scmp.eq.s32.totalorder %s21, 1
      %p62 = por %p60, %p61
      %p63 = scmp.ne.s32.totalorder %s52, %s53
      %p64 = scmp.eq.s32.totalorder %s21, 0
      %p65 = por %p63, %p64
      %p66 = scmp.ne.s32.totalorder %s52, %s53
      %p67 = scmp.eq.s32.totalorder %s22, 1
      %p68 = por %p66, %p67
      %p70 = scmp.ne.s32.totalorder %s53, %s69
      %p71 = scmp.eq.s32.totalorder %s22, 0
      %p72 = por %p70, %p71
      %s73 = ssub.s32 %s23, %s42
      %p74 = scmp.eq.s32.totalorder %s73, 0
      %s76 = sadd.s32 %s75, 1
      %s77 = scalar_select %p74, %s75, %s76
      %p80 = pneg %p74
      %p81 = scmp.eq.s32.totalorder %s16, 1
      %p82 = por %p80, %p81
      %p83 = scmp.ne.s32.totalorder %s75, %s78
      %p84 = scmp.eq.s32.totalorder %s16, 0
      %p85 = por %p83, %p84
      %p86 = scmp.ne.s32.totalorder %s75, %s78
      %p87 = scmp.eq.s32.totalorder %s21, 1
      %p88 = por %p86, %p87
      %p89 = scmp.ne.s32.totalorder %s78, %s79
      %p90 = scmp.eq.s32.totalorder %s21, 0
      %p91 = por %p89, %p90
      %p92 = scmp.ne.s32.totalorder %s78, %s79
      %p93 = scmp.eq.s32.totalorder %s22, 1
      %p94 = por %p92, %p93
      %p96 = scmp.ne.s32.totalorder %s79, %s95
      %p97 = scmp.eq.s32.totalorder %s22, 0
      %p98 = por %p96, %p97
      %s99 = ssub.s32 %s23, %s42
      %p100 = scmp.eq.s32.totalorder %s99, 0
      %s102 = sadd.s32 %s101, 1
      %s103 = scalar_select %p100, %s101, %s102
      %p106 = pneg %p100
      %p107 = scmp.eq.s32.totalorder %s16, 1
      %p108 = por %p106, %p107
      %p109 = scmp.ne.s32.totalorder %s101, %s104
      %p110 = scmp.eq.s32.totalorder %s16, 0
      %p111 = por %p109, %p110
      %p112 = scmp.ne.s32.totalorder %s101, %s104
      %p113 = scmp.eq.s32.totalorder %s21, 1
      %p114 = por %p112, %p113
      %p115 = scmp.ne.s32.totalorder %s104, %s105
      %p116 = scmp.eq.s32.totalorder %s21, 0
      %p117 = por %p115, %p116
      %p118 = scmp.ne.s32.totalorder %s104, %s105
      %p119 = scmp.eq.s32.totalorder %s22, 1
      %p120 = por %p118, %p119
      %p122 = scmp.ne.s32.totalorder %s105, %s121
      %p123 = scmp.eq.s32.totalorder %s22, 0
      %p124 = por %p122, %p123
      %s125 = ssub.s32 %s24, %s38
      %s126 = ssub.s32 %s25, %s34
      %s127 = sor.u32 %s125, %s126
      %s128 = ssub.s32 %s23, %s42
      %s129 = sor.u32 %s127, %s128
      %p130 = scmp.eq.s32.totalorder %s129, 0
      %s132 = sadd.s32 %s131, 1
      %s133 = scalar_select %p130, %s131, %s132
      %p136 = pneg %p130
      %p137 = scmp.eq.s32.totalorder %s16, 1
      %p138 = por %p136, %p137
      %p139 = scmp.ne.s32.totalorder %s131, %s134
      %p140 = scmp.eq.s32.totalorder %s16, 0
      %p141 = por %p139, %p140
      %p142 = scmp.ne.s32.totalorder %s131, %s134
      %p143 = scmp.eq.s32.totalorder %s21, 1
      %p144 = por %p142, %p143
      %p145 = scmp.ne.s32.totalorder %s134, %s135
      %p146 = scmp.eq.s32.totalorder %s21, 0
      %p147 = por %p145, %p146
      %p148 = scmp.ne.s32.totalorder %s134, %s135
      %p149 = scmp.eq.s32.totalorder %s22, 1
      %p150 = por %p148, %p149
      %p152 = scmp.ne.s32.totalorder %s135, %s151
      %p153 = scmp.eq.s32.totalorder %s22, 0
      %p154 = por %p152, %p153
      %p155 = scmp.le.s32.totalorder 1, %s16
      %p156 = scmp.lt.s32.totalorder %s16, 3
      %p157 = pnand %p155, %p156
      %p158 = pneg %p157
      // Predicated region
      $region9: #{tpu_custom_call.1} parent=5 // pred_check
        _
      $region10: #{tpu_custom_call.1} parent=5 // pred_check_branch
        %160 = sbr.rel (%p157) target = $region12
      $region11: #{tpu_custom_call.1} parent=5 // pred_region
        %s161 = ssub.s32 %s16, 1
        // Predicated region
        $region13: #{tpu_custom_call.1} parent=11 // pred_check
          %p162 = pneg %p91
        $region14: #{tpu_custom_call.1} parent=11 // pred_check_branch
          %164 = sbr.rel (%p162) target = $region16
        $region15: #{tpu_custom_call.1} parent=11 // pred_region
          %s165 = smul.u32 2, %s26
          %s167 = ssub.s32 384, 384
          %168 = vsyncadd [#allocation6], %s167
          %s169 = smul.addr %s165, 64
          %s170 = scalar_lea.hbm %s1, %s169
          %s171 = sshll.u32 [#allocation5], 4
          %s172 = int_to_ptr.vmem [resolvable:$true] %s171
          %177 = dma.hbm_to_vmem [thread:$0]  %s170, 384, %s172, [#allocation6], 128, 128, 8
        $region16: #{tpu_custom_call.1} parent=11 // pred_fallthru
          _
        // Predicated region
        $region17: #{tpu_custom_call.1} parent=11 // pred_check
          %p178 = pneg %p117
        $region18: #{tpu_custom_call.1} parent=11 // pred_check_branch
          %180 = sbr.rel (%p178) target = $region20
        $region19: #{tpu_custom_call.1} parent=11 // pred_region
          %s181 = smul.u32 2, %s26
          %p182 = scmp.lt.s32.totalorder %s181, 1
          %s183 = scalar_select %p182, %s181, 1
          %s184 = scalar_lea.vmem %s2, %s183
          %s185 = smul.u32 2, %s26
        $region20: #{tpu_custom_call.1} parent=11 // pred_fallthru
          _
      $region12: #{tpu_custom_call.1} parent=5 // pred_fallthru
        _
      %p186 = scmp.lt.s32.totalorder %s16, 2
      // Predicated region
      $region21: #{tpu_custom_call.1} parent=5 // pred_check
        %p187 = pneg %p186
      $region22: #{tpu_custom_call.1} parent=5 // pred_check_branch
        %189 = sbr.rel (%p187) target = $region24
      $region23: #{tpu_custom_call.1} parent=5 // pred_region
        // Predicated region
        $region25: #{tpu_custom_call.1} parent=23 // pred_check
          %p190 = pneg %p59
        $region26: #{tpu_custom_call.1} parent=23 // pred_check_branch
          %192 = sbr.rel (%p190) target = $region28
        $region27: #{tpu_custom_call.1} parent=23 // pred_region
          %s193 = sand.u32 %s49, 1
          %s194 = scalar_lea.sflag [#allocation3], %s193
          %s195 = sand.u32 %s49, 1
          %s196 = smul.addr %s195, 1024
          %s197 = scalar_lea.vmem [#allocation2], %s196
          %s198 = smul.u32 32, %s25
          %s199 = smul.u32 2, %s23
          %s201 = ssub.s32 16384, 16384
          %202 = vsyncadd %s194, %s201
          %s203 = smul.addr %s198, 4
          %s204 = sadd.s32 %s199, %s203
          %s205 = smul.addr %s24, 128
          %s206 = sadd.s32 %s204, %s205
          %s207 = smul.addr %s206, 128
          %s208 = scalar_lea.hbm %s0, %s207
          %s209 = sshll.u32 %s197, 4
          %s210 = int_to_ptr.vmem [resolvable:$true] %s209
          %215 = dma.hbm_to_vmem [thread:$0]  %s208, 16384, %s210, %s194, 256, 256, 16
        $region28: #{tpu_custom_call.1} parent=23 // pred_fallthru
          _
      $region24: #{tpu_custom_call.1} parent=5 // pred_fallthru
        _
      %p216 = scmp.le.s32.totalorder 1, %s16
      %p217 = scmp.lt.s32.totalorder %s16, 3
      %p218 = pnand %p216, %p217
      %p219 = pneg %p218
      // Predicated region
      $region29: #{tpu_custom_call.1} parent=5 // pred_check
        _
      $region30: #{tpu_custom_call.1} parent=5 // pred_check_branch
        %221 = sbr.rel (%p218) target = $region32
      $region31: #{tpu_custom_call.1} parent=5 // pred_region
        %s222 = ssub.s32 %s16, 1
        %s223 = sand.u32 %s52, 1
        %s224 = scalar_lea.sflag [#allocation3], %s223
        %s225 = sand.u32 %s52, 1
        %s226 = smul.addr %s225, 1024
        %s227 = scalar_lea.vmem [#allocation2], %s226
        // Predicated region
        $region33: #{tpu_custom_call.1} parent=31 // pred_check
          %p228 = pneg %p65
        $region34: #{tpu_custom_call.1} parent=31 // pred_check_branch
          %230 = sbr.rel (%p228) target = $region36
        $region35: #{tpu_custom_call.1} parent=31 // pred_region
          %231 = dma.done %s224, 16384
        $region36: #{tpu_custom_call.1} parent=31 // pred_fallthru
          _
        // Predicated region
        $region37: #{tpu_custom_call.1} parent=31 // pred_check
          %p232 = pneg %p91
        $region38: #{tpu_custom_call.1} parent=31 // pred_check_branch
          %234 = sbr.rel (%p232) target = $region40
        $region39: #{tpu_custom_call.1} parent=31 // pred_region
          %235 = dma.done [#allocation6], 384
        $region40: #{tpu_custom_call.1} parent=31 // pred_fallthru
          _
        %s236 = sand.u32 %s52, 1
        %s237 = scalar_lea.sflag [#allocation3], %s236
        %s238 = sand.u32 %s52, 1
        %s239 = smul.addr %s238, 1024
        %s240 = scalar_lea.vmem [#allocation2], %s239
        %p241 = pneg %p65
        %p242 = pneg %p62
        %p243 = pneg %p91
        %p244 = pneg %p88
        %s245 = smul.u32 2, %s26
        %p246 = scmp.lt.s32.totalorder %s245, 1
        %s247 = scalar_select %p246, %s245, 1
        %s248 = scalar_lea.vmem %s2, %s247
        %p249 = pneg %p117
        %p250 = pneg %p114
        %p251 = pneg %p147
        %p252 = pneg %p144
        %s253 = sand.u32 %s134, 1
        %s254 = scalar_lea.sflag [#allocation4], %s253
        %s255 = sand.u32 %s134, 1
        %s256 = smul.addr %s255, 1024
        %s257 = scalar_lea.vmem [#allocation7], %s256
        %s258 = smul.u32 32, %s28
        %s259 = smul.u32 2, %s26
        %s260 = smul.u32 2, %s26
        %s261 = smul.u32 2, %s26
        %p262 = scmp.lt.s32.totalorder %s261, 1
        %s263 = scalar_select %p262, %s261, 1
        %s264 = scalar_lea.vmem %s2, %s263
        %s265 = smul.u32 2, %s26
        %s266 = smul.u32 32, %s28
        %s267 = smul.u32 2, %s26
        %v268 = vld [vmem:[#allocation5] sm:$0x77]
        %v269 = vld [vmem:[#allocation5 + $0x8] sm:$0x77]
        %v270 = vld [vmem:[#allocation5 + $0x10] sm:$0x77]
        %v271 = vld [vmem:[%s264] sm:$0x3]
        %v272 = vlaneseq
        %v273 = vshrl.u32 %v272, 7
        %v274 = vadd.s32 %v273, 8
        %vm275 = vcmp.gt.s32.totalorder %v273, 0
        %vm276 = vcmp.gt.s32.totalorder %v274, 0
        %v277 = vsel %vm275, 1, 0
        %v278 = vsel %vm276, 1, 0
        %v279 = vcvt.s32.f32 %v277
        %v280 = vcvt.s32.f32 %v278
        %vm281 = vcmp.lt.s32.totalorder %v273, 15
        %vm282 = vcmp.lt.s32.totalorder %v274, 15
        %v283 = vsel %vm281, 1, 0
        %v284 = vsel %vm282, 1, 0
        %v285 = vcvt.s32.f32 %v283
        %v286 = vcvt.s32.f32 %v284
        %v288 = vlaneseq
        %v289 = vshrl.u32 %v288, 7
        %v290 = vsub.s32 0, %v289
        %v291 = vrot.slane %v268, %v290
        %v292 = vlaneseq
        %v293 = vshrl.u32 %v292, 7
        %v294 = vsub.s32 4, %v293
        %v295 = vrot.slane %v268, %v294
        %v298 = vlaneseq
        %v299 = vshrl.u32 %v298, 7
        %v300 = vsub.s32 0, %v299
        %v301 = vrot.slane %v291, %v300
        %v302 = vlaneseq
        %v303 = vshrl.u32 %v302, 7
        %v304 = vsub.s32 0, %v303
        %v305 = vrot.slane %v295, %v304
        %v306 = vmul.f32 %v301, %v279
        %v307 = vmul.f32 %v305, %v279
        %v308 = vmul.f32 %v301, %v280
        %v309 = vmul.f32 %v305, %v280
        %v311 = vlaneseq
        %v312 = vshrl.u32 %v311, 7
        %v313 = vsub.s32 0, %v312
        %v314 = vrot.slane %v269, %v313
        %v315 = vlaneseq
        %v316 = vshrl.u32 %v315, 7
        %v317 = vsub.s32 4, %v316
        %v318 = vrot.slane %v269, %v317
        %v321 = vlaneseq
        %v322 = vshrl.u32 %v321, 7
        %v323 = vsub.s32 0, %v322
        %v324 = vrot.slane %v314, %v323
        %v325 = vlaneseq
        %v326 = vshrl.u32 %v325, 7
        %v327 = vsub.s32 0, %v326
        %v328 = vrot.slane %v318, %v327
        %v329 = vmul.f32 %v324, %v279
        %v330 = vmul.f32 %v328, %v279
        %v331 = vmul.f32 %v324, %v280
        %v332 = vmul.f32 %v328, %v280
        %v334 = vlaneseq
        %v335 = vshrl.u32 %v334, 7
        %v336 = vsub.s32 0, %v335
        %v337 = vrot.slane %v270, %v336
        %v338 = vlaneseq
        %v339 = vshrl.u32 %v338, 7
        %v340 = vsub.s32 4, %v339
        %v341 = vrot.slane %v270, %v340
        %v344 = vlaneseq
        %v345 = vshrl.u32 %v344, 7
        %v346 = vsub.s32 0, %v345
        %v347 = vrot.slane %v337, %v346
        %v348 = vlaneseq
        %v349 = vshrl.u32 %v348, 7
        %v350 = vsub.s32 0, %v349
        %v351 = vrot.slane %v341, %v350
        %v352 = vmul.f32 %v347, %v279
        %v353 = vmul.f32 %v351, %v279
        %v354 = vmul.f32 %v347, %v280
        %v355 = vmul.f32 %v351, %v280
        %v356 = vlaneseq
        %v357 = vshrl.u32 %v356, 7
        %v358 = vsub.s32 2, %v357
        %v359 = vrot.slane %v268, %v358
        %v360 = vlaneseq
        %v361 = vshrl.u32 %v360, 7
        %v362 = vsub.s32 6, %v361
        %v363 = vrot.slane %v268, %v362
        %v366 = vlaneseq
        %v367 = vshrl.u32 %v366, 7
        %v368 = vsub.s32 2, %v367
        %v369 = vrot.slane %v359, %v368
        %v370 = vlaneseq
        %v371 = vshrl.u32 %v370, 7
        %v372 = vsub.s32 2, %v371
        %v373 = vrot.slane %v363, %v372
        %v374 = vmul.f32 %v369, %v285
        %v375 = vmul.f32 %v373, %v285
        %v376 = vmul.f32 %v369, %v286
        %v377 = vmul.f32 %v373, %v286
        %v378 = vlaneseq
        %v379 = vshrl.u32 %v378, 7
        %v380 = vsub.s32 2, %v379
        %v381 = vrot.slane %v269, %v380
        %v382 = vlaneseq
        %v383 = vshrl.u32 %v382, 7
        %v384 = vsub.s32 6, %v383
        %v385 = vrot.slane %v269, %v384
        %v388 = vlaneseq
        %v389 = vshrl.u32 %v388, 7
        %v390 = vsub.s32 2, %v389
        %v391 = vrot.slane %v381, %v390
        %v392 = vlaneseq
        %v393 = vshrl.u32 %v392, 7
        %v394 = vsub.s32 2, %v393
        %v395 = vrot.slane %v385, %v394
        %v396 = vmul.f32 %v391, %v285
        %v397 = vmul.f32 %v395, %v285
        %v398 = vmul.f32 %v391, %v286
        %v399 = vmul.f32 %v395, %v286
        %v400 = vlaneseq
        %v401 = vshrl.u32 %v400, 7
        %v402 = vsub.s32 2, %v401
        %v403 = vrot.slane %v270, %v402
        %v404 = vlaneseq
        %v405 = vshrl.u32 %v404, 7
        %v406 = vsub.s32 6, %v405
        %v407 = vrot.slane %v270, %v406
        %v410 = vlaneseq
        %v411 = vshrl.u32 %v410, 7
        %v412 = vsub.s32 2, %v411
        %v413 = vrot.slane %v403, %v412
        %v414 = vlaneseq
        %v415 = vshrl.u32 %v414, 7
        %v416 = vsub.s32 2, %v415
        %v417 = vrot.slane %v407, %v416
        %v418 = vmul.f32 %v413, %v285
        %v419 = vmul.f32 %v417, %v285
        %v420 = vmul.f32 %v413, %v286
        %v421 = vmul.f32 %v417, %v286
        %v422 = vld [vmem:[%s227] sm:$0xff]
        %v423 = vld [vmem:[%s227 + $0x8] sm:$0xff]
        %v424 = vld [vmem:[%s227 + $0x10] sm:$0xff]
        %v425 = vld [vmem:[%s227 + $0x18] sm:$0xff]
        %v426 = vld [vmem:[%s227 + $0x20] sm:$0xff]
        %v427 = vld [vmem:[%s227 + $0x28] sm:$0xff]
        %v428 = vld [vmem:[%s227 + $0x30] sm:$0xff]
        %v429 = vld [vmem:[%s227 + $0x38] sm:$0xff]
        %v430 = vld [vmem:[%s227 + $0x40] sm:$0xff]
        %v431 = vld [vmem:[%s227 + $0x48] sm:$0xff]
        %v432 = vld [vmem:[%s227 + $0x50] sm:$0xff]
        %v433 = vld [vmem:[%s227 + $0x58] sm:$0xff]
        %v434 = vld [vmem:[%s227 + $0x60] sm:$0xff]
        %v435 = vld [vmem:[%s227 + $0x68] sm:$0xff]
        %v436 = vld [vmem:[%s227 + $0x70] sm:$0xff]
        %v437 = vld [vmem:[%s227 + $0x78] sm:$0xff]
        %v438 = vld [vmem:[%s227 + $0x80] sm:$0xff]
        %v439 = vld [vmem:[%s227 + $0x88] sm:$0xff]
        %v440 = vld [vmem:[%s227 + $0x90] sm:$0xff]
        %v441 = vld [vmem:[%s227 + $0x98] sm:$0xff]
        %v442 = vld [vmem:[%s227 + $0xa0] sm:$0xff]
        %v443 = vld [vmem:[%s227 + $0xa8] sm:$0xff]
        %v444 = vld [vmem:[%s227 + $0xb0] sm:$0xff]
        %v445 = vld [vmem:[%s227 + $0xb8] sm:$0xff]
        %v446 = vld [vmem:[%s227 + $0xc0] sm:$0xff]
        %v447 = vld [vmem:[%s227 + $0xc8] sm:$0xff]
        %v448 = vld [vmem:[%s227 + $0xd0] sm:$0xff]
        %v449 = vld [vmem:[%s227 + $0xd8] sm:$0xff]
        %v450 = vld [vmem:[%s227 + $0xe0] sm:$0xff]
        %v451 = vld [vmem:[%s227 + $0xe8] sm:$0xff]
        %v452 = vld [vmem:[%s227 + $0xf0] sm:$0xff]
        %v453 = vld [vmem:[%s227 + $0xf8] sm:$0xff]
        %v454 = vld [vmem:[%s227 + $0x100] sm:$0xff]
        %v455 = vld [vmem:[%s227 + $0x108] sm:$0xff]
        %v456 = vld [vmem:[%s227 + $0x110] sm:$0xff]
        %v457 = vld [vmem:[%s227 + $0x118] sm:$0xff]
        %v458 = vld [vmem:[%s227 + $0x120] sm:$0xff]
        %v459 = vld [vmem:[%s227 + $0x128] sm:$0xff]
        %v460 = vld [vmem:[%s227 + $0x130] sm:$0xff]
        %v461 = vld [vmem:[%s227 + $0x138] sm:$0xff]
        %v462 = vld [vmem:[%s227 + $0x140] sm:$0xff]
        %v463 = vld [vmem:[%s227 + $0x148] sm:$0xff]
        %v464 = vld [vmem:[%s227 + $0x150] sm:$0xff]
        %v465 = vld [vmem:[%s227 + $0x158] sm:$0xff]
        %v466 = vld [vmem:[%s227 + $0x160] sm:$0xff]
        %v467 = vld [vmem:[%s227 + $0x168] sm:$0xff]
        %v468 = vld [vmem:[%s227 + $0x170] sm:$0xff]
        %v469 = vld [vmem:[%s227 + $0x178] sm:$0xff]
        %v470 = vld [vmem:[%s227 + $0x180] sm:$0xff]
        %v471 = vld [vmem:[%s227 + $0x188] sm:$0xff]
        %v472 = vld [vmem:[%s227 + $0x190] sm:$0xff]
        %v473 = vld [vmem:[%s227 + $0x198] sm:$0xff]
        %v474 = vld [vmem:[%s227 + $0x1a0] sm:$0xff]
        %v475 = vld [vmem:[%s227 + $0x1a8] sm:$0xff]
        %v476 = vld [vmem:[%s227 + $0x1b0] sm:$0xff]
        %v477 = vld [vmem:[%s227 + $0x1b8] sm:$0xff]
        %v478 = vld [vmem:[%s227 + $0x1c0] sm:$0xff]
        %v479 = vld [vmem:[%s227 + $0x1c8] sm:$0xff]
        %v480 = vld [vmem:[%s227 + $0x1d0] sm:$0xff]
        %v481 = vld [vmem:[%s227 + $0x1d8] sm:$0xff]
        %v482 = vld [vmem:[%s227 + $0x1e0] sm:$0xff]
        %v483 = vld [vmem:[%s227 + $0x1e8] sm:$0xff]
        %v484 = vld [vmem:[%s227 + $0x1f0] sm:$0xff]
        %v485 = vld [vmem:[%s227 + $0x1f8] sm:$0xff]
        %v486 = vld [vmem:[%s227 + $0x200] sm:$0xff]
        %v487 = vld [vmem:[%s227 + $0x208] sm:$0xff]
        %v488 = vld [vmem:[%s227 + $0x210] sm:$0xff]
        %v489 = vld [vmem:[%s227 + $0x218] sm:$0xff]
        %v490 = vld [vmem:[%s227 + $0x220] sm:$0xff]
        %v491 = vld [vmem:[%s227 + $0x228] sm:$0xff]
        %v492 = vld [vmem:[%s227 + $0x230] sm:$0xff]
        %v493 = vld [vmem:[%s227 + $0x238] sm:$0xff]
        %v494 = vld [vmem:[%s227 + $0x240] sm:$0xff]
        %v495 = vld [vmem:[%s227 + $0x248] sm:$0xff]
        %v496 = vld [vmem:[%s227 + $0x250] sm:$0xff]
        %v497 = vld [vmem:[%s227 + $0x258] sm:$0xff]
        %v498 = vld [vmem:[%s227 + $0x260] sm:$0xff]
        %v499 = vld [vmem:[%s227 + $0x268] sm:$0xff]
        %v500 = vld [vmem:[%s227 + $0x270] sm:$0xff]
        %v501 = vld [vmem:[%s227 + $0x278] sm:$0xff]
        %v502 = vld [vmem:[%s227 + $0x280] sm:$0xff]
        %v503 = vld [vmem:[%s227 + $0x288] sm:$0xff]
        %v504 = vld [vmem:[%s227 + $0x290] sm:$0xff]
        %v505 = vld [vmem:[%s227 + $0x298] sm:$0xff]
        %v506 = vld [vmem:[%s227 + $0x2a0] sm:$0xff]
        %v507 = vld [vmem:[%s227 + $0x2a8] sm:$0xff]
        %v508 = vld [vmem:[%s227 + $0x2b0] sm:$0xff]
        %v509 = vld [vmem:[%s227 + $0x2b8] sm:$0xff]
        %v510 = vld [vmem:[%s227 + $0x2c0] sm:$0xff]
        %v511 = vld [vmem:[%s227 + $0x2c8] sm:$0xff]
        %v512 = vld [vmem:[%s227 + $0x2d0] sm:$0xff]
        %v513 = vld [vmem:[%s227 + $0x2d8] sm:$0xff]
        %v514 = vld [vmem:[%s227 + $0x2e0] sm:$0xff]
        %v515 = vld [vmem:[%s227 + $0x2e8] sm:$0xff]
        %v516 = vld [vmem:[%s227 + $0x2f0] sm:$0xff]
        %v517 = vld [vmem:[%s227 + $0x2f8] sm:$0xff]
        %v518 = vld [vmem:[%s227 + $0x300] sm:$0xff]
        %v519 = vld [vmem:[%s227 + $0x308] sm:$0xff]
        %v520 = vld [vmem:[%s227 + $0x310] sm:$0xff]
        %v521 = vld [vmem:[%s227 + $0x318] sm:$0xff]
        %v522 = vld [vmem:[%s227 + $0x320] sm:$0xff]
        %v523 = vld [vmem:[%s227 + $0x328] sm:$0xff]
        %v524 = vld [vmem:[%s227 + $0x330] sm:$0xff]
        %v525 = vld [vmem:[%s227 + $0x338] sm:$0xff]
        %v526 = vld [vmem:[%s227 + $0x340] sm:$0xff]
        %v527 = vld [vmem:[%s227 + $0x348] sm:$0xff]
        %v528 = vld [vmem:[%s227 + $0x350] sm:$0xff]
        %v529 = vld [vmem:[%s227 + $0x358] sm:$0xff]
        %v530 = vld [vmem:[%s227 + $0x360] sm:$0xff]
        %v531 = vld [vmem:[%s227 + $0x368] sm:$0xff]
        %v532 = vld [vmem:[%s227 + $0x370] sm:$0xff]
        %v533 = vld [vmem:[%s227 + $0x378] sm:$0xff]
        %v534 = vld [vmem:[%s227 + $0x380] sm:$0xff]
        %v535 = vld [vmem:[%s227 + $0x388] sm:$0xff]
        %v536 = vld [vmem:[%s227 + $0x390] sm:$0xff]
        %v537 = vld [vmem:[%s227 + $0x398] sm:$0xff]
        %v538 = vld [vmem:[%s227 + $0x3a0] sm:$0xff]
        %v539 = vld [vmem:[%s227 + $0x3a8] sm:$0xff]
        %v540 = vld [vmem:[%s227 + $0x3b0] sm:$0xff]
        %v541 = vld [vmem:[%s227 + $0x3b8] sm:$0xff]
        %v542 = vld [vmem:[%s227 + $0x3c0] sm:$0xff]
        %v543 = vld [vmem:[%s227 + $0x3c8] sm:$0xff]
        %v544 = vld [vmem:[%s227 + $0x3d0] sm:$0xff]
        %v545 = vld [vmem:[%s227 + $0x3d8] sm:$0xff]
        %v546 = vld [vmem:[%s227 + $0x3e0] sm:$0xff]
        %v547 = vld [vmem:[%s227 + $0x3e8] sm:$0xff]
        %v548 = vld [vmem:[%s227 + $0x3f0] sm:$0xff]
        %v549 = vld [vmem:[%s227 + $0x3f8] sm:$0xff]
        %v550 = vlaneseq
        %v551 = vshrl.u32 %v550, 7
        %v552 = vsub.s32 1, %v551
        %v553 = vrot.slane %v269, %v552
        %v554 = vlaneseq
        %v555 = vshrl.u32 %v554, 7
        %v556 = vsub.s32 5, %v555
        %v557 = vrot.slane %v269, %v556
        %v560 = vlaneseq
        %v561 = vshrl.u32 %v560, 7
        %v562 = vsub.s32 1, %v561
        %v563 = vrot.slane %v553, %v562
        %v564 = vlaneseq
        %v565 = vshrl.u32 %v564, 7
        %v566 = vsub.s32 1, %v565
        %v567 = vrot.slane %v557, %v566
        %v568 = vmul.f32 %v422, %v563
        %v569 = vmul.f32 %v423, %v567
        %v570 = vmul.f32 %v424, %v563
        %v571 = vmul.f32 %v425, %v567
        %v572 = vmul.f32 %v426, %v563
        %v573 = vmul.f32 %v427, %v567
        %v574 = vmul.f32 %v428, %v563
        %v575 = vmul.f32 %v429, %v567
        %v576 = vmul.f32 %v430, %v563
        %v577 = vmul.f32 %v431, %v567
        %v578 = vmul.f32 %v432, %v563
        %v579 = vmul.f32 %v433, %v567
        %v580 = vmul.f32 %v434, %v563
        %v581 = vmul.f32 %v435, %v567
        %v582 = vmul.f32 %v436, %v563
        %v583 = vmul.f32 %v437, %v567
        %v584 = vmul.f32 %v438, %v563
        %v585 = vmul.f32 %v439, %v567
        %v586 = vmul.f32 %v440, %v563
        %v587 = vmul.f32 %v441, %v567
        %v588 = vmul.f32 %v442, %v563
        %v589 = vmul.f32 %v443, %v567
        %v590 = vmul.f32 %v444, %v563
        %v591 = vmul.f32 %v445, %v567
        %v592 = vmul.f32 %v446, %v563
        %v593 = vmul.f32 %v447, %v567
        %v594 = vmul.f32 %v448, %v563
        %v595 = vmul.f32 %v449, %v567
        %v596 = vmul.f32 %v450, %v563
        %v597 = vmul.f32 %v451, %v567
        %v598 = vmul.f32 %v452, %v563
        %v599 = vmul.f32 %v453, %v567
        %v600 = vmul.f32 %v454, %v563
        %v601 = vmul.f32 %v455, %v567
        %v602 = vmul.f32 %v456, %v563
        %v603 = vmul.f32 %v457, %v567
        %v604 = vmul.f32 %v458, %v563
        %v605 = vmul.f32 %v459, %v567
        %v606 = vmul.f32 %v460, %v563
        %v607 = vmul.f32 %v461, %v567
        %v608 = vmul.f32 %v462, %v563
        %v609 = vmul.f32 %v463, %v567
        %v610 = vmul.f32 %v464, %v563
        %v611 = vmul.f32 %v465, %v567
        %v612 = vmul.f32 %v466, %v563
        %v613 = vmul.f32 %v467, %v567
        %v614 = vmul.f32 %v468, %v563
        %v615 = vmul.f32 %v469, %v567
        %v616 = vmul.f32 %v470, %v563
        %v617 = vmul.f32 %v471, %v567
        %v618 = vmul.f32 %v472, %v563
        %v619 = vmul.f32 %v473, %v567
        %v620 = vmul.f32 %v474, %v563
        %v621 = vmul.f32 %v475, %v567
        %v622 = vmul.f32 %v476, %v563
        %v623 = vmul.f32 %v477, %v567
        %v624 = vmul.f32 %v478, %v563
        %v625 = vmul.f32 %v479, %v567
        %v626 = vmul.f32 %v480, %v563
        %v627 = vmul.f32 %v481, %v567
        %v628 = vmul.f32 %v482, %v563
        %v629 = vmul.f32 %v483, %v567
        %v630 = vmul.f32 %v484, %v563
        %v631 = vmul.f32 %v485, %v567
        %v632 = vmul.f32 %v486, %v563
        %v633 = vmul.f32 %v487, %v567
        %v634 = vmul.f32 %v488, %v563
        %v635 = vmul.f32 %v489, %v567
        %v636 = vmul.f32 %v490, %v563
        %v637 = vmul.f32 %v491, %v567
        %v638 = vmul.f32 %v492, %v563
        %v639 = vmul.f32 %v493, %v567
        %v640 = vmul.f32 %v494, %v563
        %v641 = vmul.f32 %v495, %v567
        %v642 = vmul.f32 %v496, %v563
        %v643 = vmul.f32 %v497, %v567
        %v644 = vmul.f32 %v498, %v563
        %v645 = vmul.f32 %v499, %v567
        %v646 = vmul.f32 %v500, %v563
        %v647 = vmul.f32 %v501, %v567
        %v648 = vmul.f32 %v502, %v563
        %v649 = vmul.f32 %v503, %v567
        %v650 = vmul.f32 %v504, %v563
        %v651 = vmul.f32 %v505, %v567
        %v652 = vmul.f32 %v506, %v563
        %v653 = vmul.f32 %v507, %v567
        %v654 = vmul.f32 %v508, %v563
        %v655 = vmul.f32 %v509, %v567
        %v656 = vmul.f32 %v510, %v563
        %v657 = vmul.f32 %v511, %v567
        %v658 = vmul.f32 %v512, %v563
        %v659 = vmul.f32 %v513, %v567
        %v660 = vmul.f32 %v514, %v563
        %v661 = vmul.f32 %v515, %v567
        %v662 = vmul.f32 %v516, %v563
        %v663 = vmul.f32 %v517, %v567
        %v664 = vmul.f32 %v518, %v563
        %v665 = vmul.f32 %v519, %v567
        %v666 = vmul.f32 %v520, %v563
        %v667 = vmul.f32 %v521, %v567
        %v668 = vmul.f32 %v522, %v563
        %v669 = vmul.f32 %v523, %v567
        %v670 = vmul.f32 %v524, %v563
        %v671 = vmul.f32 %v525, %v567
        %v672 = vmul.f32 %v526, %v563
        %v673 = vmul.f32 %v527, %v567
        %v674 = vmul.f32 %v528, %v563
        %v675 = vmul.f32 %v529, %v567
        %v676 = vmul.f32 %v530, %v563
        %v677 = vmul.f32 %v531, %v567
        %v678 = vmul.f32 %v532, %v563
        %v679 = vmul.f32 %v533, %v567
        %v680 = vmul.f32 %v534, %v563
        %v681 = vmul.f32 %v535, %v567
        %v682 = vmul.f32 %v536, %v563
        %v683 = vmul.f32 %v537, %v567
        %v684 = vmul.f32 %v538, %v563
        %v685 = vmul.f32 %v539, %v567
        %v686 = vmul.f32 %v540, %v563
        %v687 = vmul.f32 %v541, %v567
        %v688 = vmul.f32 %v542, %v563
        %v689 = vmul.f32 %v543, %v567
        %v690 = vmul.f32 %v544, %v563
        %v691 = vmul.f32 %v545, %v567
        %v692 = vmul.f32 %v546, %v563
        %v693 = vmul.f32 %v547, %v567
        %v694 = vmul.f32 %v548, %v563
        %v695 = vmul.f32 %v549, %v567
        %v696 = vrot.slane %v422, 7
        %v697 = vrot.slane %v423, 7
        %v698 = vrot.slane %v426, 7
        %v699 = vrot.slane %v427, 7
        %v700 = vrot.slane %v430, 7
        %v701 = vrot.slane %v431, 7
        %v702 = vrot.slane %v434, 7
        %v703 = vrot.slane %v435, 7
        %v704 = vrot.slane %v438, 7
        %v705 = vrot.slane %v439, 7
        %v706 = vrot.slane %v442, 7
        %v707 = vrot.slane %v443, 7
        %v708 = vrot.slane %v446, 7
        %v709 = vrot.slane %v447, 7
        %v710 = vrot.slane %v450, 7
        %v711 = vrot.slane %v451, 7
        %v712 = vrot.slane %v454, 7
        %v713 = vrot.slane %v455, 7
        %v714 = vrot.slane %v458, 7
        %v715 = vrot.slane %v459, 7
        %v716 = vrot.slane %v462, 7
        %v717 = vrot.slane %v463, 7
        %v718 = vrot.slane %v466, 7
        %v719 = vrot.slane %v467, 7
        %v720 = vrot.slane %v470, 7
        %v721 = vrot.slane %v471, 7
        %v722 = vrot.slane %v474, 7
        %v723 = vrot.slane %v475, 7
        %v724 = vrot.slane %v478, 7
        %v725 = vrot.slane %v479, 7
        %v726 = vrot.slane %v482, 7
        %v727 = vrot.slane %v483, 7
        %v728 = vrot.slane %v486, 7
        %v729 = vrot.slane %v487, 7
        %v730 = vrot.slane %v490, 7
        %v731 = vrot.slane %v491, 7
        %v732 = vrot.slane %v494, 7
        %v733 = vrot.slane %v495, 7
        %v734 = vrot.slane %v498, 7
        %v735 = vrot.slane %v499, 7
        %v736 = vrot.slane %v502, 7
        %v737 = vrot.slane %v503, 7
        %v738 = vrot.slane %v506, 7
        %v739 = vrot.slane %v507, 7
        %v740 = vrot.slane %v510, 7
        %v741 = vrot.slane %v511, 7
        %v742 = vrot.slane %v514, 7
        %v743 = vrot.slane %v515, 7
        %v744 = vrot.slane %v518, 7
        %v745 = vrot.slane %v519, 7
        %v746 = vrot.slane %v522, 7
        %v747 = vrot.slane %v523, 7
        %v748 = vrot.slane %v526, 7
        %v749 = vrot.slane %v527, 7
        %v750 = vrot.slane %v530, 7
        %v751 = vrot.slane %v531, 7
        %v752 = vrot.slane %v534, 7
        %v753 = vrot.slane %v535, 7
        %v754 = vrot.slane %v538, 7
        %v755 = vrot.slane %v539, 7
        %v756 = vrot.slane %v542, 7
        %v757 = vrot.slane %v543, 7
        %v758 = vrot.slane %v546, 7
        %v759 = vrot.slane %v547, 7
        %v760 = vrot.slane %v424, 7
        %v761 = vrot.slane %v425, 7
        %v762 = vrot.slane %v428, 7
        %v763 = vrot.slane %v429, 7
        %v764 = vrot.slane %v432, 7
        %v765 = vrot.slane %v433, 7
        %v766 = vrot.slane %v436, 7
        %v767 = vrot.slane %v437, 7
        %v768 = vrot.slane %v440, 7
        %v769 = vrot.slane %v441, 7
        %v770 = vrot.slane %v444, 7
        %v771 = vrot.slane %v445, 7
        %v772 = vrot.slane %v448, 7
        %v773 = vrot.slane %v449, 7
        %v774 = vrot.slane %v452, 7
        %v775 = vrot.slane %v453, 7
        %v776 = vrot.slane %v456, 7
        %v777 = vrot.slane %v457, 7
        %v778 = vrot.slane %v460, 7
        %v779 = vrot.slane %v461, 7
        %v780 = vrot.slane %v464, 7
        %v781 = vrot.slane %v465, 7
        %v782 = vrot.slane %v468, 7
        %v783 = vrot.slane %v469, 7
        %v784 = vrot.slane %v472, 7
        %v785 = vrot.slane %v473, 7
        %v786 = vrot.slane %v476, 7
        %v787 = vrot.slane %v477, 7
        %v788 = vrot.slane %v480, 7
        %v789 = vrot.slane %v481, 7
        %v790 = vrot.slane %v484, 7
        %v791 = vrot.slane %v485, 7
        %v792 = vrot.slane %v488, 7
        %v793 = vrot.slane %v489, 7
        %v794 = vrot.slane %v492, 7
        %v795 = vrot.slane %v493, 7
        %v796 = vrot.slane %v496, 7
        %v797 = vrot.slane %v497, 7
        %v798 = vrot.slane %v500, 7
        %v799 = vrot.slane %v501, 7
        %v800 = vrot.slane %v504, 7
        %v801 = vrot.slane %v505, 7
        %v802 = vrot.slane %v508, 7
        %v803 = vrot.slane %v509, 7
        %v804 = vrot.slane %v512, 7
        %v805 = vrot.slane %v513, 7
        %v806 = vrot.slane %v516, 7
        %v807 = vrot.slane %v517, 7
        %v808 = vrot.slane %v520, 7
        %v809 = vrot.slane %v521, 7
        %v810 = vrot.slane %v524, 7
        %v811 = vrot.slane %v525, 7
        %v812 = vrot.slane %v528, 7
        %v813 = vrot.slane %v529, 7
        %v814 = vrot.slane %v532, 7
        %v815 = vrot.slane %v533, 7
        %v816 = vrot.slane %v536, 7
        %v817 = vrot.slane %v537, 7
        %v818 = vrot.slane %v540, 7
        %v819 = vrot.slane %v541, 7
        %v820 = vrot.slane %v544, 7
        %v821 = vrot.slane %v545, 7
        %v822 = vrot.slane %v548, 7
        %v823 = vrot.slane %v549, 7
        %vm824 = vcmp.lt.s32.totalorder %v273, 1
        %v825 = vsel %vm824, %v696, %v760
        %v826 = vsel %vm824, %v697, %v761
        %v827 = vsel %vm824, %v698, %v762
        %v828 = vsel %vm824, %v699, %v763
        %v829 = vsel %vm824, %v700, %v764
        %v830 = vsel %vm824, %v701, %v765
        %v831 = vsel %vm824, %v702, %v766
        %v832 = vsel %vm824, %v703, %v767
        %v833 = vsel %vm824, %v704, %v768
        %v834 = vsel %vm824, %v705, %v769
        %v835 = vsel %vm824, %v706, %v770
        %v836 = vsel %vm824, %v707, %v771
        %v837 = vsel %vm824, %v708, %v772
        %v838 = vsel %vm824, %v709, %v773
        %v839 = vsel %vm824, %v710, %v774
        %v840 = vsel %vm824, %v711, %v775
        %v841 = vsel %vm824, %v712, %v776
        %v842 = vsel %vm824, %v713, %v777
        %v843 = vsel %vm824, %v714, %v778
        %v844 = vsel %vm824, %v715, %v779
        %v845 = vsel %vm824, %v716, %v780
        %v846 = vsel %vm824, %v717, %v781
        %v847 = vsel %vm824, %v718, %v782
        %v848 = vsel %vm824, %v719, %v783
        %v849 = vsel %vm824, %v720, %v784
        %v850 = vsel %vm824, %v721, %v785
        %v851 = vsel %vm824, %v722, %v786
        %v852 = vsel %vm824, %v723, %v787
        %v853 = vsel %vm824, %v724, %v788
        %v854 = vsel %vm824, %v725, %v789
        %v855 = vsel %vm824, %v726, %v790
        %v856 = vsel %vm824, %v727, %v791
        %v857 = vsel %vm824, %v728, %v792
        %v858 = vsel %vm824, %v729, %v793
        %v859 = vsel %vm824, %v730, %v794
        %v860 = vsel %vm824, %v731, %v795
        %v861 = vsel %vm824, %v732, %v796
        %v862 = vsel %vm824, %v733, %v797
        %v863 = vsel %vm824, %v734, %v798
        %v864 = vsel %vm824, %v735, %v799
        %v865 = vsel %vm824, %v736, %v800
        %v866 = vsel %vm824, %v737, %v801
        %v867 = vsel %vm824, %v738, %v802
        %v868 = vsel %vm824, %v739, %v803
        %v869 = vsel %vm824, %v740, %v804
        %v870 = vsel %vm824, %v741, %v805
        %v871 = vsel %vm824, %v742, %v806
        %v872 = vsel %vm824, %v743, %v807
        %v873 = vsel %vm824, %v744, %v808
        %v874 = vsel %vm824, %v745, %v809
        %v875 = vsel %vm824, %v746, %v810
        %v876 = vsel %vm824, %v747, %v811
        %v877 = vsel %vm824, %v748, %v812
        %v878 = vsel %vm824, %v749, %v813
        %v879 = vsel %vm824, %v750, %v814
        %v880 = vsel %vm824, %v751, %v815
        %v881 = vsel %vm824, %v752, %v816
        %v882 = vsel %vm824, %v753, %v817
        %v883 = vsel %vm824, %v754, %v818
        %v884 = vsel %vm824, %v755, %v819
        %v885 = vsel %vm824, %v756, %v820
        %v886 = vsel %vm824, %v757, %v821
        %v887 = vsel %vm824, %v758, %v822
        %v888 = vsel %vm824, %v759, %v823
        %v889 = vsel %vm824, %v760, %v696
        %v890 = vsel %vm824, %v761, %v697
        %v891 = vsel %vm824, %v762, %v698
        %v892 = vsel %vm824, %v763, %v699
        %v893 = vsel %vm824, %v764, %v700
        %v894 = vsel %vm824, %v765, %v701
        %v895 = vsel %vm824, %v766, %v702
        %v896 = vsel %vm824, %v767, %v703
        %v897 = vsel %vm824, %v768, %v704
        %v898 = vsel %vm824, %v769, %v705
        %v899 = vsel %vm824, %v770, %v706
        %v900 = vsel %vm824, %v771, %v707
        %v901 = vsel %vm824, %v772, %v708
        %v902 = vsel %vm824, %v773, %v709
        %v903 = vsel %vm824, %v774, %v710
        %v904 = vsel %vm824, %v775, %v711
        %v905 = vsel %vm824, %v776, %v712
        %v906 = vsel %vm824, %v777, %v713
        %v907 = vsel %vm824, %v778, %v714
        %v908 = vsel %vm824, %v779, %v715
        %v909 = vsel %vm824, %v780, %v716
        %v910 = vsel %vm824, %v781, %v717
        %v911 = vsel %vm824, %v782, %v718
        %v912 = vsel %vm824, %v783, %v719
        %v913 = vsel %vm824, %v784, %v720
        %v914 = vsel %vm824, %v785, %v721
        %v915 = vsel %vm824, %v786, %v722
        %v916 = vsel %vm824, %v787, %v723
        %v917 = vsel %vm824, %v788, %v724
        %v918 = vsel %vm824, %v789, %v725
        %v919 = vsel %vm824, %v790, %v726
        %v920 = vsel %vm824, %v791, %v727
        %v921 = vsel %vm824, %v792, %v728
        %v922 = vsel %vm824, %v793, %v729
        %v923 = vsel %vm824, %v794, %v730
        %v924 = vsel %vm824, %v795, %v731
        %v925 = vsel %vm824, %v796, %v732
        %v926 = vsel %vm824, %v797, %v733
        %v927 = vsel %vm824, %v798, %v734
        %v928 = vsel %vm824, %v799, %v735
        %v929 = vsel %vm824, %v800, %v736
        %v930 = vsel %vm824, %v801, %v737
        %v931 = vsel %vm824, %v802, %v738
        %v932 = vsel %vm824, %v803, %v739
        %v933 = vsel %vm824, %v804, %v740
        %v934 = vsel %vm824, %v805, %v741
        %v935 = vsel %vm824, %v806, %v742
        %v936 = vsel %vm824, %v807, %v743
        %v937 = vsel %vm824, %v808, %v744
        %v938 = vsel %vm824, %v809, %v745
        %v939 = vsel %vm824, %v810, %v746
        %v940 = vsel %vm824, %v811, %v747
        %v941 = vsel %vm824, %v812, %v748
        %v942 = vsel %vm824, %v813, %v749
        %v943 = vsel %vm824, %v814, %v750
        %v944 = vsel %vm824, %v815, %v751
        %v945 = vsel %vm824, %v816, %v752
        %v946 = vsel %vm824, %v817, %v753
        %v947 = vsel %vm824, %v818, %v754
        %v948 = vsel %vm824, %v819, %v755
        %v949 = vsel %vm824, %v820, %v756
        %v950 = vsel %vm824, %v821, %v757
        %v951 = vsel %vm824, %v822, %v758
        %v952 = vsel %vm824, %v823, %v759
        %v953 = vmul.f32 %v889, %v329
        %v954 = vmul.f32 %v890, %v330
        %v955 = vmul.f32 %v825, %v331
        %v956 = vmul.f32 %v826, %v332
        %v957 = vmul.f32 %v891, %v329
        %v958 = vmul.f32 %v892, %v330
        %v959 = vmul.f32 %v827, %v331
        %v960 = vmul.f32 %v828, %v332
        %v961 = vmul.f32 %v893, %v329
        %v962 = vmul.f32 %v894, %v330
        %v963 = vmul.f32 %v829, %v331
        %v964 = vmul.f32 %v830, %v332
        %v965 = vmul.f32 %v895, %v329
        %v966 = vmul.f32 %v896, %v330
        %v967 = vmul.f32 %v831, %v331
        %v968 = vmul.f32 %v832, %v332
        %v969 = vmul.f32 %v897, %v329
        %v970 = vmul.f32 %v898, %v330
        %v971 = vmul.f32 %v833, %v331
        %v972 = vmul.f32 %v834, %v332
        %v973 = vmul.f32 %v899, %v329
        %v974 = vmul.f32 %v900, %v330
        %v975 = vmul.f32 %v835, %v331
        %v976 = vmul.f32 %v836, %v332
        %v977 = vmul.f32 %v901, %v329
        %v978 = vmul.f32 %v902, %v330
        %v979 = vmul.f32 %v837, %v331
        %v980 = vmul.f32 %v838, %v332
        %v981 = vmul.f32 %v903, %v329
        %v982 = vmul.f32 %v904, %v330
        %v983 = vmul.f32 %v839, %v331
        %v984 = vmul.f32 %v840, %v332
        %v985 = vmul.f32 %v905, %v329
        %v986 = vmul.f32 %v906, %v330
        %v987 = vmul.f32 %v841, %v331
        %v988 = vmul.f32 %v842, %v332
        %v989 = vmul.f32 %v907, %v329
        %v990 = vmul.f32 %v908, %v330
        %v991 = vmul.f32 %v843, %v331
        %v992 = vmul.f32 %v844, %v332
        %v993 = vmul.f32 %v909, %v329
        %v994 = vmul.f32 %v910, %v330
        %v995 = vmul.f32 %v845, %v331
        %v996 = vmul.f32 %v846, %v332
        %v997 = vmul.f32 %v911, %v329
        %v998 = vmul.f32 %v912, %v330
        %v999 = vmul.f32 %v847, %v331
        %v1000 = vmul.f32 %v848, %v332
        %v1001 = vmul.f32 %v913, %v329
        %v1002 = vmul.f32 %v914, %v330
        %v1003 = vmul.f32 %v849, %v331
        %v1004 = vmul.f32 %v850, %v332
        %v1005 = vmul.f32 %v915, %v329
        %v1006 = vmul.f32 %v916, %v330
        %v1007 = vmul.f32 %v851, %v331
        %v1008 = vmul.f32 %v852, %v332
        %v1009 = vmul.f32 %v917, %v329
        %v1010 = vmul.f32 %v918, %v330
        %v1011 = vmul.f32 %v853, %v331
        %v1012 = vmul.f32 %v854, %v332
        %v1013 = vmul.f32 %v919, %v329
        %v1014 = vmul.f32 %v920, %v330
        %v1015 = vmul.f32 %v855, %v331
        %v1016 = vmul.f32 %v856, %v332
        %v1017 = vmul.f32 %v921, %v329
        %v1018 = vmul.f32 %v922, %v330
        %v1019 = vmul.f32 %v857, %v331
        %v1020 = vmul.f32 %v858, %v332
        %v1021 = vmul.f32 %v923, %v329
        %v1022 = vmul.f32 %v924, %v330
        %v1023 = vmul.f32 %v859, %v331
        %v1024 = vmul.f32 %v860, %v332
        %v1025 = vmul.f32 %v925, %v329
        %v1026 = vmul.f32 %v926, %v330
        %v1027 = vmul.f32 %v861, %v331
        %v1028 = vmul.f32 %v862, %v332
        %v1029 = vmul.f32 %v927, %v329
        %v1030 = vmul.f32 %v928, %v330
        %v1031 = vmul.f32 %v863, %v331
        %v1032 = vmul.f32 %v864, %v332
        %v1033 = vmul.f32 %v929, %v329
        %v1034 = vmul.f32 %v930, %v330
        %v1035 = vmul.f32 %v865, %v331
        %v1036 = vmul.f32 %v866, %v332
        %v1037 = vmul.f32 %v931, %v329
        %v1038 = vmul.f32 %v932, %v330
        %v1039 = vmul.f32 %v867, %v331
        %v1040 = vmul.f32 %v868, %v332
        %v1041 = vmul.f32 %v933, %v329
        %v1042 = vmul.f32 %v934, %v330
        %v1043 = vmul.f32 %v869, %v331
        %v1044 = vmul.f32 %v870, %v332
        %v1045 = vmul.f32 %v935, %v329
        %v1046 = vmul.f32 %v936, %v330
        %v1047 = vmul.f32 %v871, %v331
        %v1048 = vmul.f32 %v872, %v332
        %v1049 = vmul.f32 %v937, %v329
        %v1050 = vmul.f32 %v938, %v330
        %v1051 = vmul.f32 %v873, %v331
        %v1052 = vmul.f32 %v874, %v332
        %v1053 = vmul.f32 %v939, %v329
        %v1054 = vmul.f32 %v940, %v330
        %v1055 = vmul.f32 %v875, %v331
        %v1056 = vmul.f32 %v876, %v332
        %v1057 = vmul.f32 %v941, %v329
        %v1058 = vmul.f32 %v942, %v330
        %v1059 = vmul.f32 %v877, %v331
        %v1060 = vmul.f32 %v878, %v332
        %v1061 = vmul.f32 %v943, %v329
        %v1062 = vmul.f32 %v944, %v330
        %v1063 = vmul.f32 %v879, %v331
        %v1064 = vmul.f32 %v880, %v332
        %v1065 = vmul.f32 %v945, %v329
        %v1066 = vmul.f32 %v946, %v330
        %v1067 = vmul.f32 %v881, %v331
        %v1068 = vmul.f32 %v882, %v332
        %v1069 = vmul.f32 %v947, %v329
        %v1070 = vmul.f32 %v948, %v330
        %v1071 = vmul.f32 %v883, %v331
        %v1072 = vmul.f32 %v884, %v332
        %v1073 = vmul.f32 %v949, %v329
        %v1074 = vmul.f32 %v950, %v330
        %v1075 = vmul.f32 %v885, %v331
        %v1076 = vmul.f32 %v886, %v332
        %v1077 = vmul.f32 %v951, %v329
        %v1078 = vmul.f32 %v952, %v330
        %v1079 = vmul.f32 %v887, %v331
        %v1080 = vmul.f32 %v888, %v332
        %v1081 = vadd.f32 %v568, %v953
        %v1082 = vadd.f32 %v569, %v954
        %v1083 = vadd.f32 %v570, %v955
        %v1084 = vadd.f32 %v571, %v956
        %v1085 = vadd.f32 %v572, %v957
        %v1086 = vadd.f32 %v573, %v958
        %v1087 = vadd.f32 %v574, %v959
        %v1088 = vadd.f32 %v575, %v960
        %v1089 = vadd.f32 %v576, %v961
        %v1090 = vadd.f32 %v577, %v962
        %v1091 = vadd.f32 %v578, %v963
        %v1092 = vadd.f32 %v579, %v964
        %v1093 = vadd.f32 %v580, %v965
        %v1094 = vadd.f32 %v581, %v966
        %v1095 = vadd.f32 %v582, %v967
        %v1096 = vadd.f32 %v583, %v968
        %v1097 = vadd.f32 %v584, %v969
        %v1098 = vadd.f32 %v585, %v970
        %v1099 = vadd.f32 %v586, %v971
        %v1100 = vadd.f32 %v587, %v972
        %v1101 = vadd.f32 %v588, %v973
        %v1102 = vadd.f32 %v589, %v974
        %v1103 = vadd.f32 %v590, %v975
        %v1104 = vadd.f32 %v591, %v976
        %v1105 = vadd.f32 %v592, %v977
        %v1106 = vadd.f32 %v593, %v978
        %v1107 = vadd.f32 %v594, %v979
        %v1108 = vadd.f32 %v595, %v980
        %v1109 = vadd.f32 %v596, %v981
        %v1110 = vadd.f32 %v597, %v982
        %v1111 = vadd.f32 %v598, %v983
        %v1112 = vadd.f32 %v599, %v984
        %v1113 = vadd.f32 %v600, %v985
        %v1114 = vadd.f32 %v601, %v986
        %v1115 = vadd.f32 %v602, %v987
        %v1116 = vadd.f32 %v603, %v988
        %v1117 = vadd.f32 %v604, %v989
        %v1118 = vadd.f32 %v605, %v990
        %v1119 = vadd.f32 %v606, %v991
        %v1120 = vadd.f32 %v607, %v992
        %v1121 = vadd.f32 %v608, %v993
        %v1122 = vadd.f32 %v609, %v994
        %v1123 = vadd.f32 %v610, %v995
        %v1124 = vadd.f32 %v611, %v996
        %v1125 = vadd.f32 %v612, %v997
        %v1126 = vadd.f32 %v613, %v998
        %v1127 = vadd.f32 %v614, %v999
        %v1128 = vadd.f32 %v615, %v1000
        %v1129 = vadd.f32 %v616, %v1001
        %v1130 = vadd.f32 %v617, %v1002
        %v1131 = vadd.f32 %v618, %v1003
        %v1132 = vadd.f32 %v619, %v1004
        %v1133 = vadd.f32 %v620, %v1005
        %v1134 = vadd.f32 %v621, %v1006
        %v1135 = vadd.f32 %v622, %v1007
        %v1136 = vadd.f32 %v623, %v1008
        %v1137 = vadd.f32 %v624, %v1009
        %v1138 = vadd.f32 %v625, %v1010
        %v1139 = vadd.f32 %v626, %v1011
        %v1140 = vadd.f32 %v627, %v1012
        %v1141 = vadd.f32 %v628, %v1013
        %v1142 = vadd.f32 %v629, %v1014
        %v1143 = vadd.f32 %v630, %v1015
        %v1144 = vadd.f32 %v631, %v1016
        %v1145 = vadd.f32 %v632, %v1017
        %v1146 = vadd.f32 %v633, %v1018
        %v1147 = vadd.f32 %v634, %v1019
        %v1148 = vadd.f32 %v635, %v1020
        %v1149 = vadd.f32 %v636, %v1021
        %v1150 = vadd.f32 %v637, %v1022
        %v1151 = vadd.f32 %v638, %v1023
        %v1152 = vadd.f32 %v639, %v1024
        %v1153 = vadd.f32 %v640, %v1025
        %v1154 = vadd.f32 %v641, %v1026
        %v1155 = vadd.f32 %v642, %v1027
        %v1156 = vadd.f32 %v643, %v1028
        %v1157 = vadd.f32 %v644, %v1029
        %v1158 = vadd.f32 %v645, %v1030
        %v1159 = vadd.f32 %v646, %v1031
        %v1160 = vadd.f32 %v647, %v1032
        %v1161 = vadd.f32 %v648, %v1033
        %v1162 = vadd.f32 %v649, %v1034
        %v1163 = vadd.f32 %v650, %v1035
        %v1164 = vadd.f32 %v651, %v1036
        %v1165 = vadd.f32 %v652, %v1037
        %v1166 = vadd.f32 %v653, %v1038
        %v1167 = vadd.f32 %v654, %v1039
        %v1168 = vadd.f32 %v655, %v1040
        %v1169 = vadd.f32 %v656, %v1041
        %v1170 = vadd.f32 %v657, %v1042
        %v1171 = vadd.f32 %v658, %v1043
        %v1172 = vadd.f32 %v659, %v1044
        %v1173 = vadd.f32 %v660, %v1045
        %v1174 = vadd.f32 %v661, %v1046
        %v1175 = vadd.f32 %v662, %v1047
        %v1176 = vadd.f32 %v663, %v1048
        %v1177 = vadd.f32 %v664, %v1049
        %v1178 = vadd.f32 %v665, %v1050
        %v1179 = vadd.f32 %v666, %v1051
        %v1180 = vadd.f32 %v667, %v1052
        %v1181 = vadd.f32 %v668, %v1053
        %v1182 = vadd.f32 %v669, %v1054
        %v1183 = vadd.f32 %v670, %v1055
        %v1184 = vadd.f32 %v671, %v1056
        %v1185 = vadd.f32 %v672, %v1057
        %v1186 = vadd.f32 %v673, %v1058
        %v1187 = vadd.f32 %v674, %v1059
        %v1188 = vadd.f32 %v675, %v1060
        %v1189 = vadd.f32 %v676, %v1061
        %v1190 = vadd.f32 %v677, %v1062
        %v1191 = vadd.f32 %v678, %v1063
        %v1192 = vadd.f32 %v679, %v1064
        %v1193 = vadd.f32 %v680, %v1065
        %v1194 = vadd.f32 %v681, %v1066
        %v1195 = vadd.f32 %v682, %v1067
        %v1196 = vadd.f32 %v683, %v1068
        %v1197 = vadd.f32 %v684, %v1069
        %v1198 = vadd.f32 %v685, %v1070
        %v1199 = vadd.f32 %v686, %v1071
        %v1200 = vadd.f32 %v687, %v1072
        %v1201 = vadd.f32 %v688, %v1073
        %v1202 = vadd.f32 %v689, %v1074
        %v1203 = vadd.f32 %v690, %v1075
        %v1204 = vadd.f32 %v691, %v1076
        %v1205 = vadd.f32 %v692, %v1077
        %v1206 = vadd.f32 %v693, %v1078
        %v1207 = vadd.f32 %v694, %v1079
        %v1208 = vadd.f32 %v695, %v1080
        %v1209 = vrot.slane %v422, 1
        %v1210 = vrot.slane %v423, 1
        %v1211 = vrot.slane %v426, 1
        %v1212 = vrot.slane %v427, 1
        %v1213 = vrot.slane %v430, 1
        %v1214 = vrot.slane %v431, 1
        %v1215 = vrot.slane %v434, 1
        %v1216 = vrot.slane %v435, 1
        %v1217 = vrot.slane %v438, 1
        %v1218 = vrot.slane %v439, 1
        %v1219 = vrot.slane %v442, 1
        %v1220 = vrot.slane %v443, 1
        %v1221 = vrot.slane %v446, 1
        %v1222 = vrot.slane %v447, 1
        %v1223 = vrot.slane %v450, 1
        %v1224 = vrot.slane %v451, 1
        %v1225 = vrot.slane %v454, 1
        %v1226 = vrot.slane %v455, 1
        %v1227 = vrot.slane %v458, 1
        %v1228 = vrot.slane %v459, 1
        %v1229 = vrot.slane %v462, 1
        %v1230 = vrot.slane %v463, 1
        %v1231 = vrot.slane %v466, 1
        %v1232 = vrot.slane %v467, 1
        %v1233 = vrot.slane %v470, 1
        %v1234 = vrot.slane %v471, 1
        %v1235 = vrot.slane %v474, 1
        %v1236 = vrot.slane %v475, 1
        %v1237 = vrot.slane %v478, 1
        %v1238 = vrot.slane %v479, 1
        %v1239 = vrot.slane %v482, 1
        %v1240 = vrot.slane %v483, 1
        %v1241 = vrot.slane %v486, 1
        %v1242 = vrot.slane %v487, 1
        %v1243 = vrot.slane %v490, 1
        %v1244 = vrot.slane %v491, 1
        %v1245 = vrot.slane %v494, 1
        %v1246 = vrot.slane %v495, 1
        %v1247 = vrot.slane %v498, 1
        %v1248 = vrot.slane %v499, 1
        %v1249 = vrot.slane %v502, 1
        %v1250 = vrot.slane %v503, 1
        %v1251 = vrot.slane %v506, 1
        %v1252 = vrot.slane %v507, 1
        %v1253 = vrot.slane %v510, 1
        %v1254 = vrot.slane %v511, 1
        %v1255 = vrot.slane %v514, 1
        %v1256 = vrot.slane %v515, 1
        %v1257 = vrot.slane %v518, 1
        %v1258 = vrot.slane %v519, 1
        %v1259 = vrot.slane %v522, 1
        %v1260 = vrot.slane %v523, 1
        %v1261 = vrot.slane %v526, 1
        %v1262 = vrot.slane %v527, 1
        %v1263 = vrot.slane %v530, 1
        %v1264 = vrot.slane %v531, 1
        %v1265 = vrot.slane %v534, 1
        %v1266 = vrot.slane %v535, 1
        %v1267 = vrot.slane %v538, 1
        %v1268 = vrot.slane %v539, 1
        %v1269 = vrot.slane %v542, 1
        %v1270 = vrot.slane %v543, 1
        %v1271 = vrot.slane %v546, 1
        %v1272 = vrot.slane %v547, 1
        %v1273 = vrot.slane %v424, 1
        %v1274 = vrot.slane %v425, 1
        %v1275 = vrot.slane %v428, 1
        %v1276 = vrot.slane %v429, 1
        %v1277 = vrot.slane %v432, 1
        %v1278 = vrot.slane %v433, 1
        %v1279 = vrot.slane %v436, 1
        %v1280 = vrot.slane %v437, 1
        %v1281 = vrot.slane %v440, 1
        %v1282 = vrot.slane %v441, 1
        %v1283 = vrot.slane %v444, 1
        %v1284 = vrot.slane %v445, 1
        %v1285 = vrot.slane %v448, 1
        %v1286 = vrot.slane %v449, 1
        %v1287 = vrot.slane %v452, 1
        %v1288 = vrot.slane %v453, 1
        %v1289 = vrot.slane %v456, 1
        %v1290 = vrot.slane %v457, 1
        %v1291 = vrot.slane %v460, 1
        %v1292 = vrot.slane %v461, 1
        %v1293 = vrot.slane %v464, 1
        %v1294 = vrot.slane %v465, 1
        %v1295 = vrot.slane %v468, 1
        %v1296 = vrot.slane %v469, 1
        %v1297 = vrot.slane %v472, 1
        %v1298 = vrot.slane %v473, 1
        %v1299 = vrot.slane %v476, 1
        %v1300 = vrot.slane %v477, 1
        %v1301 = vrot.slane %v480, 1
        %v1302 = vrot.slane %v481, 1
        %v1303 = vrot.slane %v484, 1
        %v1304 = vrot.slane %v485, 1
        %v1305 = vrot.slane %v488, 1
        %v1306 = vrot.slane %v489, 1
        %v1307 = vrot.slane %v492, 1
        %v1308 = vrot.slane %v493, 1
        %v1309 = vrot.slane %v496, 1
        %v1310 = vrot.slane %v497, 1
        %v1311 = vrot.slane %v500, 1
        %v1312 = vrot.slane %v501, 1
        %v1313 = vrot.slane %v504, 1
        %v1314 = vrot.slane %v505, 1
        %v1315 = vrot.slane %v508, 1
        %v1316 = vrot.slane %v509, 1
        %v1317 = vrot.slane %v512, 1
        %v1318 = vrot.slane %v513, 1
        %v1319 = vrot.slane %v516, 1
        %v1320 = vrot.slane %v517, 1
        %v1321 = vrot.slane %v520, 1
        %v1322 = vrot.slane %v521, 1
        %v1323 = vrot.slane %v524, 1
        %v1324 = vrot.slane %v525, 1
        %v1325 = vrot.slane %v528, 1
        %v1326 = vrot.slane %v529, 1
        %v1327 = vrot.slane %v532, 1
        %v1328 = vrot.slane %v533, 1
        %v1329 = vrot.slane %v536, 1
        %v1330 = vrot.slane %v537, 1
        %v1331 = vrot.slane %v540, 1
        %v1332 = vrot.slane %v541, 1
        %v1333 = vrot.slane %v544, 1
        %v1334 = vrot.slane %v545, 1
        %v1335 = vrot.slane %v548, 1
        %v1336 = vrot.slane %v549, 1
        %vm1337 = vcmp.lt.s32.totalorder %v273, 7
        %v1338 = vsel %vm1337, %v1209, %v1273
        %v1339 = vsel %vm1337, %v1210, %v1274
        %v1340 = vsel %vm1337, %v1211, %v1275
        %v1341 = vsel %vm1337, %v1212, %v1276
        %v1342 = vsel %vm1337, %v1213, %v1277
        %v1343 = vsel %vm1337, %v1214, %v1278
        %v1344 = vsel %vm1337, %v1215, %v1279
        %v1345 = vsel %vm1337, %v1216, %v1280
        %v1346 = vsel %vm1337, %v1217, %v1281
        %v1347 = vsel %vm1337, %v1218, %v1282
        %v1348 = vsel %vm1337, %v1219, %v1283
        %v1349 = vsel %vm1337, %v1220, %v1284
        %v1350 = vsel %vm1337, %v1221, %v1285
        %v1351 = vsel %vm1337, %v1222, %v1286
        %v1352 = vsel %vm1337, %v1223, %v1287
        %v1353 = vsel %vm1337, %v1224, %v1288
        %v1354 = vsel %vm1337, %v1225, %v1289
        %v1355 = vsel %vm1337, %v1226, %v1290
        %v1356 = vsel %vm1337, %v1227, %v1291
        %v1357 = vsel %vm1337, %v1228, %v1292
        %v1358 = vsel %vm1337, %v1229, %v1293
        %v1359 = vsel %vm1337, %v1230, %v1294
        %v1360 = vsel %vm1337, %v1231, %v1295
        %v1361 = vsel %vm1337, %v1232, %v1296
        %v1362 = vsel %vm1337, %v1233, %v1297
        %v1363 = vsel %vm1337, %v1234, %v1298
        %v1364 = vsel %vm1337, %v1235, %v1299
        %v1365 = vsel %vm1337, %v1236, %v1300
        %v1366 = vsel %vm1337, %v1237, %v1301
        %v1367 = vsel %vm1337, %v1238, %v1302
        %v1368 = vsel %vm1337, %v1239, %v1303
        %v1369 = vsel %vm1337, %v1240, %v1304
        %v1370 = vsel %vm1337, %v1241, %v1305
        %v1371 = vsel %vm1337, %v1242, %v1306
        %v1372 = vsel %vm1337, %v1243, %v1307
        %v1373 = vsel %vm1337, %v1244, %v1308
        %v1374 = vsel %vm1337, %v1245, %v1309
        %v1375 = vsel %vm1337, %v1246, %v1310
        %v1376 = vsel %vm1337, %v1247, %v1311
        %v1377 = vsel %vm1337, %v1248, %v1312
        %v1378 = vsel %vm1337, %v1249, %v1313
        %v1379 = vsel %vm1337, %v1250, %v1314
        %v1380 = vsel %vm1337, %v1251, %v1315
        %v1381 = vsel %vm1337, %v1252, %v1316
        %v1382 = vsel %vm1337, %v1253, %v1317
        %v1383 = vsel %vm1337, %v1254, %v1318
        %v1384 = vsel %vm1337, %v1255, %v1319
        %v1385 = vsel %vm1337, %v1256, %v1320
        %v1386 = vsel %vm1337, %v1257, %v1321
        %v1387 = vsel %vm1337, %v1258, %v1322
        %v1388 = vsel %vm1337, %v1259, %v1323
        %v1389 = vsel %vm1337, %v1260, %v1324
        %v1390 = vsel %vm1337, %v1261, %v1325
        %v1391 = vsel %vm1337, %v1262, %v1326
        %v1392 = vsel %vm1337, %v1263, %v1327
        %v1393 = vsel %vm1337, %v1264, %v1328
        %v1394 = vsel %vm1337, %v1265, %v1329
        %v1395 = vsel %vm1337, %v1266, %v1330
        %v1396 = vsel %vm1337, %v1267, %v1331
        %v1397 = vsel %vm1337, %v1268, %v1332
        %v1398 = vsel %vm1337, %v1269, %v1333
        %v1399 = vsel %vm1337, %v1270, %v1334
        %v1400 = vsel %vm1337, %v1271, %v1335
        %v1401 = vsel %vm1337, %v1272, %v1336
        %v1402 = vsel %vm1337, %v1273, %v1209
        %v1403 = vsel %vm1337, %v1274, %v1210
        %v1404 = vsel %vm1337, %v1275, %v1211
        %v1405 = vsel %vm1337, %v1276, %v1212
        %v1406 = vsel %vm1337, %v1277, %v1213
        %v1407 = vsel %vm1337, %v1278, %v1214
        %v1408 = vsel %vm1337, %v1279, %v1215
        %v1409 = vsel %vm1337, %v1280, %v1216
        %v1410 = vsel %vm1337, %v1281, %v1217
        %v1411 = vsel %vm1337, %v1282, %v1218
        %v1412 = vsel %vm1337, %v1283, %v1219
        %v1413 = vsel %vm1337, %v1284, %v1220
        %v1414 = vsel %vm1337, %v1285, %v1221
        %v1415 = vsel %vm1337, %v1286, %v1222
        %v1416 = vsel %vm1337, %v1287, %v1223
        %v1417 = vsel %vm1337, %v1288, %v1224
        %v1418 = vsel %vm1337, %v1289, %v1225
        %v1419 = vsel %vm1337, %v1290, %v1226
        %v1420 = vsel %vm1337, %v1291, %v1227
        %v1421 = vsel %vm1337, %v1292, %v1228
        %v1422 = vsel %vm1337, %v1293, %v1229
        %v1423 = vsel %vm1337, %v1294, %v1230
        %v1424 = vsel %vm1337, %v1295, %v1231
        %v1425 = vsel %vm1337, %v1296, %v1232
        %v1426 = vsel %vm1337, %v1297, %v1233
        %v1427 = vsel %vm1337, %v1298, %v1234
        %v1428 = vsel %vm1337, %v1299, %v1235
        %v1429 = vsel %vm1337, %v1300, %v1236
        %v1430 = vsel %vm1337, %v1301, %v1237
        %v1431 = vsel %vm1337, %v1302, %v1238
        %v1432 = vsel %vm1337, %v1303, %v1239
        %v1433 = vsel %vm1337, %v1304, %v1240
        %v1434 = vsel %vm1337, %v1305, %v1241
        %v1435 = vsel %vm1337, %v1306, %v1242
        %v1436 = vsel %vm1337, %v1307, %v1243
        %v1437 = vsel %vm1337, %v1308, %v1244
        %v1438 = vsel %vm1337, %v1309, %v1245
        %v1439 = vsel %vm1337, %v1310, %v1246
        %v1440 = vsel %vm1337, %v1311, %v1247
        %v1441 = vsel %vm1337, %v1312, %v1248
        %v1442 = vsel %vm1337, %v1313, %v1249
        %v1443 = vsel %vm1337, %v1314, %v1250
        %v1444 = vsel %vm1337, %v1315, %v1251
        %v1445 = vsel %vm1337, %v1316, %v1252
        %v1446 = vsel %vm1337, %v1317, %v1253
        %v1447 = vsel %vm1337, %v1318, %v1254
        %v1448 = vsel %vm1337, %v1319, %v1255
        %v1449 = vsel %vm1337, %v1320, %v1256
        %v1450 = vsel %vm1337, %v1321, %v1257
        %v1451 = vsel %vm1337, %v1322, %v1258
        %v1452 = vsel %vm1337, %v1323, %v1259
        %v1453 = vsel %vm1337, %v1324, %v1260
        %v1454 = vsel %vm1337, %v1325, %v1261
        %v1455 = vsel %vm1337, %v1326, %v1262
        %v1456 = vsel %vm1337, %v1327, %v1263
        %v1457 = vsel %vm1337, %v1328, %v1264
        %v1458 = vsel %vm1337, %v1329, %v1265
        %v1459 = vsel %vm1337, %v1330, %v1266
        %v1460 = vsel %vm1337, %v1331, %v1267
        %v1461 = vsel %vm1337, %v1332, %v1268
        %v1462 = vsel %vm1337, %v1333, %v1269
        %v1463 = vsel %vm1337, %v1334, %v1270
        %v1464 = vsel %vm1337, %v1335, %v1271
        %v1465 = vsel %vm1337, %v1336, %v1272
        %v1466 = vmul.f32 %v1338, %v396
        %v1467 = vmul.f32 %v1339, %v397
        %v1468 = vmul.f32 %v1402, %v398
        %v1469 = vmul.f32 %v1403, %v399
        %v1470 = vmul.f32 %v1340, %v396
        %v1471 = vmul.f32 %v1341, %v397
        %v1472 = vmul.f32 %v1404, %v398
        %v1473 = vmul.f32 %v1405, %v399
        %v1474 = vmul.f32 %v1342, %v396
        %v1475 = vmul.f32 %v1343, %v397
        %v1476 = vmul.f32 %v1406, %v398
        %v1477 = vmul.f32 %v1407, %v399
        %v1478 = vmul.f32 %v1344, %v396
        %v1479 = vmul.f32 %v1345, %v397
        %v1480 = vmul.f32 %v1408, %v398
        %v1481 = vmul.f32 %v1409, %v399
        %v1482 = vmul.f32 %v1346, %v396
        %v1483 = vmul.f32 %v1347, %v397
        %v1484 = vmul.f32 %v1410, %v398
        %v1485 = vmul.f32 %v1411, %v399
        %v1486 = vmul.f32 %v1348, %v396
        %v1487 = vmul.f32 %v1349, %v397
        %v1488 = vmul.f32 %v1412, %v398
        %v1489 = vmul.f32 %v1413, %v399
        %v1490 = vmul.f32 %v1350, %v396
        %v1491 = vmul.f32 %v1351, %v397
        %v1492 = vmul.f32 %v1414, %v398
        %v1493 = vmul.f32 %v1415, %v399
        %v1494 = vmul.f32 %v1352, %v396
        %v1495 = vmul.f32 %v1353, %v397
        %v1496 = vmul.f32 %v1416, %v398
        %v1497 = vmul.f32 %v1417, %v399
        %v1498 = vmul.f32 %v1354, %v396
        %v1499 = vmul.f32 %v1355, %v397
        %v1500 = vmul.f32 %v1418, %v398
        %v1501 = vmul.f32 %v1419, %v399
        %v1502 = vmul.f32 %v1356, %v396
        %v1503 = vmul.f32 %v1357, %v397
        %v1504 = vmul.f32 %v1420, %v398
        %v1505 = vmul.f32 %v1421, %v399
        %v1506 = vmul.f32 %v1358, %v396
        %v1507 = vmul.f32 %v1359, %v397
        %v1508 = vmul.f32 %v1422, %v398
        %v1509 = vmul.f32 %v1423, %v399
        %v1510 = vmul.f32 %v1360, %v396
        %v1511 = vmul.f32 %v1361, %v397
        %v1512 = vmul.f32 %v1424, %v398
        %v1513 = vmul.f32 %v1425, %v399
        %v1514 = vmul.f32 %v1362, %v396
        %v1515 = vmul.f32 %v1363, %v397
        %v1516 = vmul.f32 %v1426, %v398
        %v1517 = vmul.f32 %v1427, %v399
        %v1518 = vmul.f32 %v1364, %v396
        %v1519 = vmul.f32 %v1365, %v397
        %v1520 = vmul.f32 %v1428, %v398
        %v1521 = vmul.f32 %v1429, %v399
        %v1522 = vmul.f32 %v1366, %v396
        %v1523 = vmul.f32 %v1367, %v397
        %v1524 = vmul.f32 %v1430, %v398
        %v1525 = vmul.f32 %v1431, %v399
        %v1526 = vmul.f32 %v1368, %v396
        %v1527 = vmul.f32 %v1369, %v397
        %v1528 = vmul.f32 %v1432, %v398
        %v1529 = vmul.f32 %v1433, %v399
        %v1530 = vmul.f32 %v1370, %v396
        %v1531 = vmul.f32 %v1371, %v397
        %v1532 = vmul.f32 %v1434, %v398
        %v1533 = vmul.f32 %v1435, %v399
        %v1534 = vmul.f32 %v1372, %v396
        %v1535 = vmul.f32 %v1373, %v397
        %v1536 = vmul.f32 %v1436, %v398
        %v1537 = vmul.f32 %v1437, %v399
        %v1538 = vmul.f32 %v1374, %v396
        %v1539 = vmul.f32 %v1375, %v397
        %v1540 = vmul.f32 %v1438, %v398
        %v1541 = vmul.f32 %v1439, %v399
        %v1542 = vmul.f32 %v1376, %v396
        %v1543 = vmul.f32 %v1377, %v397
        %v1544 = vmul.f32 %v1440, %v398
        %v1545 = vmul.f32 %v1441, %v399
        %v1546 = vmul.f32 %v1378, %v396
        %v1547 = vmul.f32 %v1379, %v397
        %v1548 = vmul.f32 %v1442, %v398
        %v1549 = vmul.f32 %v1443, %v399
        %v1550 = vmul.f32 %v1380, %v396
        %v1551 = vmul.f32 %v1381, %v397
        %v1552 = vmul.f32 %v1444, %v398
        %v1553 = vmul.f32 %v1445, %v399
        %v1554 = vmul.f32 %v1382, %v396
        %v1555 = vmul.f32 %v1383, %v397
        %v1556 = vmul.f32 %v1446, %v398
        %v1557 = vmul.f32 %v1447, %v399
        %v1558 = vmul.f32 %v1384, %v396
        %v1559 = vmul.f32 %v1385, %v397
        %v1560 = vmul.f32 %v1448, %v398
        %v1561 = vmul.f32 %v1449, %v399
        %v1562 = vmul.f32 %v1386, %v396
        %v1563 = vmul.f32 %v1387, %v397
        %v1564 = vmul.f32 %v1450, %v398
        %v1565 = vmul.f32 %v1451, %v399
        %v1566 = vmul.f32 %v1388, %v396
        %v1567 = vmul.f32 %v1389, %v397
        %v1568 = vmul.f32 %v1452, %v398
        %v1569 = vmul.f32 %v1453, %v399
        %v1570 = vmul.f32 %v1390, %v396
        %v1571 = vmul.f32 %v1391, %v397
        %v1572 = vmul.f32 %v1454, %v398
        %v1573 = vmul.f32 %v1455, %v399
        %v1574 = vmul.f32 %v1392, %v396
        %v1575 = vmul.f32 %v1393, %v397
        %v1576 = vmul.f32 %v1456, %v398
        %v1577 = vmul.f32 %v1457, %v399
        %v1578 = vmul.f32 %v1394, %v396
        %v1579 = vmul.f32 %v1395, %v397
        %v1580 = vmul.f32 %v1458, %v398
        %v1581 = vmul.f32 %v1459, %v399
        %v1582 = vmul.f32 %v1396, %v396
        %v1583 = vmul.f32 %v1397, %v397
        %v1584 = vmul.f32 %v1460, %v398
        %v1585 = vmul.f32 %v1461, %v399
        %v1586 = vmul.f32 %v1398, %v396
        %v1587 = vmul.f32 %v1399, %v397
        %v1588 = vmul.f32 %v1462, %v398
        %v1589 = vmul.f32 %v1463, %v399
        %v1590 = vmul.f32 %v1400, %v396
        %v1591 = vmul.f32 %v1401, %v397
        %v1592 = vmul.f32 %v1464, %v398
        %v1593 = vmul.f32 %v1465, %v399
        %v1594 = vadd.f32 %v1081, %v1466
        %v1595 = vadd.f32 %v1082, %v1467
        %v1596 = vadd.f32 %v1083, %v1468
        %v1597 = vadd.f32 %v1084, %v1469
        %v1598 = vadd.f32 %v1085, %v1470
        %v1599 = vadd.f32 %v1086, %v1471
        %v1600 = vadd.f32 %v1087, %v1472
        %v1601 = vadd.f32 %v1088, %v1473
        %v1602 = vadd.f32 %v1089, %v1474
        %v1603 = vadd.f32 %v1090, %v1475
        %v1604 = vadd.f32 %v1091, %v1476
        %v1605 = vadd.f32 %v1092, %v1477
        %v1606 = vadd.f32 %v1093, %v1478
        %v1607 = vadd.f32 %v1094, %v1479
        %v1608 = vadd.f32 %v1095, %v1480
        %v1609 = vadd.f32 %v1096, %v1481
        %v1610 = vadd.f32 %v1097, %v1482
        %v1611 = vadd.f32 %v1098, %v1483
        %v1612 = vadd.f32 %v1099, %v1484
        %v1613 = vadd.f32 %v1100, %v1485
        %v1614 = vadd.f32 %v1101, %v1486
        %v1615 = vadd.f32 %v1102, %v1487
        %v1616 = vadd.f32 %v1103, %v1488
        %v1617 = vadd.f32 %v1104, %v1489
        %v1618 = vadd.f32 %v1105, %v1490
        %v1619 = vadd.f32 %v1106, %v1491
        %v1620 = vadd.f32 %v1107, %v1492
        %v1621 = vadd.f32 %v1108, %v1493
        %v1622 = vadd.f32 %v1109, %v1494
        %v1623 = vadd.f32 %v1110, %v1495
        %v1624 = vadd.f32 %v1111, %v1496
        %v1625 = vadd.f32 %v1112, %v1497
        %v1626 = vadd.f32 %v1113, %v1498
        %v1627 = vadd.f32 %v1114, %v1499
        %v1628 = vadd.f32 %v1115, %v1500
        %v1629 = vadd.f32 %v1116, %v1501
        %v1630 = vadd.f32 %v1117, %v1502
        %v1631 = vadd.f32 %v1118, %v1503
        %v1632 = vadd.f32 %v1119, %v1504
        %v1633 = vadd.f32 %v1120, %v1505
        %v1634 = vadd.f32 %v1121, %v1506
        %v1635 = vadd.f32 %v1122, %v1507
        %v1636 = vadd.f32 %v1123, %v1508
        %v1637 = vadd.f32 %v1124, %v1509
        %v1638 = vadd.f32 %v1125, %v1510
        %v1639 = vadd.f32 %v1126, %v1511
        %v1640 = vadd.f32 %v1127, %v1512
        %v1641 = vadd.f32 %v1128, %v1513
        %v1642 = vadd.f32 %v1129, %v1514
        %v1643 = vadd.f32 %v1130, %v1515
        %v1644 = vadd.f32 %v1131, %v1516
        %v1645 = vadd.f32 %v1132, %v1517
        %v1646 = vadd.f32 %v1133, %v1518
        %v1647 = vadd.f32 %v1134, %v1519
        %v1648 = vadd.f32 %v1135, %v1520
        %v1649 = vadd.f32 %v1136, %v1521
        %v1650 = vadd.f32 %v1137, %v1522
        %v1651 = vadd.f32 %v1138, %v1523
        %v1652 = vadd.f32 %v1139, %v1524
        %v1653 = vadd.f32 %v1140, %v1525
        %v1654 = vadd.f32 %v1141, %v1526
        %v1655 = vadd.f32 %v1142, %v1527
        %v1656 = vadd.f32 %v1143, %v1528
        %v1657 = vadd.f32 %v1144, %v1529
        %v1658 = vadd.f32 %v1145, %v1530
        %v1659 = vadd.f32 %v1146, %v1531
        %v1660 = vadd.f32 %v1147, %v1532
        %v1661 = vadd.f32 %v1148, %v1533
        %v1662 = vadd.f32 %v1149, %v1534
        %v1663 = vadd.f32 %v1150, %v1535
        %v1664 = vadd.f32 %v1151, %v1536
        %v1665 = vadd.f32 %v1152, %v1537
        %v1666 = vadd.f32 %v1153, %v1538
        %v1667 = vadd.f32 %v1154, %v1539
        %v1668 = vadd.f32 %v1155, %v1540
        %v1669 = vadd.f32 %v1156, %v1541
        %v1670 = vadd.f32 %v1157, %v1542
        %v1671 = vadd.f32 %v1158, %v1543
        %v1672 = vadd.f32 %v1159, %v1544
        %v1673 = vadd.f32 %v1160, %v1545
        %v1674 = vadd.f32 %v1161, %v1546
        %v1675 = vadd.f32 %v1162, %v1547
        %v1676 = vadd.f32 %v1163, %v1548
        %v1677 = vadd.f32 %v1164, %v1549
        %v1678 = vadd.f32 %v1165, %v1550
        %v1679 = vadd.f32 %v1166, %v1551
        %v1680 = vadd.f32 %v1167, %v1552
        %v1681 = vadd.f32 %v1168, %v1553
        %v1682 = vadd.f32 %v1169, %v1554
        %v1683 = vadd.f32 %v1170, %v1555
        %v1684 = vadd.f32 %v1171, %v1556
        %v1685 = vadd.f32 %v1172, %v1557
        %v1686 = vadd.f32 %v1173, %v1558
        %v1687 = vadd.f32 %v1174, %v1559
        %v1688 = vadd.f32 %v1175, %v1560
        %v1689 = vadd.f32 %v1176, %v1561
        %v1690 = vadd.f32 %v1177, %v1562
        %v1691 = vadd.f32 %v1178, %v1563
        %v1692 = vadd.f32 %v1179, %v1564
        %v1693 = vadd.f32 %v1180, %v1565
        %v1694 = vadd.f32 %v1181, %v1566
        %v1695 = vadd.f32 %v1182, %v1567
        %v1696 = vadd.f32 %v1183, %v1568
        %v1697 = vadd.f32 %v1184, %v1569
        %v1698 = vadd.f32 %v1185, %v1570
        %v1699 = vadd.f32 %v1186, %v1571
        %v1700 = vadd.f32 %v1187, %v1572
        %v1701 = vadd.f32 %v1188, %v1573
        %v1702 = vadd.f32 %v1189, %v1574
        %v1703 = vadd.f32 %v1190, %v1575
        %v1704 = vadd.f32 %v1191, %v1576
        %v1705 = vadd.f32 %v1192, %v1577
        %v1706 = vadd.f32 %v1193, %v1578
        %v1707 = vadd.f32 %v1194, %v1579
        %v1708 = vadd.f32 %v1195, %v1580
        %v1709 = vadd.f32 %v1196, %v1581
        %v1710 = vadd.f32 %v1197, %v1582
        %v1711 = vadd.f32 %v1198, %v1583
        %v1712 = vadd.f32 %v1199, %v1584
        %v1713 = vadd.f32 %v1200, %v1585
        %v1714 = vadd.f32 %v1201, %v1586
        %v1715 = vadd.f32 %v1202, %v1587
        %v1716 = vadd.f32 %v1203, %v1588
        %v1717 = vadd.f32 %v1204, %v1589
        %v1718 = vadd.f32 %v1205, %v1590
        %v1719 = vadd.f32 %v1206, %v1591
        %v1720 = vadd.f32 %v1207, %v1592
        %v1721 = vadd.f32 %v1208, %v1593
        %v1723 = vlaneseq
        %v1724 = vshrl.u32 %v1723, 7
        %v1725 = vsub.s32 0, %v1724
        %v1726 = vrot.slane %v271, %v1725
        %v1727 = vlaneseq
        %v1728 = vshrl.u32 %v1727, 7
        %v1729 = vsub.s32 1, %v1728
        %v1730 = vrot.slane %v271, %v1729
        %v1733 = vadd.f32 %v1594, %v1726
        %v1734 = vadd.f32 %v1595, %v1730
        %v1735 = vadd.f32 %v1596, %v1726
        %v1736 = vadd.f32 %v1597, %v1730
        %v1737 = vadd.f32 %v1598, %v1726
        %v1738 = vadd.f32 %v1599, %v1730
        %v1739 = vadd.f32 %v1600, %v1726
        %v1740 = vadd.f32 %v1601, %v1730
        %v1741 = vadd.f32 %v1602, %v1726
        %v1742 = vadd.f32 %v1603, %v1730
        %v1743 = vadd.f32 %v1604, %v1726
        %v1744 = vadd.f32 %v1605, %v1730
        %v1745 = vadd.f32 %v1606, %v1726
        %v1746 = vadd.f32 %v1607, %v1730
        %v1747 = vadd.f32 %v1608, %v1726
        %v1748 = vadd.f32 %v1609, %v1730
        %v1749 = vadd.f32 %v1610, %v1726
        %v1750 = vadd.f32 %v1611, %v1730
        %v1751 = vadd.f32 %v1612, %v1726
        %v1752 = vadd.f32 %v1613, %v1730
        %v1753 = vadd.f32 %v1614, %v1726
        %v1754 = vadd.f32 %v1615, %v1730
        %v1755 = vadd.f32 %v1616, %v1726
        %v1756 = vadd.f32 %v1617, %v1730
        %v1757 = vadd.f32 %v1618, %v1726
        %v1758 = vadd.f32 %v1619, %v1730
        %v1759 = vadd.f32 %v1620, %v1726
        %v1760 = vadd.f32 %v1621, %v1730
        %v1761 = vadd.f32 %v1622, %v1726
        %v1762 = vadd.f32 %v1623, %v1730
        %v1763 = vadd.f32 %v1624, %v1726
        %v1764 = vadd.f32 %v1625, %v1730
        %v1765 = vadd.f32 %v1626, %v1726
        %v1766 = vadd.f32 %v1627, %v1730
        %v1767 = vadd.f32 %v1628, %v1726
        %v1768 = vadd.f32 %v1629, %v1730
        %v1769 = vadd.f32 %v1630, %v1726
        %v1770 = vadd.f32 %v1631, %v1730
        %v1771 = vadd.f32 %v1632, %v1726
        %v1772 = vadd.f32 %v1633, %v1730
        %v1773 = vadd.f32 %v1634, %v1726
        %v1774 = vadd.f32 %v1635, %v1730
        %v1775 = vadd.f32 %v1636, %v1726
        %v1776 = vadd.f32 %v1637, %v1730
        %v1777 = vadd.f32 %v1638, %v1726
        %v1778 = vadd.f32 %v1639, %v1730
        %v1779 = vadd.f32 %v1640, %v1726
        %v1780 = vadd.f32 %v1641, %v1730
        %v1781 = vadd.f32 %v1642, %v1726
        %v1782 = vadd.f32 %v1643, %v1730
        %v1783 = vadd.f32 %v1644, %v1726
        %v1784 = vadd.f32 %v1645, %v1730
        %v1785 = vadd.f32 %v1646, %v1726
        %v1786 = vadd.f32 %v1647, %v1730
        %v1787 = vadd.f32 %v1648, %v1726
        %v1788 = vadd.f32 %v1649, %v1730
        %v1789 = vadd.f32 %v1650, %v1726
        %v1790 = vadd.f32 %v1651, %v1730
        %v1791 = vadd.f32 %v1652, %v1726
        %v1792 = vadd.f32 %v1653, %v1730
        %v1793 = vadd.f32 %v1654, %v1726
        %v1794 = vadd.f32 %v1655, %v1730
        %v1795 = vadd.f32 %v1656, %v1726
        %v1796 = vadd.f32 %v1657, %v1730
        %v1797 = vadd.f32 %v1658, %v1726
        %v1798 = vadd.f32 %v1659, %v1730
        %v1799 = vadd.f32 %v1660, %v1726
        %v1800 = vadd.f32 %v1661, %v1730
        %v1801 = vadd.f32 %v1662, %v1726
        %v1802 = vadd.f32 %v1663, %v1730
        %v1803 = vadd.f32 %v1664, %v1726
        %v1804 = vadd.f32 %v1665, %v1730
        %v1805 = vadd.f32 %v1666, %v1726
        %v1806 = vadd.f32 %v1667, %v1730
        %v1807 = vadd.f32 %v1668, %v1726
        %v1808 = vadd.f32 %v1669, %v1730
        %v1809 = vadd.f32 %v1670, %v1726
        %v1810 = vadd.f32 %v1671, %v1730
        %v1811 = vadd.f32 %v1672, %v1726
        %v1812 = vadd.f32 %v1673, %v1730
        %v1813 = vadd.f32 %v1674, %v1726
        %v1814 = vadd.f32 %v1675, %v1730
        %v1815 = vadd.f32 %v1676, %v1726
        %v1816 = vadd.f32 %v1677, %v1730
        %v1817 = vadd.f32 %v1678, %v1726
        %v1818 = vadd.f32 %v1679, %v1730
        %v1819 = vadd.f32 %v1680, %v1726
        %v1820 = vadd.f32 %v1681, %v1730
        %v1821 = vadd.f32 %v1682, %v1726
        %v1822 = vadd.f32 %v1683, %v1730
        %v1823 = vadd.f32 %v1684, %v1726
        %v1824 = vadd.f32 %v1685, %v1730
        %v1825 = vadd.f32 %v1686, %v1726
        %v1826 = vadd.f32 %v1687, %v1730
        %v1827 = vadd.f32 %v1688, %v1726
        %v1828 = vadd.f32 %v1689, %v1730
        %v1829 = vadd.f32 %v1690, %v1726
        %v1830 = vadd.f32 %v1691, %v1730
        %v1831 = vadd.f32 %v1692, %v1726
        %v1832 = vadd.f32 %v1693, %v1730
        %v1833 = vadd.f32 %v1694, %v1726
        %v1834 = vadd.f32 %v1695, %v1730
        %v1835 = vadd.f32 %v1696, %v1726
        %v1836 = vadd.f32 %v1697, %v1730
        %v1837 = vadd.f32 %v1698, %v1726
        %v1838 = vadd.f32 %v1699, %v1730
        %v1839 = vadd.f32 %v1700, %v1726
        %v1840 = vadd.f32 %v1701, %v1730
        %v1841 = vadd.f32 %v1702, %v1726
        %v1842 = vadd.f32 %v1703, %v1730
        %v1843 = vadd.f32 %v1704, %v1726
        %v1844 = vadd.f32 %v1705, %v1730
        %v1845 = vadd.f32 %v1706, %v1726
        %v1846 = vadd.f32 %v1707, %v1730
        %v1847 = vadd.f32 %v1708, %v1726
        %v1848 = vadd.f32 %v1709, %v1730
        %v1849 = vadd.f32 %v1710, %v1726
        %v1850 = vadd.f32 %v1711, %v1730
        %v1851 = vadd.f32 %v1712, %v1726
        %v1852 = vadd.f32 %v1713, %v1730
        %v1853 = vadd.f32 %v1714, %v1726
        %v1854 = vadd.f32 %v1715, %v1730
        %v1855 = vadd.f32 %v1716, %v1726
        %v1856 = vadd.f32 %v1717, %v1730
        %v1857 = vadd.f32 %v1718, %v1726
        %v1858 = vadd.f32 %v1719, %v1730
        %v1859 = vadd.f32 %v1720, %v1726
        %v1860 = vadd.f32 %v1721, %v1730
        %1861 = vst [vmem:[%s257] sm:$0xff] %v1733
        %1862 = vst [vmem:[%s257 + $0x8] sm:$0xff] %v1734
        %1863 = vst [vmem:[%s257 + $0x10] sm:$0xff] %v1735
        %1864 = vst [vmem:[%s257 + $0x18] sm:$0xff] %v1736
        %1865 = vst [vmem:[%s257 + $0x20] sm:$0xff] %v1737
        %1866 = vst [vmem:[%s257 + $0x28] sm:$0xff] %v1738
        %1867 = vst [vmem:[%s257 + $0x30] sm:$0xff] %v1739
        %1868 = vst [vmem:[%s257 + $0x38] sm:$0xff] %v1740
        %1869 = vst [vmem:[%s257 + $0x40] sm:$0xff] %v1741
        %1870 = vst [vmem:[%s257 + $0x48] sm:$0xff] %v1742
        %1871 = vst [vmem:[%s257 + $0x50] sm:$0xff] %v1743
        %1872 = vst [vmem:[%s257 + $0x58] sm:$0xff] %v1744
        %1873 = vst [vmem:[%s257 + $0x60] sm:$0xff] %v1745
        %1874 = vst [vmem:[%s257 + $0x68] sm:$0xff] %v1746
        %1875 = vst [vmem:[%s257 + $0x70] sm:$0xff] %v1747
        %1876 = vst [vmem:[%s257 + $0x78] sm:$0xff] %v1748
        %1877 = vst [vmem:[%s257 + $0x80] sm:$0xff] %v1749
        %1878 = vst [vmem:[%s257 + $0x88] sm:$0xff] %v1750
        %1879 = vst [vmem:[%s257 + $0x90] sm:$0xff] %v1751
        %1880 = vst [vmem:[%s257 + $0x98] sm:$0xff] %v1752
        %1881 = vst [vmem:[%s257 + $0xa0] sm:$0xff] %v1753
        %1882 = vst [vmem:[%s257 + $0xa8] sm:$0xff] %v1754
        %1883 = vst [vmem:[%s257 + $0xb0] sm:$0xff] %v1755
        %1884 = vst [vmem:[%s257 + $0xb8] sm:$0xff] %v1756
        %1885 = vst [vmem:[%s257 + $0xc0] sm:$0xff] %v1757
        %1886 = vst [vmem:[%s257 + $0xc8] sm:$0xff] %v1758
        %1887 = vst [vmem:[%s257 + $0xd0] sm:$0xff] %v1759
        %1888 = vst [vmem:[%s257 + $0xd8] sm:$0xff] %v1760
        %1889 = vst [vmem:[%s257 + $0xe0] sm:$0xff] %v1761
        %1890 = vst [vmem:[%s257 + $0xe8] sm:$0xff] %v1762
        %1891 = vst [vmem:[%s257 + $0xf0] sm:$0xff] %v1763
        %1892 = vst [vmem:[%s257 + $0xf8] sm:$0xff] %v1764
        %1893 = vst [vmem:[%s257 + $0x100] sm:$0xff] %v1765
        %1894 = vst [vmem:[%s257 + $0x108] sm:$0xff] %v1766
        %1895 = vst [vmem:[%s257 + $0x110] sm:$0xff] %v1767
        %1896 = vst [vmem:[%s257 + $0x118] sm:$0xff] %v1768
        %1897 = vst [vmem:[%s257 + $0x120] sm:$0xff] %v1769
        %1898 = vst [vmem:[%s257 + $0x128] sm:$0xff] %v1770
        %1899 = vst [vmem:[%s257 + $0x130] sm:$0xff] %v1771
        %1900 = vst [vmem:[%s257 + $0x138] sm:$0xff] %v1772
        %1901 = vst [vmem:[%s257 + $0x140] sm:$0xff] %v1773
        %1902 = vst [vmem:[%s257 + $0x148] sm:$0xff] %v1774
        %1903 = vst [vmem:[%s257 + $0x150] sm:$0xff] %v1775
        %1904 = vst [vmem:[%s257 + $0x158] sm:$0xff] %v1776
        %1905 = vst [vmem:[%s257 + $0x160] sm:$0xff] %v1777
        %1906 = vst [vmem:[%s257 + $0x168] sm:$0xff] %v1778
        %1907 = vst [vmem:[%s257 + $0x170] sm:$0xff] %v1779
        %1908 = vst [vmem:[%s257 + $0x178] sm:$0xff] %v1780
        %1909 = vst [vmem:[%s257 + $0x180] sm:$0xff] %v1781
        %1910 = vst [vmem:[%s257 + $0x188] sm:$0xff] %v1782
        %1911 = vst [vmem:[%s257 + $0x190] sm:$0xff] %v1783
        %1912 = vst [vmem:[%s257 + $0x198] sm:$0xff] %v1784
        %1913 = vst [vmem:[%s257 + $0x1a0] sm:$0xff] %v1785
        %1914 = vst [vmem:[%s257 + $0x1a8] sm:$0xff] %v1786
        %1915 = vst [vmem:[%s257 + $0x1b0] sm:$0xff] %v1787
        %1916 = vst [vmem:[%s257 + $0x1b8] sm:$0xff] %v1788
        %1917 = vst [vmem:[%s257 + $0x1c0] sm:$0xff] %v1789
        %1918 = vst [vmem:[%s257 + $0x1c8] sm:$0xff] %v1790
        %1919 = vst [vmem:[%s257 + $0x1d0] sm:$0xff] %v1791
        %1920 = vst [vmem:[%s257 + $0x1d8] sm:$0xff] %v1792
        %1921 = vst [vmem:[%s257 + $0x1e0] sm:$0xff] %v1793
        %1922 = vst [vmem:[%s257 + $0x1e8] sm:$0xff] %v1794
        %1923 = vst [vmem:[%s257 + $0x1f0] sm:$0xff] %v1795
        %1924 = vst [vmem:[%s257 + $0x1f8] sm:$0xff] %v1796
        %1925 = vst [vmem:[%s257 + $0x200] sm:$0xff] %v1797
        %1926 = vst [vmem:[%s257 + $0x208] sm:$0xff] %v1798
        %1927 = vst [vmem:[%s257 + $0x210] sm:$0xff] %v1799
        %1928 = vst [vmem:[%s257 + $0x218] sm:$0xff] %v1800
        %1929 = vst [vmem:[%s257 + $0x220] sm:$0xff] %v1801
        %1930 = vst [vmem:[%s257 + $0x228] sm:$0xff] %v1802
        %1931 = vst [vmem:[%s257 + $0x230] sm:$0xff] %v1803
        %1932 = vst [vmem:[%s257 + $0x238] sm:$0xff] %v1804
        %1933 = vst [vmem:[%s257 + $0x240] sm:$0xff] %v1805
        %1934 = vst [vmem:[%s257 + $0x248] sm:$0xff] %v1806
        %1935 = vst [vmem:[%s257 + $0x250] sm:$0xff] %v1807
        %1936 = vst [vmem:[%s257 + $0x258] sm:$0xff] %v1808
        %1937 = vst [vmem:[%s257 + $0x260] sm:$0xff] %v1809
        %1938 = vst [vmem:[%s257 + $0x268] sm:$0xff] %v1810
        %1939 = vst [vmem:[%s257 + $0x270] sm:$0xff] %v1811
        %1940 = vst [vmem:[%s257 + $0x278] sm:$0xff] %v1812
        %1941 = vst [vmem:[%s257 + $0x280] sm:$0xff] %v1813
        %1942 = vst [vmem:[%s257 + $0x288] sm:$0xff] %v1814
        %1943 = vst [vmem:[%s257 + $0x290] sm:$0xff] %v1815
        %1944 = vst [vmem:[%s257 + $0x298] sm:$0xff] %v1816
        %1945 = vst [vmem:[%s257 + $0x2a0] sm:$0xff] %v1817
        %1946 = vst [vmem:[%s257 + $0x2a8] sm:$0xff] %v1818
        %1947 = vst [vmem:[%s257 + $0x2b0] sm:$0xff] %v1819
        %1948 = vst [vmem:[%s257 + $0x2b8] sm:$0xff] %v1820
        %1949 = vst [vmem:[%s257 + $0x2c0] sm:$0xff] %v1821
        %1950 = vst [vmem:[%s257 + $0x2c8] sm:$0xff] %v1822
        %1951 = vst [vmem:[%s257 + $0x2d0] sm:$0xff] %v1823
        %1952 = vst [vmem:[%s257 + $0x2d8] sm:$0xff] %v1824
        %1953 = vst [vmem:[%s257 + $0x2e0] sm:$0xff] %v1825
        %1954 = vst [vmem:[%s257 + $0x2e8] sm:$0xff] %v1826
        %1955 = vst [vmem:[%s257 + $0x2f0] sm:$0xff] %v1827
        %1956 = vst [vmem:[%s257 + $0x2f8] sm:$0xff] %v1828
        %1957 = vst [vmem:[%s257 + $0x300] sm:$0xff] %v1829
        %1958 = vst [vmem:[%s257 + $0x308] sm:$0xff] %v1830
        %1959 = vst [vmem:[%s257 + $0x310] sm:$0xff] %v1831
        %1960 = vst [vmem:[%s257 + $0x318] sm:$0xff] %v1832
        %1961 = vst [vmem:[%s257 + $0x320] sm:$0xff] %v1833
        %1962 = vst [vmem:[%s257 + $0x328] sm:$0xff] %v1834
        %1963 = vst [vmem:[%s257 + $0x330] sm:$0xff] %v1835
        %1964 = vst [vmem:[%s257 + $0x338] sm:$0xff] %v1836
        %1965 = vst [vmem:[%s257 + $0x340] sm:$0xff] %v1837
        %1966 = vst [vmem:[%s257 + $0x348] sm:$0xff] %v1838
        %1967 = vst [vmem:[%s257 + $0x350] sm:$0xff] %v1839
        %1968 = vst [vmem:[%s257 + $0x358] sm:$0xff] %v1840
        %1969 = vst [vmem:[%s257 + $0x360] sm:$0xff] %v1841
        %1970 = vst [vmem:[%s257 + $0x368] sm:$0xff] %v1842
        %1971 = vst [vmem:[%s257 + $0x370] sm:$0xff] %v1843
        %1972 = vst [vmem:[%s257 + $0x378] sm:$0xff] %v1844
        %1973 = vst [vmem:[%s257 + $0x380] sm:$0xff] %v1845
        %1974 = vst [vmem:[%s257 + $0x388] sm:$0xff] %v1846
        %1975 = vst [vmem:[%s257 + $0x390] sm:$0xff] %v1847
        %1976 = vst [vmem:[%s257 + $0x398] sm:$0xff] %v1848
        %1977 = vst [vmem:[%s257 + $0x3a0] sm:$0xff] %v1849
        %1978 = vst [vmem:[%s257 + $0x3a8] sm:$0xff] %v1850
        %1979 = vst [vmem:[%s257 + $0x3b0] sm:$0xff] %v1851
        %1980 = vst [vmem:[%s257 + $0x3b8] sm:$0xff] %v1852
        %1981 = vst [vmem:[%s257 + $0x3c0] sm:$0xff] %v1853
        %1982 = vst [vmem:[%s257 + $0x3c8] sm:$0xff] %v1854
        %1983 = vst [vmem:[%s257 + $0x3d0] sm:$0xff] %v1855
        %1984 = vst [vmem:[%s257 + $0x3d8] sm:$0xff] %v1856
        %1985 = vst [vmem:[%s257 + $0x3e0] sm:$0xff] %v1857
        %1986 = vst [vmem:[%s257 + $0x3e8] sm:$0xff] %v1858
        %1987 = vst [vmem:[%s257 + $0x3f0] sm:$0xff] %v1859
        %1988 = vst [vmem:[%s257 + $0x3f8] sm:$0xff] %v1860
        %s1989 = scalar_lea.vmem %s257, 32 [#allocation7]
        %v1990 = vld [vmem:[%s1989] sm:$0xff]
        %v1991 = vld [vmem:[%s1989 + $0x8] sm:$0xff]
        %v1992 = vld [vmem:[%s1989 + $0x10] sm:$0xff]
        %v1993 = vld [vmem:[%s1989 + $0x18] sm:$0xff]
        %v1994 = vld [vmem:[%s1989 + $0x20] sm:$0xff]
        %v1995 = vld [vmem:[%s1989 + $0x28] sm:$0xff]
        %v1996 = vld [vmem:[%s1989 + $0x30] sm:$0xff]
        %v1997 = vld [vmem:[%s1989 + $0x38] sm:$0xff]
        %v1998 = vld [vmem:[%s1989 + $0x40] sm:$0xff]
        %v1999 = vld [vmem:[%s1989 + $0x48] sm:$0xff]
        %v2000 = vld [vmem:[%s1989 + $0x50] sm:$0xff]
        %v2001 = vld [vmem:[%s1989 + $0x58] sm:$0xff]
        %v2002 = vld [vmem:[%s1989 + $0x60] sm:$0xff]
        %v2003 = vld [vmem:[%s1989 + $0x68] sm:$0xff]
        %v2004 = vld [vmem:[%s1989 + $0x70] sm:$0xff]
        %v2005 = vld [vmem:[%s1989 + $0x78] sm:$0xff]
        %v2006 = vld [vmem:[%s1989 + $0x80] sm:$0xff]
        %v2007 = vld [vmem:[%s1989 + $0x88] sm:$0xff]
        %v2008 = vld [vmem:[%s1989 + $0x90] sm:$0xff]
        %v2009 = vld [vmem:[%s1989 + $0x98] sm:$0xff]
        %v2010 = vld [vmem:[%s1989 + $0xa0] sm:$0xff]
        %v2011 = vld [vmem:[%s1989 + $0xa8] sm:$0xff]
        %v2012 = vld [vmem:[%s1989 + $0xb0] sm:$0xff]
        %v2013 = vld [vmem:[%s1989 + $0xb8] sm:$0xff]
        %v2014 = vld [vmem:[%s1989 + $0xc0] sm:$0xff]
        %v2015 = vld [vmem:[%s1989 + $0xc8] sm:$0xff]
        %v2016 = vld [vmem:[%s1989 + $0xd0] sm:$0xff]
        %v2017 = vld [vmem:[%s1989 + $0xd8] sm:$0xff]
        %v2018 = vld [vmem:[%s1989 + $0xe0] sm:$0xff]
        %v2019 = vld [vmem:[%s1989 + $0xe8] sm:$0xff]
        %v2020 = vld [vmem:[%s1989 + $0xf0] sm:$0xff]
        %v2021 = vld [vmem:[%s1989 + $0xf8] sm:$0xff]
        %v2022 = vld [vmem:[%s1989 + $0x100] sm:$0xff]
        %v2023 = vld [vmem:[%s1989 + $0x108] sm:$0xff]
        %v2024 = vld [vmem:[%s1989 + $0x110] sm:$0xff]
        %v2025 = vld [vmem:[%s1989 + $0x118] sm:$0xff]
        %v2026 = vld [vmem:[%s1989 + $0x120] sm:$0xff]
        %v2027 = vld [vmem:[%s1989 + $0x128] sm:$0xff]
        %v2028 = vld [vmem:[%s1989 + $0x130] sm:$0xff]
        %v2029 = vld [vmem:[%s1989 + $0x138] sm:$0xff]
        %v2030 = vld [vmem:[%s1989 + $0x140] sm:$0xff]
        %v2031 = vld [vmem:[%s1989 + $0x148] sm:$0xff]
        %v2032 = vld [vmem:[%s1989 + $0x150] sm:$0xff]
        %v2033 = vld [vmem:[%s1989 + $0x158] sm:$0xff]
        %v2034 = vld [vmem:[%s1989 + $0x160] sm:$0xff]
        %v2035 = vld [vmem:[%s1989 + $0x168] sm:$0xff]
        %v2036 = vld [vmem:[%s1989 + $0x170] sm:$0xff]
        %v2037 = vld [vmem:[%s1989 + $0x178] sm:$0xff]
        %v2038 = vld [vmem:[%s1989 + $0x180] sm:$0xff]
        %v2039 = vld [vmem:[%s1989 + $0x188] sm:$0xff]
        %v2040 = vld [vmem:[%s1989 + $0x190] sm:$0xff]
        %v2041 = vld [vmem:[%s1989 + $0x198] sm:$0xff]
        %v2042 = vld [vmem:[%s1989 + $0x1a0] sm:$0xff]
        %v2043 = vld [vmem:[%s1989 + $0x1a8] sm:$0xff]
        %v2044 = vld [vmem:[%s1989 + $0x1b0] sm:$0xff]
        %v2045 = vld [vmem:[%s1989 + $0x1b8] sm:$0xff]
        %v2046 = vld [vmem:[%s1989 + $0x1c0] sm:$0xff]
        %v2047 = vld [vmem:[%s1989 + $0x1c8] sm:$0xff]
        %v2048 = vld [vmem:[%s1989 + $0x1d0] sm:$0xff]
        %v2049 = vld [vmem:[%s1989 + $0x1d8] sm:$0xff]
        %v2050 = vld [vmem:[%s1989 + $0x1e0] sm:$0xff]
        %v2051 = vld [vmem:[%s1989 + $0x1e8] sm:$0xff]
        %v2052 = vld [vmem:[%s1989 + $0x1f0] sm:$0xff]
        %v2053 = vld [vmem:[%s1989 + $0x1f8] sm:$0xff]
        %v2054 = vld [vmem:[%s1989 + $0x200] sm:$0xff]
        %v2055 = vld [vmem:[%s1989 + $0x208] sm:$0xff]
        %v2056 = vld [vmem:[%s1989 + $0x210] sm:$0xff]
        %v2057 = vld [vmem:[%s1989 + $0x218] sm:$0xff]
        %v2058 = vld [vmem:[%s1989 + $0x220] sm:$0xff]
        %v2059 = vld [vmem:[%s1989 + $0x228] sm:$0xff]
        %v2060 = vld [vmem:[%s1989 + $0x230] sm:$0xff]
        %v2061 = vld [vmem:[%s1989 + $0x238] sm:$0xff]
        %v2062 = vld [vmem:[%s1989 + $0x240] sm:$0xff]
        %v2063 = vld [vmem:[%s1989 + $0x248] sm:$0xff]
        %v2064 = vld [vmem:[%s1989 + $0x250] sm:$0xff]
        %v2065 = vld [vmem:[%s1989 + $0x258] sm:$0xff]
        %v2066 = vld [vmem:[%s1989 + $0x260] sm:$0xff]
        %v2067 = vld [vmem:[%s1989 + $0x268] sm:$0xff]
        %v2068 = vld [vmem:[%s1989 + $0x270] sm:$0xff]
        %v2069 = vld [vmem:[%s1989 + $0x278] sm:$0xff]
        %v2070 = vld [vmem:[%s1989 + $0x280] sm:$0xff]
        %v2071 = vld [vmem:[%s1989 + $0x288] sm:$0xff]
        %v2072 = vld [vmem:[%s1989 + $0x290] sm:$0xff]
        %v2073 = vld [vmem:[%s1989 + $0x298] sm:$0xff]
        %v2074 = vld [vmem:[%s1989 + $0x2a0] sm:$0xff]
        %v2075 = vld [vmem:[%s1989 + $0x2a8] sm:$0xff]
        %v2076 = vld [vmem:[%s1989 + $0x2b0] sm:$0xff]
        %v2077 = vld [vmem:[%s1989 + $0x2b8] sm:$0xff]
        %v2078 = vld [vmem:[%s1989 + $0x2c0] sm:$0xff]
        %v2079 = vld [vmem:[%s1989 + $0x2c8] sm:$0xff]
        %v2080 = vld [vmem:[%s1989 + $0x2d0] sm:$0xff]
        %v2081 = vld [vmem:[%s1989 + $0x2d8] sm:$0xff]
        %v2082 = vld [vmem:[%s1989 + $0x2e0] sm:$0xff]
        %v2083 = vld [vmem:[%s1989 + $0x2e8] sm:$0xff]
        %v2084 = vld [vmem:[%s1989 + $0x2f0] sm:$0xff]
        %v2085 = vld [vmem:[%s1989 + $0x2f8] sm:$0xff]
        %v2086 = vld [vmem:[%s1989 + $0x300] sm:$0xff]
        %v2087 = vld [vmem:[%s1989 + $0x308] sm:$0xff]
        %v2088 = vld [vmem:[%s1989 + $0x310] sm:$0xff]
        %v2089 = vld [vmem:[%s1989 + $0x318] sm:$0xff]
        %v2090 = vld [vmem:[%s1989 + $0x320] sm:$0xff]
        %v2091 = vld [vmem:[%s1989 + $0x328] sm:$0xff]
        %v2092 = vld [vmem:[%s1989 + $0x330] sm:$0xff]
        %v2093 = vld [vmem:[%s1989 + $0x338] sm:$0xff]
        %v2094 = vld [vmem:[%s1989 + $0x340] sm:$0xff]
        %v2095 = vld [vmem:[%s1989 + $0x348] sm:$0xff]
        %v2096 = vld [vmem:[%s1989 + $0x350] sm:$0xff]
        %v2097 = vld [vmem:[%s1989 + $0x358] sm:$0xff]
        %v2098 = vld [vmem:[%s1989 + $0x360] sm:$0xff]
        %v2099 = vld [vmem:[%s1989 + $0x368] sm:$0xff]
        %v2100 = vld [vmem:[%s1989 + $0x370] sm:$0xff]
        %v2101 = vld [vmem:[%s1989 + $0x378] sm:$0xff]
        %v2102 = vld [vmem:[%s1989 + $0x380] sm:$0xff]
        %v2103 = vld [vmem:[%s1989 + $0x388] sm:$0xff]
        %v2104 = vld [vmem:[%s1989 + $0x390] sm:$0xff]
        %v2105 = vld [vmem:[%s1989 + $0x398] sm:$0xff]
        %v2106 = vld [vmem:[%s1989 + $0x3a0] sm:$0xff]
        %v2107 = vld [vmem:[%s1989 + $0x3a8] sm:$0xff]
        %v2108 = vld [vmem:[%s1989 + $0x3b0] sm:$0xff]
        %v2109 = vld [vmem:[%s1989 + $0x3b8] sm:$0xff]
        %v2110 = vld [vmem:[%s1989 + $0x3c0] sm:$0xff]
        %v2111 = vld [vmem:[%s1989 + $0x3c8] sm:$0xff]
        %v2112 = vld [vmem:[%s1989 + $0x3d0] sm:$0xff]
        %v2113 = vld [vmem:[%s1989 + $0x3d8] sm:$0xff]
        %v2114 = vlaneseq
        %v2115 = vshrl.u32 %v2114, 7
        %v2116 = vsub.s32 1, %v2115
        %v2117 = vrot.slane %v268, %v2116
        %v2118 = vlaneseq
        %v2119 = vshrl.u32 %v2118, 7
        %v2120 = vsub.s32 5, %v2119
        %v2121 = vrot.slane %v268, %v2120
        %v2124 = vlaneseq
        %v2125 = vshrl.u32 %v2124, 7
        %v2126 = vsub.s32 1, %v2125
        %v2127 = vrot.slane %v2117, %v2126
        %v2128 = vlaneseq
        %v2129 = vshrl.u32 %v2128, 7
        %v2130 = vsub.s32 1, %v2129
        %v2131 = vrot.slane %v2121, %v2130
        %v2132 = vmul.f32 %v422, %v2127
        %v2133 = vmul.f32 %v423, %v2131
        %v2134 = vmul.f32 %v424, %v2127
        %v2135 = vmul.f32 %v425, %v2131
        %v2136 = vmul.f32 %v426, %v2127
        %v2137 = vmul.f32 %v427, %v2131
        %v2138 = vmul.f32 %v428, %v2127
        %v2139 = vmul.f32 %v429, %v2131
        %v2140 = vmul.f32 %v430, %v2127
        %v2141 = vmul.f32 %v431, %v2131
        %v2142 = vmul.f32 %v432, %v2127
        %v2143 = vmul.f32 %v433, %v2131
        %v2144 = vmul.f32 %v434, %v2127
        %v2145 = vmul.f32 %v435, %v2131
        %v2146 = vmul.f32 %v436, %v2127
        %v2147 = vmul.f32 %v437, %v2131
        %v2148 = vmul.f32 %v438, %v2127
        %v2149 = vmul.f32 %v439, %v2131
        %v2150 = vmul.f32 %v440, %v2127
        %v2151 = vmul.f32 %v441, %v2131
        %v2152 = vmul.f32 %v442, %v2127
        %v2153 = vmul.f32 %v443, %v2131
        %v2154 = vmul.f32 %v444, %v2127
        %v2155 = vmul.f32 %v445, %v2131
        %v2156 = vmul.f32 %v446, %v2127
        %v2157 = vmul.f32 %v447, %v2131
        %v2158 = vmul.f32 %v448, %v2127
        %v2159 = vmul.f32 %v449, %v2131
        %v2160 = vmul.f32 %v450, %v2127
        %v2161 = vmul.f32 %v451, %v2131
        %v2162 = vmul.f32 %v452, %v2127
        %v2163 = vmul.f32 %v453, %v2131
        %v2164 = vmul.f32 %v454, %v2127
        %v2165 = vmul.f32 %v455, %v2131
        %v2166 = vmul.f32 %v456, %v2127
        %v2167 = vmul.f32 %v457, %v2131
        %v2168 = vmul.f32 %v458, %v2127
        %v2169 = vmul.f32 %v459, %v2131
        %v2170 = vmul.f32 %v460, %v2127
        %v2171 = vmul.f32 %v461, %v2131
        %v2172 = vmul.f32 %v462, %v2127
        %v2173 = vmul.f32 %v463, %v2131
        %v2174 = vmul.f32 %v464, %v2127
        %v2175 = vmul.f32 %v465, %v2131
        %v2176 = vmul.f32 %v466, %v2127
        %v2177 = vmul.f32 %v467, %v2131
        %v2178 = vmul.f32 %v468, %v2127
        %v2179 = vmul.f32 %v469, %v2131
        %v2180 = vmul.f32 %v470, %v2127
        %v2181 = vmul.f32 %v471, %v2131
        %v2182 = vmul.f32 %v472, %v2127
        %v2183 = vmul.f32 %v473, %v2131
        %v2184 = vmul.f32 %v474, %v2127
        %v2185 = vmul.f32 %v475, %v2131
        %v2186 = vmul.f32 %v476, %v2127
        %v2187 = vmul.f32 %v477, %v2131
        %v2188 = vmul.f32 %v478, %v2127
        %v2189 = vmul.f32 %v479, %v2131
        %v2190 = vmul.f32 %v480, %v2127
        %v2191 = vmul.f32 %v481, %v2131
        %v2192 = vmul.f32 %v482, %v2127
        %v2193 = vmul.f32 %v483, %v2131
        %v2194 = vmul.f32 %v484, %v2127
        %v2195 = vmul.f32 %v485, %v2131
        %v2196 = vmul.f32 %v486, %v2127
        %v2197 = vmul.f32 %v487, %v2131
        %v2198 = vmul.f32 %v488, %v2127
        %v2199 = vmul.f32 %v489, %v2131
        %v2200 = vmul.f32 %v490, %v2127
        %v2201 = vmul.f32 %v491, %v2131
        %v2202 = vmul.f32 %v492, %v2127
        %v2203 = vmul.f32 %v493, %v2131
        %v2204 = vmul.f32 %v494, %v2127
        %v2205 = vmul.f32 %v495, %v2131
        %v2206 = vmul.f32 %v496, %v2127
        %v2207 = vmul.f32 %v497, %v2131
        %v2208 = vmul.f32 %v498, %v2127
        %v2209 = vmul.f32 %v499, %v2131
        %v2210 = vmul.f32 %v500, %v2127
        %v2211 = vmul.f32 %v501, %v2131
        %v2212 = vmul.f32 %v502, %v2127
        %v2213 = vmul.f32 %v503, %v2131
        %v2214 = vmul.f32 %v504, %v2127
        %v2215 = vmul.f32 %v505, %v2131
        %v2216 = vmul.f32 %v506, %v2127
        %v2217 = vmul.f32 %v507, %v2131
        %v2218 = vmul.f32 %v508, %v2127
        %v2219 = vmul.f32 %v509, %v2131
        %v2220 = vmul.f32 %v510, %v2127
        %v2221 = vmul.f32 %v511, %v2131
        %v2222 = vmul.f32 %v512, %v2127
        %v2223 = vmul.f32 %v513, %v2131
        %v2224 = vmul.f32 %v514, %v2127
        %v2225 = vmul.f32 %v515, %v2131
        %v2226 = vmul.f32 %v516, %v2127
        %v2227 = vmul.f32 %v517, %v2131
        %v2228 = vmul.f32 %v518, %v2127
        %v2229 = vmul.f32 %v519, %v2131
        %v2230 = vmul.f32 %v520, %v2127
        %v2231 = vmul.f32 %v521, %v2131
        %v2232 = vmul.f32 %v522, %v2127
        %v2233 = vmul.f32 %v523, %v2131
        %v2234 = vmul.f32 %v524, %v2127
        %v2235 = vmul.f32 %v525, %v2131
        %v2236 = vmul.f32 %v526, %v2127
        %v2237 = vmul.f32 %v527, %v2131
        %v2238 = vmul.f32 %v528, %v2127
        %v2239 = vmul.f32 %v529, %v2131
        %v2240 = vmul.f32 %v530, %v2127
        %v2241 = vmul.f32 %v531, %v2131
        %v2242 = vmul.f32 %v532, %v2127
        %v2243 = vmul.f32 %v533, %v2131
        %v2244 = vmul.f32 %v534, %v2127
        %v2245 = vmul.f32 %v535, %v2131
        %v2246 = vmul.f32 %v536, %v2127
        %v2247 = vmul.f32 %v537, %v2131
        %v2248 = vmul.f32 %v538, %v2127
        %v2249 = vmul.f32 %v539, %v2131
        %v2250 = vmul.f32 %v540, %v2127
        %v2251 = vmul.f32 %v541, %v2131
        %v2252 = vmul.f32 %v542, %v2127
        %v2253 = vmul.f32 %v543, %v2131
        %v2254 = vmul.f32 %v544, %v2127
        %v2255 = vmul.f32 %v545, %v2131
        %v2256 = vmul.f32 %v889, %v306
        %v2257 = vmul.f32 %v890, %v307
        %v2258 = vmul.f32 %v825, %v308
        %v2259 = vmul.f32 %v826, %v309
        %v2260 = vmul.f32 %v891, %v306
        %v2261 = vmul.f32 %v892, %v307
        %v2262 = vmul.f32 %v827, %v308
        %v2263 = vmul.f32 %v828, %v309
        %v2264 = vmul.f32 %v893, %v306
        %v2265 = vmul.f32 %v894, %v307
        %v2266 = vmul.f32 %v829, %v308
        %v2267 = vmul.f32 %v830, %v309
        %v2268 = vmul.f32 %v895, %v306
        %v2269 = vmul.f32 %v896, %v307
        %v2270 = vmul.f32 %v831, %v308
        %v2271 = vmul.f32 %v832, %v309
        %v2272 = vmul.f32 %v897, %v306
        %v2273 = vmul.f32 %v898, %v307
        %v2274 = vmul.f32 %v833, %v308
        %v2275 = vmul.f32 %v834, %v309
        %v2276 = vmul.f32 %v899, %v306
        %v2277 = vmul.f32 %v900, %v307
        %v2278 = vmul.f32 %v835, %v308
        %v2279 = vmul.f32 %v836, %v309
        %v2280 = vmul.f32 %v901, %v306
        %v2281 = vmul.f32 %v902, %v307
        %v2282 = vmul.f32 %v837, %v308
        %v2283 = vmul.f32 %v838, %v309
        %v2284 = vmul.f32 %v903, %v306
        %v2285 = vmul.f32 %v904, %v307
        %v2286 = vmul.f32 %v839, %v308
        %v2287 = vmul.f32 %v840, %v309
        %v2288 = vmul.f32 %v905, %v306
        %v2289 = vmul.f32 %v906, %v307
        %v2290 = vmul.f32 %v841, %v308
        %v2291 = vmul.f32 %v842, %v309
        %v2292 = vmul.f32 %v907, %v306
        %v2293 = vmul.f32 %v908, %v307
        %v2294 = vmul.f32 %v843, %v308
        %v2295 = vmul.f32 %v844, %v309
        %v2296 = vmul.f32 %v909, %v306
        %v2297 = vmul.f32 %v910, %v307
        %v2298 = vmul.f32 %v845, %v308
        %v2299 = vmul.f32 %v846, %v309
        %v2300 = vmul.f32 %v911, %v306
        %v2301 = vmul.f32 %v912, %v307
        %v2302 = vmul.f32 %v847, %v308
        %v2303 = vmul.f32 %v848, %v309
        %v2304 = vmul.f32 %v913, %v306
        %v2305 = vmul.f32 %v914, %v307
        %v2306 = vmul.f32 %v849, %v308
        %v2307 = vmul.f32 %v850, %v309
        %v2308 = vmul.f32 %v915, %v306
        %v2309 = vmul.f32 %v916, %v307
        %v2310 = vmul.f32 %v851, %v308
        %v2311 = vmul.f32 %v852, %v309
        %v2312 = vmul.f32 %v917, %v306
        %v2313 = vmul.f32 %v918, %v307
        %v2314 = vmul.f32 %v853, %v308
        %v2315 = vmul.f32 %v854, %v309
        %v2316 = vmul.f32 %v919, %v306
        %v2317 = vmul.f32 %v920, %v307
        %v2318 = vmul.f32 %v855, %v308
        %v2319 = vmul.f32 %v856, %v309
        %v2320 = vmul.f32 %v921, %v306
        %v2321 = vmul.f32 %v922, %v307
        %v2322 = vmul.f32 %v857, %v308
        %v2323 = vmul.f32 %v858, %v309
        %v2324 = vmul.f32 %v923, %v306
        %v2325 = vmul.f32 %v924, %v307
        %v2326 = vmul.f32 %v859, %v308
        %v2327 = vmul.f32 %v860, %v309
        %v2328 = vmul.f32 %v925, %v306
        %v2329 = vmul.f32 %v926, %v307
        %v2330 = vmul.f32 %v861, %v308
        %v2331 = vmul.f32 %v862, %v309
        %v2332 = vmul.f32 %v927, %v306
        %v2333 = vmul.f32 %v928, %v307
        %v2334 = vmul.f32 %v863, %v308
        %v2335 = vmul.f32 %v864, %v309
        %v2336 = vmul.f32 %v929, %v306
        %v2337 = vmul.f32 %v930, %v307
        %v2338 = vmul.f32 %v865, %v308
        %v2339 = vmul.f32 %v866, %v309
        %v2340 = vmul.f32 %v931, %v306
        %v2341 = vmul.f32 %v932, %v307
        %v2342 = vmul.f32 %v867, %v308
        %v2343 = vmul.f32 %v868, %v309
        %v2344 = vmul.f32 %v933, %v306
        %v2345 = vmul.f32 %v934, %v307
        %v2346 = vmul.f32 %v869, %v308
        %v2347 = vmul.f32 %v870, %v309
        %v2348 = vmul.f32 %v935, %v306
        %v2349 = vmul.f32 %v936, %v307
        %v2350 = vmul.f32 %v871, %v308
        %v2351 = vmul.f32 %v872, %v309
        %v2352 = vmul.f32 %v937, %v306
        %v2353 = vmul.f32 %v938, %v307
        %v2354 = vmul.f32 %v873, %v308
        %v2355 = vmul.f32 %v874, %v309
        %v2356 = vmul.f32 %v939, %v306
        %v2357 = vmul.f32 %v940, %v307
        %v2358 = vmul.f32 %v875, %v308
        %v2359 = vmul.f32 %v876, %v309
        %v2360 = vmul.f32 %v941, %v306
        %v2361 = vmul.f32 %v942, %v307
        %v2362 = vmul.f32 %v877, %v308
        %v2363 = vmul.f32 %v878, %v309
        %v2364 = vmul.f32 %v943, %v306
        %v2365 = vmul.f32 %v944, %v307
        %v2366 = vmul.f32 %v879, %v308
        %v2367 = vmul.f32 %v880, %v309
        %v2368 = vmul.f32 %v945, %v306
        %v2369 = vmul.f32 %v946, %v307
        %v2370 = vmul.f32 %v881, %v308
        %v2371 = vmul.f32 %v882, %v309
        %v2372 = vmul.f32 %v947, %v306
        %v2373 = vmul.f32 %v948, %v307
        %v2374 = vmul.f32 %v883, %v308
        %v2375 = vmul.f32 %v884, %v309
        %v2376 = vmul.f32 %v949, %v306
        %v2377 = vmul.f32 %v950, %v307
        %v2378 = vmul.f32 %v885, %v308
        %v2379 = vmul.f32 %v886, %v309
        %v2380 = vadd.f32 %v2132, %v2256
        %v2381 = vadd.f32 %v2133, %v2257
        %v2382 = vadd.f32 %v2134, %v2258
        %v2383 = vadd.f32 %v2135, %v2259
        %v2384 = vadd.f32 %v2136, %v2260
        %v2385 = vadd.f32 %v2137, %v2261
        %v2386 = vadd.f32 %v2138, %v2262
        %v2387 = vadd.f32 %v2139, %v2263
        %v2388 = vadd.f32 %v2140, %v2264
        %v2389 = vadd.f32 %v2141, %v2265
        %v2390 = vadd.f32 %v2142, %v2266
        %v2391 = vadd.f32 %v2143, %v2267
        %v2392 = vadd.f32 %v2144, %v2268
        %v2393 = vadd.f32 %v2145, %v2269
        %v2394 = vadd.f32 %v2146, %v2270
        %v2395 = vadd.f32 %v2147, %v2271
        %v2396 = vadd.f32 %v2148, %v2272
        %v2397 = vadd.f32 %v2149, %v2273
        %v2398 = vadd.f32 %v2150, %v2274
        %v2399 = vadd.f32 %v2151, %v2275
        %v2400 = vadd.f32 %v2152, %v2276
        %v2401 = vadd.f32 %v2153, %v2277
        %v2402 = vadd.f32 %v2154, %v2278
        %v2403 = vadd.f32 %v2155, %v2279
        %v2404 = vadd.f32 %v2156, %v2280
        %v2405 = vadd.f32 %v2157, %v2281
        %v2406 = vadd.f32 %v2158, %v2282
        %v2407 = vadd.f32 %v2159, %v2283
        %v2408 = vadd.f32 %v2160, %v2284
        %v2409 = vadd.f32 %v2161, %v2285
        %v2410 = vadd.f32 %v2162, %v2286
        %v2411 = vadd.f32 %v2163, %v2287
        %v2412 = vadd.f32 %v2164, %v2288
        %v2413 = vadd.f32 %v2165, %v2289
        %v2414 = vadd.f32 %v2166, %v2290
        %v2415 = vadd.f32 %v2167, %v2291
        %v2416 = vadd.f32 %v2168, %v2292
        %v2417 = vadd.f32 %v2169, %v2293
        %v2418 = vadd.f32 %v2170, %v2294
        %v2419 = vadd.f32 %v2171, %v2295
        %v2420 = vadd.f32 %v2172, %v2296
        %v2421 = vadd.f32 %v2173, %v2297
        %v2422 = vadd.f32 %v2174, %v2298
        %v2423 = vadd.f32 %v2175, %v2299
        %v2424 = vadd.f32 %v2176, %v2300
        %v2425 = vadd.f32 %v2177, %v2301
        %v2426 = vadd.f32 %v2178, %v2302
        %v2427 = vadd.f32 %v2179, %v2303
        %v2428 = vadd.f32 %v2180, %v2304
        %v2429 = vadd.f32 %v2181, %v2305
        %v2430 = vadd.f32 %v2182, %v2306
        %v2431 = vadd.f32 %v2183, %v2307
        %v2432 = vadd.f32 %v2184, %v2308
        %v2433 = vadd.f32 %v2185, %v2309
        %v2434 = vadd.f32 %v2186, %v2310
        %v2435 = vadd.f32 %v2187, %v2311
        %v2436 = vadd.f32 %v2188, %v2312
        %v2437 = vadd.f32 %v2189, %v2313
        %v2438 = vadd.f32 %v2190, %v2314
        %v2439 = vadd.f32 %v2191, %v2315
        %v2440 = vadd.f32 %v2192, %v2316
        %v2441 = vadd.f32 %v2193, %v2317
        %v2442 = vadd.f32 %v2194, %v2318
        %v2443 = vadd.f32 %v2195, %v2319
        %v2444 = vadd.f32 %v2196, %v2320
        %v2445 = vadd.f32 %v2197, %v2321
        %v2446 = vadd.f32 %v2198, %v2322
        %v2447 = vadd.f32 %v2199, %v2323
        %v2448 = vadd.f32 %v2200, %v2324
        %v2449 = vadd.f32 %v2201, %v2325
        %v2450 = vadd.f32 %v2202, %v2326
        %v2451 = vadd.f32 %v2203, %v2327
        %v2452 = vadd.f32 %v2204, %v2328
        %v2453 = vadd.f32 %v2205, %v2329
        %v2454 = vadd.f32 %v2206, %v2330
        %v2455 = vadd.f32 %v2207, %v2331
        %v2456 = vadd.f32 %v2208, %v2332
        %v2457 = vadd.f32 %v2209, %v2333
        %v2458 = vadd.f32 %v2210, %v2334
        %v2459 = vadd.f32 %v2211, %v2335
        %v2460 = vadd.f32 %v2212, %v2336
        %v2461 = vadd.f32 %v2213, %v2337
        %v2462 = vadd.f32 %v2214, %v2338
        %v2463 = vadd.f32 %v2215, %v2339
        %v2464 = vadd.f32 %v2216, %v2340
        %v2465 = vadd.f32 %v2217, %v2341
        %v2466 = vadd.f32 %v2218, %v2342
        %v2467 = vadd.f32 %v2219, %v2343
        %v2468 = vadd.f32 %v2220, %v2344
        %v2469 = vadd.f32 %v2221, %v2345
        %v2470 = vadd.f32 %v2222, %v2346
        %v2471 = vadd.f32 %v2223, %v2347
        %v2472 = vadd.f32 %v2224, %v2348
        %v2473 = vadd.f32 %v2225, %v2349
        %v2474 = vadd.f32 %v2226, %v2350
        %v2475 = vadd.f32 %v2227, %v2351
        %v2476 = vadd.f32 %v2228, %v2352
        %v2477 = vadd.f32 %v2229, %v2353
        %v2478 = vadd.f32 %v2230, %v2354
        %v2479 = vadd.f32 %v2231, %v2355
        %v2480 = vadd.f32 %v2232, %v2356
        %v2481 = vadd.f32 %v2233, %v2357
        %v2482 = vadd.f32 %v2234, %v2358
        %v2483 = vadd.f32 %v2235, %v2359
        %v2484 = vadd.f32 %v2236, %v2360
        %v2485 = vadd.f32 %v2237, %v2361
        %v2486 = vadd.f32 %v2238, %v2362
        %v2487 = vadd.f32 %v2239, %v2363
        %v2488 = vadd.f32 %v2240, %v2364
        %v2489 = vadd.f32 %v2241, %v2365
        %v2490 = vadd.f32 %v2242, %v2366
        %v2491 = vadd.f32 %v2243, %v2367
        %v2492 = vadd.f32 %v2244, %v2368
        %v2493 = vadd.f32 %v2245, %v2369
        %v2494 = vadd.f32 %v2246, %v2370
        %v2495 = vadd.f32 %v2247, %v2371
        %v2496 = vadd.f32 %v2248, %v2372
        %v2497 = vadd.f32 %v2249, %v2373
        %v2498 = vadd.f32 %v2250, %v2374
        %v2499 = vadd.f32 %v2251, %v2375
        %v2500 = vadd.f32 %v2252, %v2376
        %v2501 = vadd.f32 %v2253, %v2377
        %v2502 = vadd.f32 %v2254, %v2378
        %v2503 = vadd.f32 %v2255, %v2379
        %v2504 = vmul.f32 %v1338, %v374
        %v2505 = vmul.f32 %v1339, %v375
        %v2506 = vmul.f32 %v1402, %v376
        %v2507 = vmul.f32 %v1403, %v377
        %v2508 = vmul.f32 %v1340, %v374
        %v2509 = vmul.f32 %v1341, %v375
        %v2510 = vmul.f32 %v1404, %v376
        %v2511 = vmul.f32 %v1405, %v377
        %v2512 = vmul.f32 %v1342, %v374
        %v2513 = vmul.f32 %v1343, %v375
        %v2514 = vmul.f32 %v1406, %v376
        %v2515 = vmul.f32 %v1407, %v377
        %v2516 = vmul.f32 %v1344, %v374
        %v2517 = vmul.f32 %v1345, %v375
        %v2518 = vmul.f32 %v1408, %v376
        %v2519 = vmul.f32 %v1409, %v377
        %v2520 = vmul.f32 %v1346, %v374
        %v2521 = vmul.f32 %v1347, %v375
        %v2522 = vmul.f32 %v1410, %v376
        %v2523 = vmul.f32 %v1411, %v377
        %v2524 = vmul.f32 %v1348, %v374
        %v2525 = vmul.f32 %v1349, %v375
        %v2526 = vmul.f32 %v1412, %v376
        %v2527 = vmul.f32 %v1413, %v377
        %v2528 = vmul.f32 %v1350, %v374
        %v2529 = vmul.f32 %v1351, %v375
        %v2530 = vmul.f32 %v1414, %v376
        %v2531 = vmul.f32 %v1415, %v377
        %v2532 = vmul.f32 %v1352, %v374
        %v2533 = vmul.f32 %v1353, %v375
        %v2534 = vmul.f32 %v1416, %v376
        %v2535 = vmul.f32 %v1417, %v377
        %v2536 = vmul.f32 %v1354, %v374
        %v2537 = vmul.f32 %v1355, %v375
        %v2538 = vmul.f32 %v1418, %v376
        %v2539 = vmul.f32 %v1419, %v377
        %v2540 = vmul.f32 %v1356, %v374
        %v2541 = vmul.f32 %v1357, %v375
        %v2542 = vmul.f32 %v1420, %v376
        %v2543 = vmul.f32 %v1421, %v377
        %v2544 = vmul.f32 %v1358, %v374
        %v2545 = vmul.f32 %v1359, %v375
        %v2546 = vmul.f32 %v1422, %v376
        %v2547 = vmul.f32 %v1423, %v377
        %v2548 = vmul.f32 %v1360, %v374
        %v2549 = vmul.f32 %v1361, %v375
        %v2550 = vmul.f32 %v1424, %v376
        %v2551 = vmul.f32 %v1425, %v377
        %v2552 = vmul.f32 %v1362, %v374
        %v2553 = vmul.f32 %v1363, %v375
        %v2554 = vmul.f32 %v1426, %v376
        %v2555 = vmul.f32 %v1427, %v377
        %v2556 = vmul.f32 %v1364, %v374
        %v2557 = vmul.f32 %v1365, %v375
        %v2558 = vmul.f32 %v1428, %v376
        %v2559 = vmul.f32 %v1429, %v377
        %v2560 = vmul.f32 %v1366, %v374
        %v2561 = vmul.f32 %v1367, %v375
        %v2562 = vmul.f32 %v1430, %v376
        %v2563 = vmul.f32 %v1431, %v377
        %v2564 = vmul.f32 %v1368, %v374
        %v2565 = vmul.f32 %v1369, %v375
        %v2566 = vmul.f32 %v1432, %v376
        %v2567 = vmul.f32 %v1433, %v377
        %v2568 = vmul.f32 %v1370, %v374
        %v2569 = vmul.f32 %v1371, %v375
        %v2570 = vmul.f32 %v1434, %v376
        %v2571 = vmul.f32 %v1435, %v377
        %v2572 = vmul.f32 %v1372, %v374
        %v2573 = vmul.f32 %v1373, %v375
        %v2574 = vmul.f32 %v1436, %v376
        %v2575 = vmul.f32 %v1437, %v377
        %v2576 = vmul.f32 %v1374, %v374
        %v2577 = vmul.f32 %v1375, %v375
        %v2578 = vmul.f32 %v1438, %v376
        %v2579 = vmul.f32 %v1439, %v377
        %v2580 = vmul.f32 %v1376, %v374
        %v2581 = vmul.f32 %v1377, %v375
        %v2582 = vmul.f32 %v1440, %v376
        %v2583 = vmul.f32 %v1441, %v377
        %v2584 = vmul.f32 %v1378, %v374
        %v2585 = vmul.f32 %v1379, %v375
        %v2586 = vmul.f32 %v1442, %v376
        %v2587 = vmul.f32 %v1443, %v377
        %v2588 = vmul.f32 %v1380, %v374
        %v2589 = vmul.f32 %v1381, %v375
        %v2590 = vmul.f32 %v1444, %v376
        %v2591 = vmul.f32 %v1445, %v377
        %v2592 = vmul.f32 %v1382, %v374
        %v2593 = vmul.f32 %v1383, %v375
        %v2594 = vmul.f32 %v1446, %v376
        %v2595 = vmul.f32 %v1447, %v377
        %v2596 = vmul.f32 %v1384, %v374
        %v2597 = vmul.f32 %v1385, %v375
        %v2598 = vmul.f32 %v1448, %v376
        %v2599 = vmul.f32 %v1449, %v377
        %v2600 = vmul.f32 %v1386, %v374
        %v2601 = vmul.f32 %v1387, %v375
        %v2602 = vmul.f32 %v1450, %v376
        %v2603 = vmul.f32 %v1451, %v377
        %v2604 = vmul.f32 %v1388, %v374
        %v2605 = vmul.f32 %v1389, %v375
        %v2606 = vmul.f32 %v1452, %v376
        %v2607 = vmul.f32 %v1453, %v377
        %v2608 = vmul.f32 %v1390, %v374
        %v2609 = vmul.f32 %v1391, %v375
        %v2610 = vmul.f32 %v1454, %v376
        %v2611 = vmul.f32 %v1455, %v377
        %v2612 = vmul.f32 %v1392, %v374
        %v2613 = vmul.f32 %v1393, %v375
        %v2614 = vmul.f32 %v1456, %v376
        %v2615 = vmul.f32 %v1457, %v377
        %v2616 = vmul.f32 %v1394, %v374
        %v2617 = vmul.f32 %v1395, %v375
        %v2618 = vmul.f32 %v1458, %v376
        %v2619 = vmul.f32 %v1459, %v377
        %v2620 = vmul.f32 %v1396, %v374
        %v2621 = vmul.f32 %v1397, %v375
        %v2622 = vmul.f32 %v1460, %v376
        %v2623 = vmul.f32 %v1461, %v377
        %v2624 = vmul.f32 %v1398, %v374
        %v2625 = vmul.f32 %v1399, %v375
        %v2626 = vmul.f32 %v1462, %v376
        %v2627 = vmul.f32 %v1463, %v377
        %v2628 = vadd.f32 %v2380, %v2504
        %v2629 = vadd.f32 %v2381, %v2505
        %v2630 = vadd.f32 %v2382, %v2506
        %v2631 = vadd.f32 %v2383, %v2507
        %v2632 = vadd.f32 %v2384, %v2508
        %v2633 = vadd.f32 %v2385, %v2509
        %v2634 = vadd.f32 %v2386, %v2510
        %v2635 = vadd.f32 %v2387, %v2511
        %v2636 = vadd.f32 %v2388, %v2512
        %v2637 = vadd.f32 %v2389, %v2513
        %v2638 = vadd.f32 %v2390, %v2514
        %v2639 = vadd.f32 %v2391, %v2515
        %v2640 = vadd.f32 %v2392, %v2516
        %v2641 = vadd.f32 %v2393, %v2517
        %v2642 = vadd.f32 %v2394, %v2518
        %v2643 = vadd.f32 %v2395, %v2519
        %v2644 = vadd.f32 %v2396, %v2520
        %v2645 = vadd.f32 %v2397, %v2521
        %v2646 = vadd.f32 %v2398, %v2522
        %v2647 = vadd.f32 %v2399, %v2523
        %v2648 = vadd.f32 %v2400, %v2524
        %v2649 = vadd.f32 %v2401, %v2525
        %v2650 = vadd.f32 %v2402, %v2526
        %v2651 = vadd.f32 %v2403, %v2527
        %v2652 = vadd.f32 %v2404, %v2528
        %v2653 = vadd.f32 %v2405, %v2529
        %v2654 = vadd.f32 %v2406, %v2530
        %v2655 = vadd.f32 %v2407, %v2531
        %v2656 = vadd.f32 %v2408, %v2532
        %v2657 = vadd.f32 %v2409, %v2533
        %v2658 = vadd.f32 %v2410, %v2534
        %v2659 = vadd.f32 %v2411, %v2535
        %v2660 = vadd.f32 %v2412, %v2536
        %v2661 = vadd.f32 %v2413, %v2537
        %v2662 = vadd.f32 %v2414, %v2538
        %v2663 = vadd.f32 %v2415, %v2539
        %v2664 = vadd.f32 %v2416, %v2540
        %v2665 = vadd.f32 %v2417, %v2541
        %v2666 = vadd.f32 %v2418, %v2542
        %v2667 = vadd.f32 %v2419, %v2543
        %v2668 = vadd.f32 %v2420, %v2544
        %v2669 = vadd.f32 %v2421, %v2545
        %v2670 = vadd.f32 %v2422, %v2546
        %v2671 = vadd.f32 %v2423, %v2547
        %v2672 = vadd.f32 %v2424, %v2548
        %v2673 = vadd.f32 %v2425, %v2549
        %v2674 = vadd.f32 %v2426, %v2550
        %v2675 = vadd.f32 %v2427, %v2551
        %v2676 = vadd.f32 %v2428, %v2552
        %v2677 = vadd.f32 %v2429, %v2553
        %v2678 = vadd.f32 %v2430, %v2554
        %v2679 = vadd.f32 %v2431, %v2555
        %v2680 = vadd.f32 %v2432, %v2556
        %v2681 = vadd.f32 %v2433, %v2557
        %v2682 = vadd.f32 %v2434, %v2558
        %v2683 = vadd.f32 %v2435, %v2559
        %v2684 = vadd.f32 %v2436, %v2560
        %v2685 = vadd.f32 %v2437, %v2561
        %v2686 = vadd.f32 %v2438, %v2562
        %v2687 = vadd.f32 %v2439, %v2563
        %v2688 = vadd.f32 %v2440, %v2564
        %v2689 = vadd.f32 %v2441, %v2565
        %v2690 = vadd.f32 %v2442, %v2566
        %v2691 = vadd.f32 %v2443, %v2567
        %v2692 = vadd.f32 %v2444, %v2568
        %v2693 = vadd.f32 %v2445, %v2569
        %v2694 = vadd.f32 %v2446, %v2570
        %v2695 = vadd.f32 %v2447, %v2571
        %v2696 = vadd.f32 %v2448, %v2572
        %v2697 = vadd.f32 %v2449, %v2573
        %v2698 = vadd.f32 %v2450, %v2574
        %v2699 = vadd.f32 %v2451, %v2575
        %v2700 = vadd.f32 %v2452, %v2576
        %v2701 = vadd.f32 %v2453, %v2577
        %v2702 = vadd.f32 %v2454, %v2578
        %v2703 = vadd.f32 %v2455, %v2579
        %v2704 = vadd.f32 %v2456, %v2580
        %v2705 = vadd.f32 %v2457, %v2581
        %v2706 = vadd.f32 %v2458, %v2582
        %v2707 = vadd.f32 %v2459, %v2583
        %v2708 = vadd.f32 %v2460, %v2584
        %v2709 = vadd.f32 %v2461, %v2585
        %v2710 = vadd.f32 %v2462, %v2586
        %v2711 = vadd.f32 %v2463, %v2587
        %v2712 = vadd.f32 %v2464, %v2588
        %v2713 = vadd.f32 %v2465, %v2589
        %v2714 = vadd.f32 %v2466, %v2590
        %v2715 = vadd.f32 %v2467, %v2591
        %v2716 = vadd.f32 %v2468, %v2592
        %v2717 = vadd.f32 %v2469, %v2593
        %v2718 = vadd.f32 %v2470, %v2594
        %v2719 = vadd.f32 %v2471, %v2595
        %v2720 = vadd.f32 %v2472, %v2596
        %v2721 = vadd.f32 %v2473, %v2597
        %v2722 = vadd.f32 %v2474, %v2598
        %v2723 = vadd.f32 %v2475, %v2599
        %v2724 = vadd.f32 %v2476, %v2600
        %v2725 = vadd.f32 %v2477, %v2601
        %v2726 = vadd.f32 %v2478, %v2602
        %v2727 = vadd.f32 %v2479, %v2603
        %v2728 = vadd.f32 %v2480, %v2604
        %v2729 = vadd.f32 %v2481, %v2605
        %v2730 = vadd.f32 %v2482, %v2606
        %v2731 = vadd.f32 %v2483, %v2607
        %v2732 = vadd.f32 %v2484, %v2608
        %v2733 = vadd.f32 %v2485, %v2609
        %v2734 = vadd.f32 %v2486, %v2610
        %v2735 = vadd.f32 %v2487, %v2611
        %v2736 = vadd.f32 %v2488, %v2612
        %v2737 = vadd.f32 %v2489, %v2613
        %v2738 = vadd.f32 %v2490, %v2614
        %v2739 = vadd.f32 %v2491, %v2615
        %v2740 = vadd.f32 %v2492, %v2616
        %v2741 = vadd.f32 %v2493, %v2617
        %v2742 = vadd.f32 %v2494, %v2618
        %v2743 = vadd.f32 %v2495, %v2619
        %v2744 = vadd.f32 %v2496, %v2620
        %v2745 = vadd.f32 %v2497, %v2621
        %v2746 = vadd.f32 %v2498, %v2622
        %v2747 = vadd.f32 %v2499, %v2623
        %v2748 = vadd.f32 %v2500, %v2624
        %v2749 = vadd.f32 %v2501, %v2625
        %v2750 = vadd.f32 %v2502, %v2626
        %v2751 = vadd.f32 %v2503, %v2627
        %v2752 = vadd.f32 %v1990, %v2628
        %v2753 = vadd.f32 %v1991, %v2629
        %v2754 = vadd.f32 %v1992, %v2630
        %v2755 = vadd.f32 %v1993, %v2631
        %v2756 = vadd.f32 %v1994, %v2632
        %v2757 = vadd.f32 %v1995, %v2633
        %v2758 = vadd.f32 %v1996, %v2634
        %v2759 = vadd.f32 %v1997, %v2635
        %v2760 = vadd.f32 %v1998, %v2636
        %v2761 = vadd.f32 %v1999, %v2637
        %v2762 = vadd.f32 %v2000, %v2638
        %v2763 = vadd.f32 %v2001, %v2639
        %v2764 = vadd.f32 %v2002, %v2640
        %v2765 = vadd.f32 %v2003, %v2641
        %v2766 = vadd.f32 %v2004, %v2642
        %v2767 = vadd.f32 %v2005, %v2643
        %v2768 = vadd.f32 %v2006, %v2644
        %v2769 = vadd.f32 %v2007, %v2645
        %v2770 = vadd.f32 %v2008, %v2646
        %v2771 = vadd.f32 %v2009, %v2647
        %v2772 = vadd.f32 %v2010, %v2648
        %v2773 = vadd.f32 %v2011, %v2649
        %v2774 = vadd.f32 %v2012, %v2650
        %v2775 = vadd.f32 %v2013, %v2651
        %v2776 = vadd.f32 %v2014, %v2652
        %v2777 = vadd.f32 %v2015, %v2653
        %v2778 = vadd.f32 %v2016, %v2654
        %v2779 = vadd.f32 %v2017, %v2655
        %v2780 = vadd.f32 %v2018, %v2656
        %v2781 = vadd.f32 %v2019, %v2657
        %v2782 = vadd.f32 %v2020, %v2658
        %v2783 = vadd.f32 %v2021, %v2659
        %v2784 = vadd.f32 %v2022, %v2660
        %v2785 = vadd.f32 %v2023, %v2661
        %v2786 = vadd.f32 %v2024, %v2662
        %v2787 = vadd.f32 %v2025, %v2663
        %v2788 = vadd.f32 %v2026, %v2664
        %v2789 = vadd.f32 %v2027, %v2665
        %v2790 = vadd.f32 %v2028, %v2666
        %v2791 = vadd.f32 %v2029, %v2667
        %v2792 = vadd.f32 %v2030, %v2668
        %v2793 = vadd.f32 %v2031, %v2669
        %v2794 = vadd.f32 %v2032, %v2670
        %v2795 = vadd.f32 %v2033, %v2671
        %v2796 = vadd.f32 %v2034, %v2672
        %v2797 = vadd.f32 %v2035, %v2673
        %v2798 = vadd.f32 %v2036, %v2674
        %v2799 = vadd.f32 %v2037, %v2675
        %v2800 = vadd.f32 %v2038, %v2676
        %v2801 = vadd.f32 %v2039, %v2677
        %v2802 = vadd.f32 %v2040, %v2678
        %v2803 = vadd.f32 %v2041, %v2679
        %v2804 = vadd.f32 %v2042, %v2680
        %v2805 = vadd.f32 %v2043, %v2681
        %v2806 = vadd.f32 %v2044, %v2682
        %v2807 = vadd.f32 %v2045, %v2683
        %v2808 = vadd.f32 %v2046, %v2684
        %v2809 = vadd.f32 %v2047, %v2685
        %v2810 = vadd.f32 %v2048, %v2686
        %v2811 = vadd.f32 %v2049, %v2687
        %v2812 = vadd.f32 %v2050, %v2688
        %v2813 = vadd.f32 %v2051, %v2689
        %v2814 = vadd.f32 %v2052, %v2690
        %v2815 = vadd.f32 %v2053, %v2691
        %v2816 = vadd.f32 %v2054, %v2692
        %v2817 = vadd.f32 %v2055, %v2693
        %v2818 = vadd.f32 %v2056, %v2694
        %v2819 = vadd.f32 %v2057, %v2695
        %v2820 = vadd.f32 %v2058, %v2696
        %v2821 = vadd.f32 %v2059, %v2697
        %v2822 = vadd.f32 %v2060, %v2698
        %v2823 = vadd.f32 %v2061, %v2699
        %v2824 = vadd.f32 %v2062, %v2700
        %v2825 = vadd.f32 %v2063, %v2701
        %v2826 = vadd.f32 %v2064, %v2702
        %v2827 = vadd.f32 %v2065, %v2703
        %v2828 = vadd.f32 %v2066, %v2704
        %v2829 = vadd.f32 %v2067, %v2705
        %v2830 = vadd.f32 %v2068, %v2706
        %v2831 = vadd.f32 %v2069, %v2707
        %v2832 = vadd.f32 %v2070, %v2708
        %v2833 = vadd.f32 %v2071, %v2709
        %v2834 = vadd.f32 %v2072, %v2710
        %v2835 = vadd.f32 %v2073, %v2711
        %v2836 = vadd.f32 %v2074, %v2712
        %v2837 = vadd.f32 %v2075, %v2713
        %v2838 = vadd.f32 %v2076, %v2714
        %v2839 = vadd.f32 %v2077, %v2715
        %v2840 = vadd.f32 %v2078, %v2716
        %v2841 = vadd.f32 %v2079, %v2717
        %v2842 = vadd.f32 %v2080, %v2718
        %v2843 = vadd.f32 %v2081, %v2719
        %v2844 = vadd.f32 %v2082, %v2720
        %v2845 = vadd.f32 %v2083, %v2721
        %v2846 = vadd.f32 %v2084, %v2722
        %v2847 = vadd.f32 %v2085, %v2723
        %v2848 = vadd.f32 %v2086, %v2724
        %v2849 = vadd.f32 %v2087, %v2725
        %v2850 = vadd.f32 %v2088, %v2726
        %v2851 = vadd.f32 %v2089, %v2727
        %v2852 = vadd.f32 %v2090, %v2728
        %v2853 = vadd.f32 %v2091, %v2729
        %v2854 = vadd.f32 %v2092, %v2730
        %v2855 = vadd.f32 %v2093, %v2731
        %v2856 = vadd.f32 %v2094, %v2732
        %v2857 = vadd.f32 %v2095, %v2733
        %v2858 = vadd.f32 %v2096, %v2734
        %v2859 = vadd.f32 %v2097, %v2735
        %v2860 = vadd.f32 %v2098, %v2736
        %v2861 = vadd.f32 %v2099, %v2737
        %v2862 = vadd.f32 %v2100, %v2738
        %v2863 = vadd.f32 %v2101, %v2739
        %v2864 = vadd.f32 %v2102, %v2740
        %v2865 = vadd.f32 %v2103, %v2741
        %v2866 = vadd.f32 %v2104, %v2742
        %v2867 = vadd.f32 %v2105, %v2743
        %v2868 = vadd.f32 %v2106, %v2744
        %v2869 = vadd.f32 %v2107, %v2745
        %v2870 = vadd.f32 %v2108, %v2746
        %v2871 = vadd.f32 %v2109, %v2747
        %v2872 = vadd.f32 %v2110, %v2748
        %v2873 = vadd.f32 %v2111, %v2749
        %v2874 = vadd.f32 %v2112, %v2750
        %v2875 = vadd.f32 %v2113, %v2751
        %2876 = vst [vmem:[%s1989] sm:$0xff] %v2752
        %2877 = vst [vmem:[%s1989 + $0x8] sm:$0xff] %v2753
        %2878 = vst [vmem:[%s1989 + $0x10] sm:$0xff] %v2754
        %2879 = vst [vmem:[%s1989 + $0x18] sm:$0xff] %v2755
        %2880 = vst [vmem:[%s1989 + $0x20] sm:$0xff] %v2756
        %2881 = vst [vmem:[%s1989 + $0x28] sm:$0xff] %v2757
        %2882 = vst [vmem:[%s1989 + $0x30] sm:$0xff] %v2758
        %2883 = vst [vmem:[%s1989 + $0x38] sm:$0xff] %v2759
        %2884 = vst [vmem:[%s1989 + $0x40] sm:$0xff] %v2760
        %2885 = vst [vmem:[%s1989 + $0x48] sm:$0xff] %v2761
        %2886 = vst [vmem:[%s1989 + $0x50] sm:$0xff] %v2762
        %2887 = vst [vmem:[%s1989 + $0x58] sm:$0xff] %v2763
        %2888 = vst [vmem:[%s1989 + $0x60] sm:$0xff] %v2764
        %2889 = vst [vmem:[%s1989 + $0x68] sm:$0xff] %v2765
        %2890 = vst [vmem:[%s1989 + $0x70] sm:$0xff] %v2766
        %2891 = vst [vmem:[%s1989 + $0x78] sm:$0xff] %v2767
        %2892 = vst [vmem:[%s1989 + $0x80] sm:$0xff] %v2768
        %2893 = vst [vmem:[%s1989 + $0x88] sm:$0xff] %v2769
        %2894 = vst [vmem:[%s1989 + $0x90] sm:$0xff] %v2770
        %2895 = vst [vmem:[%s1989 + $0x98] sm:$0xff] %v2771
        %2896 = vst [vmem:[%s1989 + $0xa0] sm:$0xff] %v2772
        %2897 = vst [vmem:[%s1989 + $0xa8] sm:$0xff] %v2773
        %2898 = vst [vmem:[%s1989 + $0xb0] sm:$0xff] %v2774
        %2899 = vst [vmem:[%s1989 + $0xb8] sm:$0xff] %v2775
        %2900 = vst [vmem:[%s1989 + $0xc0] sm:$0xff] %v2776
        %2901 = vst [vmem:[%s1989 + $0xc8] sm:$0xff] %v2777
        %2902 = vst [vmem:[%s1989 + $0xd0] sm:$0xff] %v2778
        %2903 = vst [vmem:[%s1989 + $0xd8] sm:$0xff] %v2779
        %2904 = vst [vmem:[%s1989 + $0xe0] sm:$0xff] %v2780
        %2905 = vst [vmem:[%s1989 + $0xe8] sm:$0xff] %v2781
        %2906 = vst [vmem:[%s1989 + $0xf0] sm:$0xff] %v2782
        %2907 = vst [vmem:[%s1989 + $0xf8] sm:$0xff] %v2783
        %2908 = vst [vmem:[%s1989 + $0x100] sm:$0xff] %v2784
        %2909 = vst [vmem:[%s1989 + $0x108] sm:$0xff] %v2785
        %2910 = vst [vmem:[%s1989 + $0x110] sm:$0xff] %v2786
        %2911 = vst [vmem:[%s1989 + $0x118] sm:$0xff] %v2787
        %2912 = vst [vmem:[%s1989 + $0x120] sm:$0xff] %v2788
        %2913 = vst [vmem:[%s1989 + $0x128] sm:$0xff] %v2789
        %2914 = vst [vmem:[%s1989 + $0x130] sm:$0xff] %v2790
        %2915 = vst [vmem:[%s1989 + $0x138] sm:$0xff] %v2791
        %2916 = vst [vmem:[%s1989 + $0x140] sm:$0xff] %v2792
        %2917 = vst [vmem:[%s1989 + $0x148] sm:$0xff] %v2793
        %2918 = vst [vmem:[%s1989 + $0x150] sm:$0xff] %v2794
        %2919 = vst [vmem:[%s1989 + $0x158] sm:$0xff] %v2795
        %2920 = vst [vmem:[%s1989 + $0x160] sm:$0xff] %v2796
        %2921 = vst [vmem:[%s1989 + $0x168] sm:$0xff] %v2797
        %2922 = vst [vmem:[%s1989 + $0x170] sm:$0xff] %v2798
        %2923 = vst [vmem:[%s1989 + $0x178] sm:$0xff] %v2799
        %2924 = vst [vmem:[%s1989 + $0x180] sm:$0xff] %v2800
        %2925 = vst [vmem:[%s1989 + $0x188] sm:$0xff] %v2801
        %2926 = vst [vmem:[%s1989 + $0x190] sm:$0xff] %v2802
        %2927 = vst [vmem:[%s1989 + $0x198] sm:$0xff] %v2803
        %2928 = vst [vmem:[%s1989 + $0x1a0] sm:$0xff] %v2804
        %2929 = vst [vmem:[%s1989 + $0x1a8] sm:$0xff] %v2805
        %2930 = vst [vmem:[%s1989 + $0x1b0] sm:$0xff] %v2806
        %2931 = vst [vmem:[%s1989 + $0x1b8] sm:$0xff] %v2807
        %2932 = vst [vmem:[%s1989 + $0x1c0] sm:$0xff] %v2808
        %2933 = vst [vmem:[%s1989 + $0x1c8] sm:$0xff] %v2809
        %2934 = vst [vmem:[%s1989 + $0x1d0] sm:$0xff] %v2810
        %2935 = vst [vmem:[%s1989 + $0x1d8] sm:$0xff] %v2811
        %2936 = vst [vmem:[%s1989 + $0x1e0] sm:$0xff] %v2812
        %2937 = vst [vmem:[%s1989 + $0x1e8] sm:$0xff] %v2813
        %2938 = vst [vmem:[%s1989 + $0x1f0] sm:$0xff] %v2814
        %2939 = vst [vmem:[%s1989 + $0x1f8] sm:$0xff] %v2815
        %2940 = vst [vmem:[%s1989 + $0x200] sm:$0xff] %v2816
        %2941 = vst [vmem:[%s1989 + $0x208] sm:$0xff] %v2817
        %2942 = vst [vmem:[%s1989 + $0x210] sm:$0xff] %v2818
        %2943 = vst [vmem:[%s1989 + $0x218] sm:$0xff] %v2819
        %2944 = vst [vmem:[%s1989 + $0x220] sm:$0xff] %v2820
        %2945 = vst [vmem:[%s1989 + $0x228] sm:$0xff] %v2821
        %2946 = vst [vmem:[%s1989 + $0x230] sm:$0xff] %v2822
        %2947 = vst [vmem:[%s1989 + $0x238] sm:$0xff] %v2823
        %2948 = vst [vmem:[%s1989 + $0x240] sm:$0xff] %v2824
        %2949 = vst [vmem:[%s1989 + $0x248] sm:$0xff] %v2825
        %2950 = vst [vmem:[%s1989 + $0x250] sm:$0xff] %v2826
        %2951 = vst [vmem:[%s1989 + $0x258] sm:$0xff] %v2827
        %2952 = vst [vmem:[%s1989 + $0x260] sm:$0xff] %v2828
        %2953 = vst [vmem:[%s1989 + $0x268] sm:$0xff] %v2829
        %2954 = vst [vmem:[%s1989 + $0x270] sm:$0xff] %v2830
        %2955 = vst [vmem:[%s1989 + $0x278] sm:$0xff] %v2831
        %2956 = vst [vmem:[%s1989 + $0x280] sm:$0xff] %v2832
        %2957 = vst [vmem:[%s1989 + $0x288] sm:$0xff] %v2833
        %2958 = vst [vmem:[%s1989 + $0x290] sm:$0xff] %v2834
        %2959 = vst [vmem:[%s1989 + $0x298] sm:$0xff] %v2835
        %2960 = vst [vmem:[%s1989 + $0x2a0] sm:$0xff] %v2836
        %2961 = vst [vmem:[%s1989 + $0x2a8] sm:$0xff] %v2837
        %2962 = vst [vmem:[%s1989 + $0x2b0] sm:$0xff] %v2838
        %2963 = vst [vmem:[%s1989 + $0x2b8] sm:$0xff] %v2839
        %2964 = vst [vmem:[%s1989 + $0x2c0] sm:$0xff] %v2840
        %2965 = vst [vmem:[%s1989 + $0x2c8] sm:$0xff] %v2841
        %2966 = vst [vmem:[%s1989 + $0x2d0] sm:$0xff] %v2842
        %2967 = vst [vmem:[%s1989 + $0x2d8] sm:$0xff] %v2843
        %2968 = vst [vmem:[%s1989 + $0x2e0] sm:$0xff] %v2844
        %2969 = vst [vmem:[%s1989 + $0x2e8] sm:$0xff] %v2845
        %2970 = vst [vmem:[%s1989 + $0x2f0] sm:$0xff] %v2846
        %2971 = vst [vmem:[%s1989 + $0x2f8] sm:$0xff] %v2847
        %2972 = vst [vmem:[%s1989 + $0x300] sm:$0xff] %v2848
        %2973 = vst [vmem:[%s1989 + $0x308] sm:$0xff] %v2849
        %2974 = vst [vmem:[%s1989 + $0x310] sm:$0xff] %v2850
        %2975 = vst [vmem:[%s1989 + $0x318] sm:$0xff] %v2851
        %2976 = vst [vmem:[%s1989 + $0x320] sm:$0xff] %v2852
        %2977 = vst [vmem:[%s1989 + $0x328] sm:$0xff] %v2853
        %2978 = vst [vmem:[%s1989 + $0x330] sm:$0xff] %v2854
        %2979 = vst [vmem:[%s1989 + $0x338] sm:$0xff] %v2855
        %2980 = vst [vmem:[%s1989 + $0x340] sm:$0xff] %v2856
        %2981 = vst [vmem:[%s1989 + $0x348] sm:$0xff] %v2857
        %2982 = vst [vmem:[%s1989 + $0x350] sm:$0xff] %v2858
        %2983 = vst [vmem:[%s1989 + $0x358] sm:$0xff] %v2859
        %2984 = vst [vmem:[%s1989 + $0x360] sm:$0xff] %v2860
        %2985 = vst [vmem:[%s1989 + $0x368] sm:$0xff] %v2861
        %2986 = vst [vmem:[%s1989 + $0x370] sm:$0xff] %v2862
        %2987 = vst [vmem:[%s1989 + $0x378] sm:$0xff] %v2863
        %2988 = vst [vmem:[%s1989 + $0x380] sm:$0xff] %v2864
        %2989 = vst [vmem:[%s1989 + $0x388] sm:$0xff] %v2865
        %2990 = vst [vmem:[%s1989 + $0x390] sm:$0xff] %v2866
        %2991 = vst [vmem:[%s1989 + $0x398] sm:$0xff] %v2867
        %2992 = vst [vmem:[%s1989 + $0x3a0] sm:$0xff] %v2868
        %2993 = vst [vmem:[%s1989 + $0x3a8] sm:$0xff] %v2869
        %2994 = vst [vmem:[%s1989 + $0x3b0] sm:$0xff] %v2870
        %2995 = vst [vmem:[%s1989 + $0x3b8] sm:$0xff] %v2871
        %2996 = vst [vmem:[%s1989 + $0x3c0] sm:$0xff] %v2872
        %2997 = vst [vmem:[%s1989 + $0x3c8] sm:$0xff] %v2873
        %2998 = vst [vmem:[%s1989 + $0x3d0] sm:$0xff] %v2874
        %2999 = vst [vmem:[%s1989 + $0x3d8] sm:$0xff] %v2875
        %v3000 = vld [vmem:[%s257] sm:$0xff]
        %v3001 = vld [vmem:[%s257 + $0x8] sm:$0xff]
        %v3002 = vld [vmem:[%s257 + $0x10] sm:$0xff]
        %v3003 = vld [vmem:[%s257 + $0x18] sm:$0xff]
        %v3004 = vld [vmem:[%s257 + $0x20] sm:$0xff]
        %v3005 = vld [vmem:[%s257 + $0x28] sm:$0xff]
        %v3006 = vld [vmem:[%s257 + $0x30] sm:$0xff]
        %v3007 = vld [vmem:[%s257 + $0x38] sm:$0xff]
        %v3008 = vld [vmem:[%s257 + $0x40] sm:$0xff]
        %v3009 = vld [vmem:[%s257 + $0x48] sm:$0xff]
        %v3010 = vld [vmem:[%s257 + $0x50] sm:$0xff]
        %v3011 = vld [vmem:[%s257 + $0x58] sm:$0xff]
        %v3012 = vld [vmem:[%s257 + $0x60] sm:$0xff]
        %v3013 = vld [vmem:[%s257 + $0x68] sm:$0xff]
        %v3014 = vld [vmem:[%s257 + $0x70] sm:$0xff]
        %v3015 = vld [vmem:[%s257 + $0x78] sm:$0xff]
        %v3016 = vld [vmem:[%s257 + $0x80] sm:$0xff]
        %v3017 = vld [vmem:[%s257 + $0x88] sm:$0xff]
        %v3018 = vld [vmem:[%s257 + $0x90] sm:$0xff]
        %v3019 = vld [vmem:[%s257 + $0x98] sm:$0xff]
        %v3020 = vld [vmem:[%s257 + $0xa0] sm:$0xff]
        %v3021 = vld [vmem:[%s257 + $0xa8] sm:$0xff]
        %v3022 = vld [vmem:[%s257 + $0xb0] sm:$0xff]
        %v3023 = vld [vmem:[%s257 + $0xb8] sm:$0xff]
        %v3024 = vld [vmem:[%s257 + $0xc0] sm:$0xff]
        %v3025 = vld [vmem:[%s257 + $0xc8] sm:$0xff]
        %v3026 = vld [vmem:[%s257 + $0xd0] sm:$0xff]
        %v3027 = vld [vmem:[%s257 + $0xd8] sm:$0xff]
        %v3028 = vld [vmem:[%s257 + $0xe0] sm:$0xff]
        %v3029 = vld [vmem:[%s257 + $0xe8] sm:$0xff]
        %v3030 = vld [vmem:[%s257 + $0xf0] sm:$0xff]
        %v3031 = vld [vmem:[%s257 + $0xf8] sm:$0xff]
        %v3032 = vld [vmem:[%s257 + $0x100] sm:$0xff]
        %v3033 = vld [vmem:[%s257 + $0x108] sm:$0xff]
        %v3034 = vld [vmem:[%s257 + $0x110] sm:$0xff]
        %v3035 = vld [vmem:[%s257 + $0x118] sm:$0xff]
        %v3036 = vld [vmem:[%s257 + $0x120] sm:$0xff]
        %v3037 = vld [vmem:[%s257 + $0x128] sm:$0xff]
        %v3038 = vld [vmem:[%s257 + $0x130] sm:$0xff]
        %v3039 = vld [vmem:[%s257 + $0x138] sm:$0xff]
        %v3040 = vld [vmem:[%s257 + $0x140] sm:$0xff]
        %v3041 = vld [vmem:[%s257 + $0x148] sm:$0xff]
        %v3042 = vld [vmem:[%s257 + $0x150] sm:$0xff]
        %v3043 = vld [vmem:[%s257 + $0x158] sm:$0xff]
        %v3044 = vld [vmem:[%s257 + $0x160] sm:$0xff]
        %v3045 = vld [vmem:[%s257 + $0x168] sm:$0xff]
        %v3046 = vld [vmem:[%s257 + $0x170] sm:$0xff]
        %v3047 = vld [vmem:[%s257 + $0x178] sm:$0xff]
        %v3048 = vld [vmem:[%s257 + $0x180] sm:$0xff]
        %v3049 = vld [vmem:[%s257 + $0x188] sm:$0xff]
        %v3050 = vld [vmem:[%s257 + $0x190] sm:$0xff]
        %v3051 = vld [vmem:[%s257 + $0x198] sm:$0xff]
        %v3052 = vld [vmem:[%s257 + $0x1a0] sm:$0xff]
        %v3053 = vld [vmem:[%s257 + $0x1a8] sm:$0xff]
        %v3054 = vld [vmem:[%s257 + $0x1b0] sm:$0xff]
        %v3055 = vld [vmem:[%s257 + $0x1b8] sm:$0xff]
        %v3056 = vld [vmem:[%s257 + $0x1c0] sm:$0xff]
        %v3057 = vld [vmem:[%s257 + $0x1c8] sm:$0xff]
        %v3058 = vld [vmem:[%s257 + $0x1d0] sm:$0xff]
        %v3059 = vld [vmem:[%s257 + $0x1d8] sm:$0xff]
        %v3060 = vld [vmem:[%s257 + $0x1e0] sm:$0xff]
        %v3061 = vld [vmem:[%s257 + $0x1e8] sm:$0xff]
        %v3062 = vld [vmem:[%s257 + $0x1f0] sm:$0xff]
        %v3063 = vld [vmem:[%s257 + $0x1f8] sm:$0xff]
        %v3064 = vld [vmem:[%s257 + $0x200] sm:$0xff]
        %v3065 = vld [vmem:[%s257 + $0x208] sm:$0xff]
        %v3066 = vld [vmem:[%s257 + $0x210] sm:$0xff]
        %v3067 = vld [vmem:[%s257 + $0x218] sm:$0xff]
        %v3068 = vld [vmem:[%s257 + $0x220] sm:$0xff]
        %v3069 = vld [vmem:[%s257 + $0x228] sm:$0xff]
        %v3070 = vld [vmem:[%s257 + $0x230] sm:$0xff]
        %v3071 = vld [vmem:[%s257 + $0x238] sm:$0xff]
        %v3072 = vld [vmem:[%s257 + $0x240] sm:$0xff]
        %v3073 = vld [vmem:[%s257 + $0x248] sm:$0xff]
        %v3074 = vld [vmem:[%s257 + $0x250] sm:$0xff]
        %v3075 = vld [vmem:[%s257 + $0x258] sm:$0xff]
        %v3076 = vld [vmem:[%s257 + $0x260] sm:$0xff]
        %v3077 = vld [vmem:[%s257 + $0x268] sm:$0xff]
        %v3078 = vld [vmem:[%s257 + $0x270] sm:$0xff]
        %v3079 = vld [vmem:[%s257 + $0x278] sm:$0xff]
        %v3080 = vld [vmem:[%s257 + $0x280] sm:$0xff]
        %v3081 = vld [vmem:[%s257 + $0x288] sm:$0xff]
        %v3082 = vld [vmem:[%s257 + $0x290] sm:$0xff]
        %v3083 = vld [vmem:[%s257 + $0x298] sm:$0xff]
        %v3084 = vld [vmem:[%s257 + $0x2a0] sm:$0xff]
        %v3085 = vld [vmem:[%s257 + $0x2a8] sm:$0xff]
        %v3086 = vld [vmem:[%s257 + $0x2b0] sm:$0xff]
        %v3087 = vld [vmem:[%s257 + $0x2b8] sm:$0xff]
        %v3088 = vld [vmem:[%s257 + $0x2c0] sm:$0xff]
        %v3089 = vld [vmem:[%s257 + $0x2c8] sm:$0xff]
        %v3090 = vld [vmem:[%s257 + $0x2d0] sm:$0xff]
        %v3091 = vld [vmem:[%s257 + $0x2d8] sm:$0xff]
        %v3092 = vld [vmem:[%s257 + $0x2e0] sm:$0xff]
        %v3093 = vld [vmem:[%s257 + $0x2e8] sm:$0xff]
        %v3094 = vld [vmem:[%s257 + $0x2f0] sm:$0xff]
        %v3095 = vld [vmem:[%s257 + $0x2f8] sm:$0xff]
        %v3096 = vld [vmem:[%s257 + $0x300] sm:$0xff]
        %v3097 = vld [vmem:[%s257 + $0x308] sm:$0xff]
        %v3098 = vld [vmem:[%s257 + $0x310] sm:$0xff]
        %v3099 = vld [vmem:[%s257 + $0x318] sm:$0xff]
        %v3100 = vld [vmem:[%s257 + $0x320] sm:$0xff]
        %v3101 = vld [vmem:[%s257 + $0x328] sm:$0xff]
        %v3102 = vld [vmem:[%s257 + $0x330] sm:$0xff]
        %v3103 = vld [vmem:[%s257 + $0x338] sm:$0xff]
        %v3104 = vld [vmem:[%s257 + $0x340] sm:$0xff]
        %v3105 = vld [vmem:[%s257 + $0x348] sm:$0xff]
        %v3106 = vld [vmem:[%s257 + $0x350] sm:$0xff]
        %v3107 = vld [vmem:[%s257 + $0x358] sm:$0xff]
        %v3108 = vld [vmem:[%s257 + $0x360] sm:$0xff]
        %v3109 = vld [vmem:[%s257 + $0x368] sm:$0xff]
        %v3110 = vld [vmem:[%s257 + $0x370] sm:$0xff]
        %v3111 = vld [vmem:[%s257 + $0x378] sm:$0xff]
        %v3112 = vld [vmem:[%s257 + $0x380] sm:$0xff]
        %v3113 = vld [vmem:[%s257 + $0x388] sm:$0xff]
        %v3114 = vld [vmem:[%s257 + $0x390] sm:$0xff]
        %v3115 = vld [vmem:[%s257 + $0x398] sm:$0xff]
        %v3116 = vld [vmem:[%s257 + $0x3a0] sm:$0xff]
        %v3117 = vld [vmem:[%s257 + $0x3a8] sm:$0xff]
        %v3118 = vld [vmem:[%s257 + $0x3b0] sm:$0xff]
        %v3119 = vld [vmem:[%s257 + $0x3b8] sm:$0xff]
        %v3120 = vld [vmem:[%s257 + $0x3c0] sm:$0xff]
        %v3121 = vld [vmem:[%s257 + $0x3c8] sm:$0xff]
        %v3122 = vld [vmem:[%s257 + $0x3d0] sm:$0xff]
        %v3123 = vld [vmem:[%s257 + $0x3d8] sm:$0xff]
        %v3124 = vlaneseq
        %v3125 = vshrl.u32 %v3124, 7
        %v3126 = vsub.s32 1, %v3125
        %v3127 = vrot.slane %v270, %v3126
        %v3128 = vlaneseq
        %v3129 = vshrl.u32 %v3128, 7
        %v3130 = vsub.s32 5, %v3129
        %v3131 = vrot.slane %v270, %v3130
        %v3134 = vlaneseq
        %v3135 = vshrl.u32 %v3134, 7
        %v3136 = vsub.s32 1, %v3135
        %v3137 = vrot.slane %v3127, %v3136
        %v3138 = vlaneseq
        %v3139 = vshrl.u32 %v3138, 7
        %v3140 = vsub.s32 1, %v3139
        %v3141 = vrot.slane %v3131, %v3140
        %v3142 = vmul.f32 %v426, %v3137
        %v3143 = vmul.f32 %v427, %v3141
        %v3144 = vmul.f32 %v428, %v3137
        %v3145 = vmul.f32 %v429, %v3141
        %v3146 = vmul.f32 %v430, %v3137
        %v3147 = vmul.f32 %v431, %v3141
        %v3148 = vmul.f32 %v432, %v3137
        %v3149 = vmul.f32 %v433, %v3141
        %v3150 = vmul.f32 %v434, %v3137
        %v3151 = vmul.f32 %v435, %v3141
        %v3152 = vmul.f32 %v436, %v3137
        %v3153 = vmul.f32 %v437, %v3141
        %v3154 = vmul.f32 %v438, %v3137
        %v3155 = vmul.f32 %v439, %v3141
        %v3156 = vmul.f32 %v440, %v3137
        %v3157 = vmul.f32 %v441, %v3141
        %v3158 = vmul.f32 %v442, %v3137
        %v3159 = vmul.f32 %v443, %v3141
        %v3160 = vmul.f32 %v444, %v3137
        %v3161 = vmul.f32 %v445, %v3141
        %v3162 = vmul.f32 %v446, %v3137
        %v3163 = vmul.f32 %v447, %v3141
        %v3164 = vmul.f32 %v448, %v3137
        %v3165 = vmul.f32 %v449, %v3141
        %v3166 = vmul.f32 %v450, %v3137
        %v3167 = vmul.f32 %v451, %v3141
        %v3168 = vmul.f32 %v452, %v3137
        %v3169 = vmul.f32 %v453, %v3141
        %v3170 = vmul.f32 %v454, %v3137
        %v3171 = vmul.f32 %v455, %v3141
        %v3172 = vmul.f32 %v456, %v3137
        %v3173 = vmul.f32 %v457, %v3141
        %v3174 = vmul.f32 %v458, %v3137
        %v3175 = vmul.f32 %v459, %v3141
        %v3176 = vmul.f32 %v460, %v3137
        %v3177 = vmul.f32 %v461, %v3141
        %v3178 = vmul.f32 %v462, %v3137
        %v3179 = vmul.f32 %v463, %v3141
        %v3180 = vmul.f32 %v464, %v3137
        %v3181 = vmul.f32 %v465, %v3141
        %v3182 = vmul.f32 %v466, %v3137
        %v3183 = vmul.f32 %v467, %v3141
        %v3184 = vmul.f32 %v468, %v3137
        %v3185 = vmul.f32 %v469, %v3141
        %v3186 = vmul.f32 %v470, %v3137
        %v3187 = vmul.f32 %v471, %v3141
        %v3188 = vmul.f32 %v472, %v3137
        %v3189 = vmul.f32 %v473, %v3141
        %v3190 = vmul.f32 %v474, %v3137
        %v3191 = vmul.f32 %v475, %v3141
        %v3192 = vmul.f32 %v476, %v3137
        %v3193 = vmul.f32 %v477, %v3141
        %v3194 = vmul.f32 %v478, %v3137
        %v3195 = vmul.f32 %v479, %v3141
        %v3196 = vmul.f32 %v480, %v3137
        %v3197 = vmul.f32 %v481, %v3141
        %v3198 = vmul.f32 %v482, %v3137
        %v3199 = vmul.f32 %v483, %v3141
        %v3200 = vmul.f32 %v484, %v3137
        %v3201 = vmul.f32 %v485, %v3141
        %v3202 = vmul.f32 %v486, %v3137
        %v3203 = vmul.f32 %v487, %v3141
        %v3204 = vmul.f32 %v488, %v3137
        %v3205 = vmul.f32 %v489, %v3141
        %v3206 = vmul.f32 %v490, %v3137
        %v3207 = vmul.f32 %v491, %v3141
        %v3208 = vmul.f32 %v492, %v3137
        %v3209 = vmul.f32 %v493, %v3141
        %v3210 = vmul.f32 %v494, %v3137
        %v3211 = vmul.f32 %v495, %v3141
        %v3212 = vmul.f32 %v496, %v3137
        %v3213 = vmul.f32 %v497, %v3141
        %v3214 = vmul.f32 %v498, %v3137
        %v3215 = vmul.f32 %v499, %v3141
        %v3216 = vmul.f32 %v500, %v3137
        %v3217 = vmul.f32 %v501, %v3141
        %v3218 = vmul.f32 %v502, %v3137
        %v3219 = vmul.f32 %v503, %v3141
        %v3220 = vmul.f32 %v504, %v3137
        %v3221 = vmul.f32 %v505, %v3141
        %v3222 = vmul.f32 %v506, %v3137
        %v3223 = vmul.f32 %v507, %v3141
        %v3224 = vmul.f32 %v508, %v3137
        %v3225 = vmul.f32 %v509, %v3141
        %v3226 = vmul.f32 %v510, %v3137
        %v3227 = vmul.f32 %v511, %v3141
        %v3228 = vmul.f32 %v512, %v3137
        %v3229 = vmul.f32 %v513, %v3141
        %v3230 = vmul.f32 %v514, %v3137
        %v3231 = vmul.f32 %v515, %v3141
        %v3232 = vmul.f32 %v516, %v3137
        %v3233 = vmul.f32 %v517, %v3141
        %v3234 = vmul.f32 %v518, %v3137
        %v3235 = vmul.f32 %v519, %v3141
        %v3236 = vmul.f32 %v520, %v3137
        %v3237 = vmul.f32 %v521, %v3141
        %v3238 = vmul.f32 %v522, %v3137
        %v3239 = vmul.f32 %v523, %v3141
        %v3240 = vmul.f32 %v524, %v3137
        %v3241 = vmul.f32 %v525, %v3141
        %v3242 = vmul.f32 %v526, %v3137
        %v3243 = vmul.f32 %v527, %v3141
        %v3244 = vmul.f32 %v528, %v3137
        %v3245 = vmul.f32 %v529, %v3141
        %v3246 = vmul.f32 %v530, %v3137
        %v3247 = vmul.f32 %v531, %v3141
        %v3248 = vmul.f32 %v532, %v3137
        %v3249 = vmul.f32 %v533, %v3141
        %v3250 = vmul.f32 %v534, %v3137
        %v3251 = vmul.f32 %v535, %v3141
        %v3252 = vmul.f32 %v536, %v3137
        %v3253 = vmul.f32 %v537, %v3141
        %v3254 = vmul.f32 %v538, %v3137
        %v3255 = vmul.f32 %v539, %v3141
        %v3256 = vmul.f32 %v540, %v3137
        %v3257 = vmul.f32 %v541, %v3141
        %v3258 = vmul.f32 %v542, %v3137
        %v3259 = vmul.f32 %v543, %v3141
        %v3260 = vmul.f32 %v544, %v3137
        %v3261 = vmul.f32 %v545, %v3141
        %v3262 = vmul.f32 %v546, %v3137
        %v3263 = vmul.f32 %v547, %v3141
        %v3264 = vmul.f32 %v548, %v3137
        %v3265 = vmul.f32 %v549, %v3141
        %v3266 = vmul.f32 %v891, %v352
        %v3267 = vmul.f32 %v892, %v353
        %v3268 = vmul.f32 %v827, %v354
        %v3269 = vmul.f32 %v828, %v355
        %v3270 = vmul.f32 %v893, %v352
        %v3271 = vmul.f32 %v894, %v353
        %v3272 = vmul.f32 %v829, %v354
        %v3273 = vmul.f32 %v830, %v355
        %v3274 = vmul.f32 %v895, %v352
        %v3275 = vmul.f32 %v896, %v353
        %v3276 = vmul.f32 %v831, %v354
        %v3277 = vmul.f32 %v832, %v355
        %v3278 = vmul.f32 %v897, %v352
        %v3279 = vmul.f32 %v898, %v353
        %v3280 = vmul.f32 %v833, %v354
        %v3281 = vmul.f32 %v834, %v355
        %v3282 = vmul.f32 %v899, %v352
        %v3283 = vmul.f32 %v900, %v353
        %v3284 = vmul.f32 %v835, %v354
        %v3285 = vmul.f32 %v836, %v355
        %v3286 = vmul.f32 %v901, %v352
        %v3287 = vmul.f32 %v902, %v353
        %v3288 = vmul.f32 %v837, %v354
        %v3289 = vmul.f32 %v838, %v355
        %v3290 = vmul.f32 %v903, %v352
        %v3291 = vmul.f32 %v904, %v353
        %v3292 = vmul.f32 %v839, %v354
        %v3293 = vmul.f32 %v840, %v355
        %v3294 = vmul.f32 %v905, %v352
        %v3295 = vmul.f32 %v906, %v353
        %v3296 = vmul.f32 %v841, %v354
        %v3297 = vmul.f32 %v842, %v355
        %v3298 = vmul.f32 %v907, %v352
        %v3299 = vmul.f32 %v908, %v353
        %v3300 = vmul.f32 %v843, %v354
        %v3301 = vmul.f32 %v844, %v355
        %v3302 = vmul.f32 %v909, %v352
        %v3303 = vmul.f32 %v910, %v353
        %v3304 = vmul.f32 %v845, %v354
        %v3305 = vmul.f32 %v846, %v355
        %v3306 = vmul.f32 %v911, %v352
        %v3307 = vmul.f32 %v912, %v353
        %v3308 = vmul.f32 %v847, %v354
        %v3309 = vmul.f32 %v848, %v355
        %v3310 = vmul.f32 %v913, %v352
        %v3311 = vmul.f32 %v914, %v353
        %v3312 = vmul.f32 %v849, %v354
        %v3313 = vmul.f32 %v850, %v355
        %v3314 = vmul.f32 %v915, %v352
        %v3315 = vmul.f32 %v916, %v353
        %v3316 = vmul.f32 %v851, %v354
        %v3317 = vmul.f32 %v852, %v355
        %v3318 = vmul.f32 %v917, %v352
        %v3319 = vmul.f32 %v918, %v353
        %v3320 = vmul.f32 %v853, %v354
        %v3321 = vmul.f32 %v854, %v355
        %v3322 = vmul.f32 %v919, %v352
        %v3323 = vmul.f32 %v920, %v353
        %v3324 = vmul.f32 %v855, %v354
        %v3325 = vmul.f32 %v856, %v355
        %v3326 = vmul.f32 %v921, %v352
        %v3327 = vmul.f32 %v922, %v353
        %v3328 = vmul.f32 %v857, %v354
        %v3329 = vmul.f32 %v858, %v355
        %v3330 = vmul.f32 %v923, %v352
        %v3331 = vmul.f32 %v924, %v353
        %v3332 = vmul.f32 %v859, %v354
        %v3333 = vmul.f32 %v860, %v355
        %v3334 = vmul.f32 %v925, %v352
        %v3335 = vmul.f32 %v926, %v353
        %v3336 = vmul.f32 %v861, %v354
        %v3337 = vmul.f32 %v862, %v355
        %v3338 = vmul.f32 %v927, %v352
        %v3339 = vmul.f32 %v928, %v353
        %v3340 = vmul.f32 %v863, %v354
        %v3341 = vmul.f32 %v864, %v355
        %v3342 = vmul.f32 %v929, %v352
        %v3343 = vmul.f32 %v930, %v353
        %v3344 = vmul.f32 %v865, %v354
        %v3345 = vmul.f32 %v866, %v355
        %v3346 = vmul.f32 %v931, %v352
        %v3347 = vmul.f32 %v932, %v353
        %v3348 = vmul.f32 %v867, %v354
        %v3349 = vmul.f32 %v868, %v355
        %v3350 = vmul.f32 %v933, %v352
        %v3351 = vmul.f32 %v934, %v353
        %v3352 = vmul.f32 %v869, %v354
        %v3353 = vmul.f32 %v870, %v355
        %v3354 = vmul.f32 %v935, %v352
        %v3355 = vmul.f32 %v936, %v353
        %v3356 = vmul.f32 %v871, %v354
        %v3357 = vmul.f32 %v872, %v355
        %v3358 = vmul.f32 %v937, %v352
        %v3359 = vmul.f32 %v938, %v353
        %v3360 = vmul.f32 %v873, %v354
        %v3361 = vmul.f32 %v874, %v355
        %v3362 = vmul.f32 %v939, %v352
        %v3363 = vmul.f32 %v940, %v353
        %v3364 = vmul.f32 %v875, %v354
        %v3365 = vmul.f32 %v876, %v355
        %v3366 = vmul.f32 %v941, %v352
        %v3367 = vmul.f32 %v942, %v353
        %v3368 = vmul.f32 %v877, %v354
        %v3369 = vmul.f32 %v878, %v355
        %v3370 = vmul.f32 %v943, %v352
        %v3371 = vmul.f32 %v944, %v353
        %v3372 = vmul.f32 %v879, %v354
        %v3373 = vmul.f32 %v880, %v355
        %v3374 = vmul.f32 %v945, %v352
        %v3375 = vmul.f32 %v946, %v353
        %v3376 = vmul.f32 %v881, %v354
        %v3377 = vmul.f32 %v882, %v355
        %v3378 = vmul.f32 %v947, %v352
        %v3379 = vmul.f32 %v948, %v353
        %v3380 = vmul.f32 %v883, %v354
        %v3381 = vmul.f32 %v884, %v355
        %v3382 = vmul.f32 %v949, %v352
        %v3383 = vmul.f32 %v950, %v353
        %v3384 = vmul.f32 %v885, %v354
        %v3385 = vmul.f32 %v886, %v355
        %v3386 = vmul.f32 %v951, %v352
        %v3387 = vmul.f32 %v952, %v353
        %v3388 = vmul.f32 %v887, %v354
        %v3389 = vmul.f32 %v888, %v355
        %v3390 = vadd.f32 %v3142, %v3266
        %v3391 = vadd.f32 %v3143, %v3267
        %v3392 = vadd.f32 %v3144, %v3268
        %v3393 = vadd.f32 %v3145, %v3269
        %v3394 = vadd.f32 %v3146, %v3270
        %v3395 = vadd.f32 %v3147, %v3271
        %v3396 = vadd.f32 %v3148, %v3272
        %v3397 = vadd.f32 %v3149, %v3273
        %v3398 = vadd.f32 %v3150, %v3274
        %v3399 = vadd.f32 %v3151, %v3275
        %v3400 = vadd.f32 %v3152, %v3276
        %v3401 = vadd.f32 %v3153, %v3277
        %v3402 = vadd.f32 %v3154, %v3278
        %v3403 = vadd.f32 %v3155, %v3279
        %v3404 = vadd.f32 %v3156, %v3280
        %v3405 = vadd.f32 %v3157, %v3281
        %v3406 = vadd.f32 %v3158, %v3282
        %v3407 = vadd.f32 %v3159, %v3283
        %v3408 = vadd.f32 %v3160, %v3284
        %v3409 = vadd.f32 %v3161, %v3285
        %v3410 = vadd.f32 %v3162, %v3286
        %v3411 = vadd.f32 %v3163, %v3287
        %v3412 = vadd.f32 %v3164, %v3288
        %v3413 = vadd.f32 %v3165, %v3289
        %v3414 = vadd.f32 %v3166, %v3290
        %v3415 = vadd.f32 %v3167, %v3291
        %v3416 = vadd.f32 %v3168, %v3292
        %v3417 = vadd.f32 %v3169, %v3293
        %v3418 = vadd.f32 %v3170, %v3294
        %v3419 = vadd.f32 %v3171, %v3295
        %v3420 = vadd.f32 %v3172, %v3296
        %v3421 = vadd.f32 %v3173, %v3297
        %v3422 = vadd.f32 %v3174, %v3298
        %v3423 = vadd.f32 %v3175, %v3299
        %v3424 = vadd.f32 %v3176, %v3300
        %v3425 = vadd.f32 %v3177, %v3301
        %v3426 = vadd.f32 %v3178, %v3302
        %v3427 = vadd.f32 %v3179, %v3303
        %v3428 = vadd.f32 %v3180, %v3304
        %v3429 = vadd.f32 %v3181, %v3305
        %v3430 = vadd.f32 %v3182, %v3306
        %v3431 = vadd.f32 %v3183, %v3307
        %v3432 = vadd.f32 %v3184, %v3308
        %v3433 = vadd.f32 %v3185, %v3309
        %v3434 = vadd.f32 %v3186, %v3310
        %v3435 = vadd.f32 %v3187, %v3311
        %v3436 = vadd.f32 %v3188, %v3312
        %v3437 = vadd.f32 %v3189, %v3313
        %v3438 = vadd.f32 %v3190, %v3314
        %v3439 = vadd.f32 %v3191, %v3315
        %v3440 = vadd.f32 %v3192, %v3316
        %v3441 = vadd.f32 %v3193, %v3317
        %v3442 = vadd.f32 %v3194, %v3318
        %v3443 = vadd.f32 %v3195, %v3319
        %v3444 = vadd.f32 %v3196, %v3320
        %v3445 = vadd.f32 %v3197, %v3321
        %v3446 = vadd.f32 %v3198, %v3322
        %v3447 = vadd.f32 %v3199, %v3323
        %v3448 = vadd.f32 %v3200, %v3324
        %v3449 = vadd.f32 %v3201, %v3325
        %v3450 = vadd.f32 %v3202, %v3326
        %v3451 = vadd.f32 %v3203, %v3327
        %v3452 = vadd.f32 %v3204, %v3328
        %v3453 = vadd.f32 %v3205, %v3329
        %v3454 = vadd.f32 %v3206, %v3330
        %v3455 = vadd.f32 %v3207, %v3331
        %v3456 = vadd.f32 %v3208, %v3332
        %v3457 = vadd.f32 %v3209, %v3333
        %v3458 = vadd.f32 %v3210, %v3334
        %v3459 = vadd.f32 %v3211, %v3335
        %v3460 = vadd.f32 %v3212, %v3336
        %v3461 = vadd.f32 %v3213, %v3337
        %v3462 = vadd.f32 %v3214, %v3338
        %v3463 = vadd.f32 %v3215, %v3339
        %v3464 = vadd.f32 %v3216, %v3340
        %v3465 = vadd.f32 %v3217, %v3341
        %v3466 = vadd.f32 %v3218, %v3342
        %v3467 = vadd.f32 %v3219, %v3343
        %v3468 = vadd.f32 %v3220, %v3344
        %v3469 = vadd.f32 %v3221, %v3345
        %v3470 = vadd.f32 %v3222, %v3346
        %v3471 = vadd.f32 %v3223, %v3347
        %v3472 = vadd.f32 %v3224, %v3348
        %v3473 = vadd.f32 %v3225, %v3349
        %v3474 = vadd.f32 %v3226, %v3350
        %v3475 = vadd.f32 %v3227, %v3351
        %v3476 = vadd.f32 %v3228, %v3352
        %v3477 = vadd.f32 %v3229, %v3353
        %v3478 = vadd.f32 %v3230, %v3354
        %v3479 = vadd.f32 %v3231, %v3355
        %v3480 = vadd.f32 %v3232, %v3356
        %v3481 = vadd.f32 %v3233, %v3357
        %v3482 = vadd.f32 %v3234, %v3358
        %v3483 = vadd.f32 %v3235, %v3359
        %v3484 = vadd.f32 %v3236, %v3360
        %v3485 = vadd.f32 %v3237, %v3361
        %v3486 = vadd.f32 %v3238, %v3362
        %v3487 = vadd.f32 %v3239, %v3363
        %v3488 = vadd.f32 %v3240, %v3364
        %v3489 = vadd.f32 %v3241, %v3365
        %v3490 = vadd.f32 %v3242, %v3366
        %v3491 = vadd.f32 %v3243, %v3367
        %v3492 = vadd.f32 %v3244, %v3368
        %v3493 = vadd.f32 %v3245, %v3369
        %v3494 = vadd.f32 %v3246, %v3370
        %v3495 = vadd.f32 %v3247, %v3371
        %v3496 = vadd.f32 %v3248, %v3372
        %v3497 = vadd.f32 %v3249, %v3373
        %v3498 = vadd.f32 %v3250, %v3374
        %v3499 = vadd.f32 %v3251, %v3375
        %v3500 = vadd.f32 %v3252, %v3376
        %v3501 = vadd.f32 %v3253, %v3377
        %v3502 = vadd.f32 %v3254, %v3378
        %v3503 = vadd.f32 %v3255, %v3379
        %v3504 = vadd.f32 %v3256, %v3380
        %v3505 = vadd.f32 %v3257, %v3381
        %v3506 = vadd.f32 %v3258, %v3382
        %v3507 = vadd.f32 %v3259, %v3383
        %v3508 = vadd.f32 %v3260, %v3384
        %v3509 = vadd.f32 %v3261, %v3385
        %v3510 = vadd.f32 %v3262, %v3386
        %v3511 = vadd.f32 %v3263, %v3387
        %v3512 = vadd.f32 %v3264, %v3388
        %v3513 = vadd.f32 %v3265, %v3389
        %v3514 = vmul.f32 %v1340, %v418
        %v3515 = vmul.f32 %v1341, %v419
        %v3516 = vmul.f32 %v1404, %v420
        %v3517 = vmul.f32 %v1405, %v421
        %v3518 = vmul.f32 %v1342, %v418
        %v3519 = vmul.f32 %v1343, %v419
        %v3520 = vmul.f32 %v1406, %v420
        %v3521 = vmul.f32 %v1407, %v421
        %v3522 = vmul.f32 %v1344, %v418
        %v3523 = vmul.f32 %v1345, %v419
        %v3524 = vmul.f32 %v1408, %v420
        %v3525 = vmul.f32 %v1409, %v421
        %v3526 = vmul.f32 %v1346, %v418
        %v3527 = vmul.f32 %v1347, %v419
        %v3528 = vmul.f32 %v1410, %v420
        %v3529 = vmul.f32 %v1411, %v421
        %v3530 = vmul.f32 %v1348, %v418
        %v3531 = vmul.f32 %v1349, %v419
        %v3532 = vmul.f32 %v1412, %v420
        %v3533 = vmul.f32 %v1413, %v421
        %v3534 = vmul.f32 %v1350, %v418
        %v3535 = vmul.f32 %v1351, %v419
        %v3536 = vmul.f32 %v1414, %v420
        %v3537 = vmul.f32 %v1415, %v421
        %v3538 = vmul.f32 %v1352, %v418
        %v3539 = vmul.f32 %v1353, %v419
        %v3540 = vmul.f32 %v1416, %v420
        %v3541 = vmul.f32 %v1417, %v421
        %v3542 = vmul.f32 %v1354, %v418
        %v3543 = vmul.f32 %v1355, %v419
        %v3544 = vmul.f32 %v1418, %v420
        %v3545 = vmul.f32 %v1419, %v421
        %v3546 = vmul.f32 %v1356, %v418
        %v3547 = vmul.f32 %v1357, %v419
        %v3548 = vmul.f32 %v1420, %v420
        %v3549 = vmul.f32 %v1421, %v421
        %v3550 = vmul.f32 %v1358, %v418
        %v3551 = vmul.f32 %v1359, %v419
        %v3552 = vmul.f32 %v1422, %v420
        %v3553 = vmul.f32 %v1423, %v421
        %v3554 = vmul.f32 %v1360, %v418
        %v3555 = vmul.f32 %v1361, %v419
        %v3556 = vmul.f32 %v1424, %v420
        %v3557 = vmul.f32 %v1425, %v421
        %v3558 = vmul.f32 %v1362, %v418
        %v3559 = vmul.f32 %v1363, %v419
        %v3560 = vmul.f32 %v1426, %v420
        %v3561 = vmul.f32 %v1427, %v421
        %v3562 = vmul.f32 %v1364, %v418
        %v3563 = vmul.f32 %v1365, %v419
        %v3564 = vmul.f32 %v1428, %v420
        %v3565 = vmul.f32 %v1429, %v421
        %v3566 = vmul.f32 %v1366, %v418
        %v3567 = vmul.f32 %v1367, %v419
        %v3568 = vmul.f32 %v1430, %v420
        %v3569 = vmul.f32 %v1431, %v421
        %v3570 = vmul.f32 %v1368, %v418
        %v3571 = vmul.f32 %v1369, %v419
        %v3572 = vmul.f32 %v1432, %v420
        %v3573 = vmul.f32 %v1433, %v421
        %v3574 = vmul.f32 %v1370, %v418
        %v3575 = vmul.f32 %v1371, %v419
        %v3576 = vmul.f32 %v1434, %v420
        %v3577 = vmul.f32 %v1435, %v421
        %v3578 = vmul.f32 %v1372, %v418
        %v3579 = vmul.f32 %v1373, %v419
        %v3580 = vmul.f32 %v1436, %v420
        %v3581 = vmul.f32 %v1437, %v421
        %v3582 = vmul.f32 %v1374, %v418
        %v3583 = vmul.f32 %v1375, %v419
        %v3584 = vmul.f32 %v1438, %v420
        %v3585 = vmul.f32 %v1439, %v421
        %v3586 = vmul.f32 %v1376, %v418
        %v3587 = vmul.f32 %v1377, %v419
        %v3588 = vmul.f32 %v1440, %v420
        %v3589 = vmul.f32 %v1441, %v421
        %v3590 = vmul.f32 %v1378, %v418
        %v3591 = vmul.f32 %v1379, %v419
        %v3592 = vmul.f32 %v1442, %v420
        %v3593 = vmul.f32 %v1443, %v421
        %v3594 = vmul.f32 %v1380, %v418
        %v3595 = vmul.f32 %v1381, %v419
        %v3596 = vmul.f32 %v1444, %v420
        %v3597 = vmul.f32 %v1445, %v421
        %v3598 = vmul.f32 %v1382, %v418
        %v3599 = vmul.f32 %v1383, %v419
        %v3600 = vmul.f32 %v1446, %v420
        %v3601 = vmul.f32 %v1447, %v421
        %v3602 = vmul.f32 %v1384, %v418
        %v3603 = vmul.f32 %v1385, %v419
        %v3604 = vmul.f32 %v1448, %v420
        %v3605 = vmul.f32 %v1449, %v421
        %v3606 = vmul.f32 %v1386, %v418
        %v3607 = vmul.f32 %v1387, %v419
        %v3608 = vmul.f32 %v1450, %v420
        %v3609 = vmul.f32 %v1451, %v421
        %v3610 = vmul.f32 %v1388, %v418
        %v3611 = vmul.f32 %v1389, %v419
        %v3612 = vmul.f32 %v1452, %v420
        %v3613 = vmul.f32 %v1453, %v421
        %v3614 = vmul.f32 %v1390, %v418
        %v3615 = vmul.f32 %v1391, %v419
        %v3616 = vmul.f32 %v1454, %v420
        %v3617 = vmul.f32 %v1455, %v421
        %v3618 = vmul.f32 %v1392, %v418
        %v3619 = vmul.f32 %v1393, %v419
        %v3620 = vmul.f32 %v1456, %v420
        %v3621 = vmul.f32 %v1457, %v421
        %v3622 = vmul.f32 %v1394, %v418
        %v3623 = vmul.f32 %v1395, %v419
        %v3624 = vmul.f32 %v1458, %v420
        %v3625 = vmul.f32 %v1459, %v421
        %v3626 = vmul.f32 %v1396, %v418
        %v3627 = vmul.f32 %v1397, %v419
        %v3628 = vmul.f32 %v1460, %v420
        %v3629 = vmul.f32 %v1461, %v421
        %v3630 = vmul.f32 %v1398, %v418
        %v3631 = vmul.f32 %v1399, %v419
        %v3632 = vmul.f32 %v1462, %v420
        %v3633 = vmul.f32 %v1463, %v421
        %v3634 = vmul.f32 %v1400, %v418
        %v3635 = vmul.f32 %v1401, %v419
        %v3636 = vmul.f32 %v1464, %v420
        %v3637 = vmul.f32 %v1465, %v421
        %v3638 = vadd.f32 %v3390, %v3514
        %v3639 = vadd.f32 %v3391, %v3515
        %v3640 = vadd.f32 %v3392, %v3516
        %v3641 = vadd.f32 %v3393, %v3517
        %v3642 = vadd.f32 %v3394, %v3518
        %v3643 = vadd.f32 %v3395, %v3519
        %v3644 = vadd.f32 %v3396, %v3520
        %v3645 = vadd.f32 %v3397, %v3521
        %v3646 = vadd.f32 %v3398, %v3522
        %v3647 = vadd.f32 %v3399, %v3523
        %v3648 = vadd.f32 %v3400, %v3524
        %v3649 = vadd.f32 %v3401, %v3525
        %v3650 = vadd.f32 %v3402, %v3526
        %v3651 = vadd.f32 %v3403, %v3527
        %v3652 = vadd.f32 %v3404, %v3528
        %v3653 = vadd.f32 %v3405, %v3529
        %v3654 = vadd.f32 %v3406, %v3530
        %v3655 = vadd.f32 %v3407, %v3531
        %v3656 = vadd.f32 %v3408, %v3532
        %v3657 = vadd.f32 %v3409, %v3533
        %v3658 = vadd.f32 %v3410, %v3534
        %v3659 = vadd.f32 %v3411, %v3535
        %v3660 = vadd.f32 %v3412, %v3536
        %v3661 = vadd.f32 %v3413, %v3537
        %v3662 = vadd.f32 %v3414, %v3538
        %v3663 = vadd.f32 %v3415, %v3539
        %v3664 = vadd.f32 %v3416, %v3540
        %v3665 = vadd.f32 %v3417, %v3541
        %v3666 = vadd.f32 %v3418, %v3542
        %v3667 = vadd.f32 %v3419, %v3543
        %v3668 = vadd.f32 %v3420, %v3544
        %v3669 = vadd.f32 %v3421, %v3545
        %v3670 = vadd.f32 %v3422, %v3546
        %v3671 = vadd.f32 %v3423, %v3547
        %v3672 = vadd.f32 %v3424, %v3548
        %v3673 = vadd.f32 %v3425, %v3549
        %v3674 = vadd.f32 %v3426, %v3550
        %v3675 = vadd.f32 %v3427, %v3551
        %v3676 = vadd.f32 %v3428, %v3552
        %v3677 = vadd.f32 %v3429, %v3553
        %v3678 = vadd.f32 %v3430, %v3554
        %v3679 = vadd.f32 %v3431, %v3555
        %v3680 = vadd.f32 %v3432, %v3556
        %v3681 = vadd.f32 %v3433, %v3557
        %v3682 = vadd.f32 %v3434, %v3558
        %v3683 = vadd.f32 %v3435, %v3559
        %v3684 = vadd.f32 %v3436, %v3560
        %v3685 = vadd.f32 %v3437, %v3561
        %v3686 = vadd.f32 %v3438, %v3562
        %v3687 = vadd.f32 %v3439, %v3563
        %v3688 = vadd.f32 %v3440, %v3564
        %v3689 = vadd.f32 %v3441, %v3565
        %v3690 = vadd.f32 %v3442, %v3566
        %v3691 = vadd.f32 %v3443, %v3567
        %v3692 = vadd.f32 %v3444, %v3568
        %v3693 = vadd.f32 %v3445, %v3569
        %v3694 = vadd.f32 %v3446, %v3570
        %v3695 = vadd.f32 %v3447, %v3571
        %v3696 = vadd.f32 %v3448, %v3572
        %v3697 = vadd.f32 %v3449, %v3573
        %v3698 = vadd.f32 %v3450, %v3574
        %v3699 = vadd.f32 %v3451, %v3575
        %v3700 = vadd.f32 %v3452, %v3576
        %v3701 = vadd.f32 %v3453, %v3577
        %v3702 = vadd.f32 %v3454, %v3578
        %v3703 = vadd.f32 %v3455, %v3579
        %v3704 = vadd.f32 %v3456, %v3580
        %v3705 = vadd.f32 %v3457, %v3581
        %v3706 = vadd.f32 %v3458, %v3582
        %v3707 = vadd.f32 %v3459, %v3583
        %v3708 = vadd.f32 %v3460, %v3584
        %v3709 = vadd.f32 %v3461, %v3585
        %v3710 = vadd.f32 %v3462, %v3586
        %v3711 = vadd.f32 %v3463, %v3587
        %v3712 = vadd.f32 %v3464, %v3588
        %v3713 = vadd.f32 %v3465, %v3589
        %v3714 = vadd.f32 %v3466, %v3590
        %v3715 = vadd.f32 %v3467, %v3591
        %v3716 = vadd.f32 %v3468, %v3592
        %v3717 = vadd.f32 %v3469, %v3593
        %v3718 = vadd.f32 %v3470, %v3594
        %v3719 = vadd.f32 %v3471, %v3595
        %v3720 = vadd.f32 %v3472, %v3596
        %v3721 = vadd.f32 %v3473, %v3597
        %v3722 = vadd.f32 %v3474, %v3598
        %v3723 = vadd.f32 %v3475, %v3599
        %v3724 = vadd.f32 %v3476, %v3600
        %v3725 = vadd.f32 %v3477, %v3601
        %v3726 = vadd.f32 %v3478, %v3602
        %v3727 = vadd.f32 %v3479, %v3603
        %v3728 = vadd.f32 %v3480, %v3604
        %v3729 = vadd.f32 %v3481, %v3605
        %v3730 = vadd.f32 %v3482, %v3606
        %v3731 = vadd.f32 %v3483, %v3607
        %v3732 = vadd.f32 %v3484, %v3608
        %v3733 = vadd.f32 %v3485, %v3609
        %v3734 = vadd.f32 %v3486, %v3610
        %v3735 = vadd.f32 %v3487, %v3611
        %v3736 = vadd.f32 %v3488, %v3612
        %v3737 = vadd.f32 %v3489, %v3613
        %v3738 = vadd.f32 %v3490, %v3614
        %v3739 = vadd.f32 %v3491, %v3615
        %v3740 = vadd.f32 %v3492, %v3616
        %v3741 = vadd.f32 %v3493, %v3617
        %v3742 = vadd.f32 %v3494, %v3618
        %v3743 = vadd.f32 %v3495, %v3619
        %v3744 = vadd.f32 %v3496, %v3620
        %v3745 = vadd.f32 %v3497, %v3621
        %v3746 = vadd.f32 %v3498, %v3622
        %v3747 = vadd.f32 %v3499, %v3623
        %v3748 = vadd.f32 %v3500, %v3624
        %v3749 = vadd.f32 %v3501, %v3625
        %v3750 = vadd.f32 %v3502, %v3626
        %v3751 = vadd.f32 %v3503, %v3627
        %v3752 = vadd.f32 %v3504, %v3628
        %v3753 = vadd.f32 %v3505, %v3629
        %v3754 = vadd.f32 %v3506, %v3630
        %v3755 = vadd.f32 %v3507, %v3631
        %v3756 = vadd.f32 %v3508, %v3632
        %v3757 = vadd.f32 %v3509, %v3633
        %v3758 = vadd.f32 %v3510, %v3634
        %v3759 = vadd.f32 %v3511, %v3635
        %v3760 = vadd.f32 %v3512, %v3636
        %v3761 = vadd.f32 %v3513, %v3637
        %v3762 = vadd.f32 %v3000, %v3638
        %v3763 = vadd.f32 %v3001, %v3639
        %v3764 = vadd.f32 %v3002, %v3640
        %v3765 = vadd.f32 %v3003, %v3641
        %v3766 = vadd.f32 %v3004, %v3642
        %v3767 = vadd.f32 %v3005, %v3643
        %v3768 = vadd.f32 %v3006, %v3644
        %v3769 = vadd.f32 %v3007, %v3645
        %v3770 = vadd.f32 %v3008, %v3646
        %v3771 = vadd.f32 %v3009, %v3647
        %v3772 = vadd.f32 %v3010, %v3648
        %v3773 = vadd.f32 %v3011, %v3649
        %v3774 = vadd.f32 %v3012, %v3650
        %v3775 = vadd.f32 %v3013, %v3651
        %v3776 = vadd.f32 %v3014, %v3652
        %v3777 = vadd.f32 %v3015, %v3653
        %v3778 = vadd.f32 %v3016, %v3654
        %v3779 = vadd.f32 %v3017, %v3655
        %v3780 = vadd.f32 %v3018, %v3656
        %v3781 = vadd.f32 %v3019, %v3657
        %v3782 = vadd.f32 %v3020, %v3658
        %v3783 = vadd.f32 %v3021, %v3659
        %v3784 = vadd.f32 %v3022, %v3660
        %v3785 = vadd.f32 %v3023, %v3661
        %v3786 = vadd.f32 %v3024, %v3662
        %v3787 = vadd.f32 %v3025, %v3663
        %v3788 = vadd.f32 %v3026, %v3664
        %v3789 = vadd.f32 %v3027, %v3665
        %v3790 = vadd.f32 %v3028, %v3666
        %v3791 = vadd.f32 %v3029, %v3667
        %v3792 = vadd.f32 %v3030, %v3668
        %v3793 = vadd.f32 %v3031, %v3669
        %v3794 = vadd.f32 %v3032, %v3670
        %v3795 = vadd.f32 %v3033, %v3671
        %v3796 = vadd.f32 %v3034, %v3672
        %v3797 = vadd.f32 %v3035, %v3673
        %v3798 = vadd.f32 %v3036, %v3674
        %v3799 = vadd.f32 %v3037, %v3675
        %v3800 = vadd.f32 %v3038, %v3676
        %v3801 = vadd.f32 %v3039, %v3677
        %v3802 = vadd.f32 %v3040, %v3678
        %v3803 = vadd.f32 %v3041, %v3679
        %v3804 = vadd.f32 %v3042, %v3680
        %v3805 = vadd.f32 %v3043, %v3681
        %v3806 = vadd.f32 %v3044, %v3682
        %v3807 = vadd.f32 %v3045, %v3683
        %v3808 = vadd.f32 %v3046, %v3684
        %v3809 = vadd.f32 %v3047, %v3685
        %v3810 = vadd.f32 %v3048, %v3686
        %v3811 = vadd.f32 %v3049, %v3687
        %v3812 = vadd.f32 %v3050, %v3688
        %v3813 = vadd.f32 %v3051, %v3689
        %v3814 = vadd.f32 %v3052, %v3690
        %v3815 = vadd.f32 %v3053, %v3691
        %v3816 = vadd.f32 %v3054, %v3692
        %v3817 = vadd.f32 %v3055, %v3693
        %v3818 = vadd.f32 %v3056, %v3694
        %v3819 = vadd.f32 %v3057, %v3695
        %v3820 = vadd.f32 %v3058, %v3696
        %v3821 = vadd.f32 %v3059, %v3697
        %v3822 = vadd.f32 %v3060, %v3698
        %v3823 = vadd.f32 %v3061, %v3699
        %v3824 = vadd.f32 %v3062, %v3700
        %v3825 = vadd.f32 %v3063, %v3701
        %v3826 = vadd.f32 %v3064, %v3702
        %v3827 = vadd.f32 %v3065, %v3703
        %v3828 = vadd.f32 %v3066, %v3704
        %v3829 = vadd.f32 %v3067, %v3705
        %v3830 = vadd.f32 %v3068, %v3706
        %v3831 = vadd.f32 %v3069, %v3707
        %v3832 = vadd.f32 %v3070, %v3708
        %v3833 = vadd.f32 %v3071, %v3709
        %v3834 = vadd.f32 %v3072, %v3710
        %v3835 = vadd.f32 %v3073, %v3711
        %v3836 = vadd.f32 %v3074, %v3712
        %v3837 = vadd.f32 %v3075, %v3713
        %v3838 = vadd.f32 %v3076, %v3714
        %v3839 = vadd.f32 %v3077, %v3715
        %v3840 = vadd.f32 %v3078, %v3716
        %v3841 = vadd.f32 %v3079, %v3717
        %v3842 = vadd.f32 %v3080, %v3718
        %v3843 = vadd.f32 %v3081, %v3719
        %v3844 = vadd.f32 %v3082, %v3720
        %v3845 = vadd.f32 %v3083, %v3721
        %v3846 = vadd.f32 %v3084, %v3722
        %v3847 = vadd.f32 %v3085, %v3723
        %v3848 = vadd.f32 %v3086, %v3724
        %v3849 = vadd.f32 %v3087, %v3725
        %v3850 = vadd.f32 %v3088, %v3726
        %v3851 = vadd.f32 %v3089, %v3727
        %v3852 = vadd.f32 %v3090, %v3728
        %v3853 = vadd.f32 %v3091, %v3729
        %v3854 = vadd.f32 %v3092, %v3730
        %v3855 = vadd.f32 %v3093, %v3731
        %v3856 = vadd.f32 %v3094, %v3732
        %v3857 = vadd.f32 %v3095, %v3733
        %v3858 = vadd.f32 %v3096, %v3734
        %v3859 = vadd.f32 %v3097, %v3735
        %v3860 = vadd.f32 %v3098, %v3736
        %v3861 = vadd.f32 %v3099, %v3737
        %v3862 = vadd.f32 %v3100, %v3738
        %v3863 = vadd.f32 %v3101, %v3739
        %v3864 = vadd.f32 %v3102, %v3740
        %v3865 = vadd.f32 %v3103, %v3741
        %v3866 = vadd.f32 %v3104, %v3742
        %v3867 = vadd.f32 %v3105, %v3743
        %v3868 = vadd.f32 %v3106, %v3744
        %v3869 = vadd.f32 %v3107, %v3745
        %v3870 = vadd.f32 %v3108, %v3746
        %v3871 = vadd.f32 %v3109, %v3747
        %v3872 = vadd.f32 %v3110, %v3748
        %v3873 = vadd.f32 %v3111, %v3749
        %v3874 = vadd.f32 %v3112, %v3750
        %v3875 = vadd.f32 %v3113, %v3751
        %v3876 = vadd.f32 %v3114, %v3752
        %v3877 = vadd.f32 %v3115, %v3753
        %v3878 = vadd.f32 %v3116, %v3754
        %v3879 = vadd.f32 %v3117, %v3755
        %v3880 = vadd.f32 %v3118, %v3756
        %v3881 = vadd.f32 %v3119, %v3757
        %v3882 = vadd.f32 %v3120, %v3758
        %v3883 = vadd.f32 %v3121, %v3759
        %v3884 = vadd.f32 %v3122, %v3760
        %v3885 = vadd.f32 %v3123, %v3761
        %3886 = vst [vmem:[%s257] sm:$0xff] %v3762
        %3887 = vst [vmem:[%s257 + $0x8] sm:$0xff] %v3763
        %3888 = vst [vmem:[%s257 + $0x10] sm:$0xff] %v3764
        %3889 = vst [vmem:[%s257 + $0x18] sm:$0xff] %v3765
        %3890 = vst [vmem:[%s257 + $0x20] sm:$0xff] %v3766
        %3891 = vst [vmem:[%s257 + $0x28] sm:$0xff] %v3767
        %3892 = vst [vmem:[%s257 + $0x30] sm:$0xff] %v3768
        %3893 = vst [vmem:[%s257 + $0x38] sm:$0xff] %v3769
        %3894 = vst [vmem:[%s257 + $0x40] sm:$0xff] %v3770
        %3895 = vst [vmem:[%s257 + $0x48] sm:$0xff] %v3771
        %3896 = vst [vmem:[%s257 + $0x50] sm:$0xff] %v3772
        %3897 = vst [vmem:[%s257 + $0x58] sm:$0xff] %v3773
        %3898 = vst [vmem:[%s257 + $0x60] sm:$0xff] %v3774
        %3899 = vst [vmem:[%s257 + $0x68] sm:$0xff] %v3775
        %3900 = vst [vmem:[%s257 + $0x70] sm:$0xff] %v3776
        %3901 = vst [vmem:[%s257 + $0x78] sm:$0xff] %v3777
        %3902 = vst [vmem:[%s257 + $0x80] sm:$0xff] %v3778
        %3903 = vst [vmem:[%s257 + $0x88] sm:$0xff] %v3779
        %3904 = vst [vmem:[%s257 + $0x90] sm:$0xff] %v3780
        %3905 = vst [vmem:[%s257 + $0x98] sm:$0xff] %v3781
        %3906 = vst [vmem:[%s257 + $0xa0] sm:$0xff] %v3782
        %3907 = vst [vmem:[%s257 + $0xa8] sm:$0xff] %v3783
        %3908 = vst [vmem:[%s257 + $0xb0] sm:$0xff] %v3784
        %3909 = vst [vmem:[%s257 + $0xb8] sm:$0xff] %v3785
        %3910 = vst [vmem:[%s257 + $0xc0] sm:$0xff] %v3786
        %3911 = vst [vmem:[%s257 + $0xc8] sm:$0xff] %v3787
        %3912 = vst [vmem:[%s257 + $0xd0] sm:$0xff] %v3788
        %3913 = vst [vmem:[%s257 + $0xd8] sm:$0xff] %v3789
        %3914 = vst [vmem:[%s257 + $0xe0] sm:$0xff] %v3790
        %3915 = vst [vmem:[%s257 + $0xe8] sm:$0xff] %v3791
        %3916 = vst [vmem:[%s257 + $0xf0] sm:$0xff] %v3792
        %3917 = vst [vmem:[%s257 + $0xf8] sm:$0xff] %v3793
        %3918 = vst [vmem:[%s257 + $0x100] sm:$0xff] %v3794
        %3919 = vst [vmem:[%s257 + $0x108] sm:$0xff] %v3795
        %3920 = vst [vmem:[%s257 + $0x110] sm:$0xff] %v3796
        %3921 = vst [vmem:[%s257 + $0x118] sm:$0xff] %v3797
        %3922 = vst [vmem:[%s257 + $0x120] sm:$0xff] %v3798
        %3923 = vst [vmem:[%s257 + $0x128] sm:$0xff] %v3799
        %3924 = vst [vmem:[%s257 + $0x130] sm:$0xff] %v3800
        %3925 = vst [vmem:[%s257 + $0x138] sm:$0xff] %v3801
        %3926 = vst [vmem:[%s257 + $0x140] sm:$0xff] %v3802
        %3927 = vst [vmem:[%s257 + $0x148] sm:$0xff] %v3803
        %3928 = vst [vmem:[%s257 + $0x150] sm:$0xff] %v3804
        %3929 = vst [vmem:[%s257 + $0x158] sm:$0xff] %v3805
        %3930 = vst [vmem:[%s257 + $0x160] sm:$0xff] %v3806
        %3931 = vst [vmem:[%s257 + $0x168] sm:$0xff] %v3807
        %3932 = vst [vmem:[%s257 + $0x170] sm:$0xff] %v3808
        %3933 = vst [vmem:[%s257 + $0x178] sm:$0xff] %v3809
        %3934 = vst [vmem:[%s257 + $0x180] sm:$0xff] %v3810
        %3935 = vst [vmem:[%s257 + $0x188] sm:$0xff] %v3811
        %3936 = vst [vmem:[%s257 + $0x190] sm:$0xff] %v3812
        %3937 = vst [vmem:[%s257 + $0x198] sm:$0xff] %v3813
        %3938 = vst [vmem:[%s257 + $0x1a0] sm:$0xff] %v3814
        %3939 = vst [vmem:[%s257 + $0x1a8] sm:$0xff] %v3815
        %3940 = vst [vmem:[%s257 + $0x1b0] sm:$0xff] %v3816
        %3941 = vst [vmem:[%s257 + $0x1b8] sm:$0xff] %v3817
        %3942 = vst [vmem:[%s257 + $0x1c0] sm:$0xff] %v3818
        %3943 = vst [vmem:[%s257 + $0x1c8] sm:$0xff] %v3819
        %3944 = vst [vmem:[%s257 + $0x1d0] sm:$0xff] %v3820
        %3945 = vst [vmem:[%s257 + $0x1d8] sm:$0xff] %v3821
        %3946 = vst [vmem:[%s257 + $0x1e0] sm:$0xff] %v3822
        %3947 = vst [vmem:[%s257 + $0x1e8] sm:$0xff] %v3823
        %3948 = vst [vmem:[%s257 + $0x1f0] sm:$0xff] %v3824
        %3949 = vst [vmem:[%s257 + $0x1f8] sm:$0xff] %v3825
        %3950 = vst [vmem:[%s257 + $0x200] sm:$0xff] %v3826
        %3951 = vst [vmem:[%s257 + $0x208] sm:$0xff] %v3827
        %3952 = vst [vmem:[%s257 + $0x210] sm:$0xff] %v3828
        %3953 = vst [vmem:[%s257 + $0x218] sm:$0xff] %v3829
        %3954 = vst [vmem:[%s257 + $0x220] sm:$0xff] %v3830
        %3955 = vst [vmem:[%s257 + $0x228] sm:$0xff] %v3831
        %3956 = vst [vmem:[%s257 + $0x230] sm:$0xff] %v3832
        %3957 = vst [vmem:[%s257 + $0x238] sm:$0xff] %v3833
        %3958 = vst [vmem:[%s257 + $0x240] sm:$0xff] %v3834
        %3959 = vst [vmem:[%s257 + $0x248] sm:$0xff] %v3835
        %3960 = vst [vmem:[%s257 + $0x250] sm:$0xff] %v3836
        %3961 = vst [vmem:[%s257 + $0x258] sm:$0xff] %v3837
        %3962 = vst [vmem:[%s257 + $0x260] sm:$0xff] %v3838
        %3963 = vst [vmem:[%s257 + $0x268] sm:$0xff] %v3839
        %3964 = vst [vmem:[%s257 + $0x270] sm:$0xff] %v3840
        %3965 = vst [vmem:[%s257 + $0x278] sm:$0xff] %v3841
        %3966 = vst [vmem:[%s257 + $0x280] sm:$0xff] %v3842
        %3967 = vst [vmem:[%s257 + $0x288] sm:$0xff] %v3843
        %3968 = vst [vmem:[%s257 + $0x290] sm:$0xff] %v3844
        %3969 = vst [vmem:[%s257 + $0x298] sm:$0xff] %v3845
        %3970 = vst [vmem:[%s257 + $0x2a0] sm:$0xff] %v3846
        %3971 = vst [vmem:[%s257 + $0x2a8] sm:$0xff] %v3847
        %3972 = vst [vmem:[%s257 + $0x2b0] sm:$0xff] %v3848
        %3973 = vst [vmem:[%s257 + $0x2b8] sm:$0xff] %v3849
        %3974 = vst [vmem:[%s257 + $0x2c0] sm:$0xff] %v3850
        %3975 = vst [vmem:[%s257 + $0x2c8] sm:$0xff] %v3851
        %3976 = vst [vmem:[%s257 + $0x2d0] sm:$0xff] %v3852
        %3977 = vst [vmem:[%s257 + $0x2d8] sm:$0xff] %v3853
        %3978 = vst [vmem:[%s257 + $0x2e0] sm:$0xff] %v3854
        %3979 = vst [vmem:[%s257 + $0x2e8] sm:$0xff] %v3855
        %3980 = vst [vmem:[%s257 + $0x2f0] sm:$0xff] %v3856
        %3981 = vst [vmem:[%s257 + $0x2f8] sm:$0xff] %v3857
        %3982 = vst [vmem:[%s257 + $0x300] sm:$0xff] %v3858
        %3983 = vst [vmem:[%s257 + $0x308] sm:$0xff] %v3859
        %3984 = vst [vmem:[%s257 + $0x310] sm:$0xff] %v3860
        %3985 = vst [vmem:[%s257 + $0x318] sm:$0xff] %v3861
        %3986 = vst [vmem:[%s257 + $0x320] sm:$0xff] %v3862
        %3987 = vst [vmem:[%s257 + $0x328] sm:$0xff] %v3863
        %3988 = vst [vmem:[%s257 + $0x330] sm:$0xff] %v3864
        %3989 = vst [vmem:[%s257 + $0x338] sm:$0xff] %v3865
        %3990 = vst [vmem:[%s257 + $0x340] sm:$0xff] %v3866
        %3991 = vst [vmem:[%s257 + $0x348] sm:$0xff] %v3867
        %3992 = vst [vmem:[%s257 + $0x350] sm:$0xff] %v3868
        %3993 = vst [vmem:[%s257 + $0x358] sm:$0xff] %v3869
        %3994 = vst [vmem:[%s257 + $0x360] sm:$0xff] %v3870
        %3995 = vst [vmem:[%s257 + $0x368] sm:$0xff] %v3871
        %3996 = vst [vmem:[%s257 + $0x370] sm:$0xff] %v3872
        %3997 = vst [vmem:[%s257 + $0x378] sm:$0xff] %v3873
        %3998 = vst [vmem:[%s257 + $0x380] sm:$0xff] %v3874
        %3999 = vst [vmem:[%s257 + $0x388] sm:$0xff] %v3875
        %4000 = vst [vmem:[%s257 + $0x390] sm:$0xff] %v3876
        %4001 = vst [vmem:[%s257 + $0x398] sm:$0xff] %v3877
        %4002 = vst [vmem:[%s257 + $0x3a0] sm:$0xff] %v3878
        %4003 = vst [vmem:[%s257 + $0x3a8] sm:$0xff] %v3879
        %4004 = vst [vmem:[%s257 + $0x3b0] sm:$0xff] %v3880
        %4005 = vst [vmem:[%s257 + $0x3b8] sm:$0xff] %v3881
        %4006 = vst [vmem:[%s257 + $0x3c0] sm:$0xff] %v3882
        %4007 = vst [vmem:[%s257 + $0x3c8] sm:$0xff] %v3883
        %4008 = vst [vmem:[%s257 + $0x3d0] sm:$0xff] %v3884
        %4009 = vst [vmem:[%s257 + $0x3d8] sm:$0xff] %v3885
        %s4010 = sand.u32 %s134, 1
        %s4011 = scalar_lea.sflag [#allocation4], %s4010
        %s4012 = sand.u32 %s134, 1
        %s4013 = smul.addr %s4012, 1024
        %s4014 = scalar_lea.vmem [#allocation7], %s4013
        // Predicated region
        $region41: #{tpu_custom_call.1} parent=31 // pred_check
          %p4015 = pneg %p144
        $region42: #{tpu_custom_call.1} parent=31 // pred_check_branch
          %4017 = sbr.rel (%p4015) target = $region44
        $region43: #{tpu_custom_call.1} parent=31 // pred_region
          %s4018 = smul.u32 32, %s28
          %s4019 = smul.u32 2, %s26
          %s4021 = ssub.s32 16384, 16384
          %4022 = vsyncadd %s4011, %s4021
          %s4023 = smul.addr %s4018, 4
          %s4024 = sadd.s32 %s4019, %s4023
          %s4025 = smul.addr %s27, 128
          %s4026 = sadd.s32 %s4024, %s4025
          %s4027 = smul.addr %s4026, 128
          %s4028 = scalar_lea.hbm %s3, %s4027
          %s4029 = sshll.u32 %s4014, 4
          %s4030 = int_to_ptr.vmem [resolvable:$true] %s4029
          %4035 = dma.vmem_to_hbm [thread:$0]  %s4030, 16384, %s4028, %s4011, 256, 256, 16
        $region44: #{tpu_custom_call.1} parent=31 // pred_fallthru
          _
      $region32: #{tpu_custom_call.1} parent=5 // pred_fallthru
        _
      %p4036 = scmp.le.s32.totalorder 2, %s16
      // Predicated region
      $region45: #{tpu_custom_call.1} parent=5 // pred_check
        %p4037 = pneg %p4036
      $region46: #{tpu_custom_call.1} parent=5 // pred_check_branch
        %4039 = sbr.rel (%p4037) target = $region48
      $region47: #{tpu_custom_call.1} parent=5 // pred_region
        %s4040 = ssub.s32 %s16, 2
        // Predicated region
        $region49: #{tpu_custom_call.1} parent=47 // pred_check
          %p4041 = pneg %p150
        $region50: #{tpu_custom_call.1} parent=47 // pred_check_branch
          %4043 = sbr.rel (%p4041) target = $region52
        $region51: #{tpu_custom_call.1} parent=47 // pred_region
          %s4044 = sand.u32 %s135, 1
          %s4045 = scalar_lea.sflag [#allocation4], %s4044
          %s4046 = sand.u32 %s135, 1
          %s4047 = smul.addr %s4046, 1024
          %s4048 = scalar_lea.vmem [#allocation7], %s4047
          %4049 = dma.done %s4045, 16384
        $region52: #{tpu_custom_call.1} parent=47 // pred_fallthru
          _
      $region48: #{tpu_custom_call.1} parent=5 // pred_fallthru
        _
    $region6: #{tpu_custom_call.1} parent=1 // loop_footer
      %s20 = sadd.s32 1, %s16
    $region7: #{tpu_custom_call.1} parent=1 // loop_footer_branch
      %15 = sbr.rel target = $region3
    $region8: #{tpu_custom_call.1} parent=1 // loop_exit
      _
    %4050 = vsyncpa [#allocation3], 1
    %s4051 = scalar_lea.sflag [#allocation3], 1
    %4052 = vsyncpa %s4051, 1
    %4053 = vsyncpa [#allocation6], 1
    %4054 = vsyncpa [#allocation4], 1
    %s4055 = scalar_lea.sflag [#allocation4], 1
    %4056 = vsyncpa %s4055, 1

</llo_original>
